<compile_context>
chip_gen: v7x
topology: tpu7x:2x2x1
jax: 0.10.0
libtpu: 0.0.40
codegen_flags: <defaults>
</compile_context>

<pallas_src>
import functools

import jax
import jax.numpy as jnp
from jax import lax
from jax.experimental import pallas as pl
from jax.experimental.pallas import tpu as pltpu


# --------------------------- hardware-aware knobs ----------------------------
def _vmem_limit_bytes() -> int:
    """3/4 of physical VMEM (96 MiB on v5e/v6e, 48 MiB on v7x), capped/floored."""
    cap = 64 * 1024 * 1024  # conservative fallback (v7x physical)
    try:
        info = pltpu.get_tpu_info()
        cap = int(getattr(info, "vmem_capacity_bytes", cap))
    except Exception:
        pass
    return max(32 * 1024 * 1024, min((cap * 3) // 4, 100 * 1024 * 1024))


# ----------------------- branch mixing (fused, one pass) ---------------------
def _quanoise_mix(x_nchw, weight, bits, key):
    """ReLU + fp/noisy-branch mixing collapsed to a single FMA per tensor."""
    nb = len(bits)
    fp_alpha = 1.0 / (nb + 1)
    alpha = 1.0 / (nb + fp_alpha)               # alphas = ones(nb) / (sum + fp_alpha)
    xr = jax.nn.relu(x_nchw)

    units = jnp.asarray([1.0 / (2.0 ** b - 1.0) for b in bits], jnp.float32)
    k_w, k_x = jax.random.split(key)
    n_w = jax.random.normal(k_w, (nb,) + weight.shape, jnp.float32)
    n_x = jax.random.normal(k_x, (nb,) + xr.shape, jnp.float32)
    noise_w = jnp.tensordot(units, n_w, axes=1)   # sum_b unit_b * N_b  (one pass)
    noise_x = jnp.tensordot(units, n_x, axes=1)

    s_w = jnp.max(weight) - jnp.min(weight)       # quant_noise scale: global over tensor
    s_x = jnp.max(xr) - jnp.min(xr)

    c = fp_alpha + nb * alpha
    w_mix = c * weight + (0.5 * alpha * s_w) * noise_w
    a_mix = c * xr + (0.5 * alpha * s_x) * noise_x
    return a_mix, w_mix


# ----------------------- conv2d as an im2col-free kernel ---------------------
def _conv2d_pallas(a_mix, w_mix, padding):
    """stride=1 / dilation=1 / groups=1 conv; KH*KW shift-and-matmul taps."""
    N, Cin, H, W = a_mix.shape
    Cout, _, KH, KW = w_mix.shape
    Hp, Wp = H + 2 * padding, W + 2 * padding
    Hout, Wout = Hp - KH + 1, Wp - KW + 1

    # Flattened-spatial geometry: output column f = ho*Wp + wo; the input for
    # tap (kh, kw) is the same flat axis shifted by off = kh*Wp + kw.  Columns
    # with wo >= Wout are over-compute and get sliced off afterwards.
    L = Hout * Wp                                  # flattened output span
    off_max = (KH - 1) * Wp + (KW - 1)
    Lsrc = max(Hp * Wp, off_max + L)
    Lsrc = ((Lsrc + 7) // 8) * 8                   # tidy sublane count

    # Activations: NCHW -> NHWC -> spatial zero-pad -> (N, Hp*Wp, Cin), bf16.
    # Spatial on the sublane axis (arbitrary static offsets are cheap there),
    # Cin on lanes.  Extra zero tail only feeds discarded columns.
    a = a_mix.astype(jnp.bfloat16).transpose(0, 2, 3, 1)
    a = jnp.pad(a, ((0, 0), (padding, padding), (padding, padding), (0, 0)))
    a = a.reshape(N, Hp * Wp, Cin)
    if Lsrc != Hp * Wp:
        a = jnp.pad(a, ((0, 0), (0, Lsrc - Hp * Wp), (0, 0)))

    # Weights: (Cout, Cin, KH, KW) -> (KH*KW, Cin, Cout), one matrix per tap.
    w = w_mix.astype(jnp.bfloat16).transpose(2, 3, 1, 0).reshape(KH * KW, Cin, Cout)

    def kernel(a_ref, w_ref, o_ref):
        # a_ref: (1, Lsrc, Cin) bf16   padded flat activations for one batch n
        # w_ref: (KH*KW, Cin, Cout) bf16   resident across the grid
        # o_ref: (1, L, Cout) f32
        for j in range(KH * KW):                   # unrolled: static offsets
            kh, kw = divmod(j, KW)
            off = kh * Wp + kw
            contrib = jnp.dot(a_ref[0, off:off + L, :], w_ref[j],
                              preferred_element_type=jnp.float32)
            if j == 0:
                o_ref[0] = contrib                 # init (no extra zero pass)
            else:
                o_ref[0] += contrib                # accumulate in VMEM (f32)

    out = pl.pallas_call(
        kernel,
        out_shape=jax.ShapeDtypeStruct((N, L, Cout), jnp.float32),
        grid=(N,),
        in_specs=[
            pl.BlockSpec((1, Lsrc, Cin), lambda n: (n, 0, 0)),
            pl.BlockSpec((KH * KW, Cin, Cout), lambda n: (0, 0, 0)),  # resident
        ],
        out_specs=pl.BlockSpec((1, L, Cout), lambda n: (n, 0, 0)),
        compiler_params=pltpu.CompilerParams(
            dimension_semantics=("parallel",),
            vmem_limit_bytes=_vmem_limit_bytes(),
        ),
    )(a, w)

    # Drop the over-computed (row-straddling) columns; back to NCHW (tiny, fused).
    out = out.reshape(N, Hout, Wp, Cout)[:, :, :Wout, :]
    return out.transpose(0, 3, 1, 2)


# ------------------------------- public forward ------------------------------
@functools.partial(jax.jit, static_argnames=("bits", "padding"))
def quanoise_conv2d_pallas(x_nchw, weight, key, *, bits, padding=1):
    a_mix, w_mix = _quanoise_mix(x_nchw, weight, bits, key)
    return _conv2d_pallas(a_mix, w_mix, padding)


# ------------------------------ pure-JAX reference ---------------------------
@functools.partial(jax.jit, static_argnames=("bits", "padding"))
def quanoise_conv2d_ref(x_nchw, weight, key, *, bits, padding=1):
    a_mix, w_mix = _quanoise_mix(x_nchw, weight, bits, key)
    # Same bf16 operand rounding as the kernel so the comparison is tight.
    return lax.conv_general_dilated(
        a_mix.astype(jnp.bfloat16), w_mix.astype(jnp.bfloat16),
        window_strides=(1, 1),
        padding=[(padding, padding), (padding, padding)],
        dimension_numbers=("NCHW", "OIHW", "NCHW"),
        preferred_element_type=jnp.float32,
    )


# ----------------------------------- main ------------------------------------
if __name__ == "__main__":
    # module config: bits=[2, 4], Conv2d(in=4, out=8, kernel=3, padding=1)
    bits = (2, 4)
    N, CIN, H, W = 2, 4, 16, 16
    COUT, KH, KW = 8, 3, 3
    padding = 1

    key = jax.random.PRNGKey(0)
    k_w, k_x, k_noise = jax.random.split(key, 3)
    weight = jax.random.normal(k_w, (COUT, CIN, KH, KW), jnp.float32) * 0.1
    x = jax.random.normal(k_x, (N, CIN, H, W), jnp.float32)

    y = jax.block_until_ready(
        quanoise_conv2d_pallas(x, weight, k_noise, bits=bits, padding=padding))
    y_ref = jax.block_until_ready(
        quanoise_conv2d_ref(x, weight, k_noise, bits=bits, padding=padding))

    assert y.shape == (N, COUT, H, W), y.shape
    max_err = float(jnp.max(jnp.abs(y - y_ref)))
    assert jnp.allclose(y, y_ref, atol=2e-4, rtol=2e-4), max_err
    print("KERNEL_OK")
</pallas_src>

<mosaic_0001>
module attributes {stable_mosaic.version = 11 : i64} {
  func.func @kernel(%arg0: i32, %arg1: memref<1x328x4xbf16, #tpu.memory_space<vmem>>, %arg2: memref<9x4x8xbf16, #tpu.memory_space<vmem>>, %arg3: memref<1x288x8xf32, #tpu.memory_space<vmem>>) attributes {dimension_semantics = [#tpu.dimension_semantics<parallel>], iteration_bounds = array<i64: 2>, scalar_prefetch = 0 : i64, scratch_operands = 0 : i64, tpu.core_type = #tpu.core_type<tc>, window_params = [{transform_indices = @transform_0, window_bounds = array<i64: 1, 328, 4>}, {pipeline_mode = #tpu.pipeline_mode<synchronous>, transform_indices = @transform_1, window_bounds = array<i64: 9, 4, 8>}, {transform_indices = @transform_2, window_bounds = array<i64: 1, 288, 8>}]} {
    %c0 = arith.constant 0 : index
    %c0_0 = arith.constant 0 : index
    %c0_1 = arith.constant 0 : index
    %0 = vector.load %arg1[%c0, %c0_0, %c0_1] : memref<1x328x4xbf16, #tpu.memory_space<vmem>>, vector<1x288x4xbf16>
    %1 = vector.shape_cast %0 : vector<1x288x4xbf16> to vector<288x4xbf16>
    %c0_2 = arith.constant 0 : index
    %c0_3 = arith.constant 0 : index
    %c0_4 = arith.constant 0 : index
    %2 = vector.load %arg2[%c0_2, %c0_3, %c0_4] : memref<9x4x8xbf16, #tpu.memory_space<vmem>>, vector<1x4x8xbf16>
    %3 = vector.shape_cast %2 : vector<1x4x8xbf16> to vector<4x8xbf16>
    %cst = arith.constant dense<0.000000e+00> : vector<288x8xf32>
    %4 = tpu.matmul %1, %3, %cst {dimension_numbers = #tpu.dot_dimension_numbers<[1], [0], [0], [1], [0, 0, 1, 1], [], []>} : vector<288x4xbf16>, vector<4x8xbf16>, vector<288x8xf32> -> vector<288x8xf32>
    %c0_5 = arith.constant 0 : index
    %c0_6 = arith.constant 0 : index
    %c0_7 = arith.constant 0 : index
    %5 = vector.load %arg3[%c0_5, %c0_6, %c0_7] : memref<1x288x8xf32, #tpu.memory_space<vmem>>, vector<1x288x8xf32>
    %6 = vector.shape_cast %5 : vector<1x288x8xf32> to vector<288x8xf32>
    %7 = vector.shape_cast %4 : vector<288x8xf32> to vector<1x288x8xf32>
    tpu.vector_store %arg3[%c0_5, %c0_6, %c0_7], %7 {strides = array<i32>} : memref<1x288x8xf32, #tpu.memory_space<vmem>>, vector<1x288x8xf32>,
    %c0_8 = arith.constant 0 : index
    %c1 = arith.constant 1 : index
    %c0_9 = arith.constant 0 : index
    %8 = vector.load %arg1[%c0_8, %c1, %c0_9] : memref<1x328x4xbf16, #tpu.memory_space<vmem>>, vector<1x288x4xbf16>
    %9 = vector.shape_cast %8 : vector<1x288x4xbf16> to vector<288x4xbf16>
    %c1_10 = arith.constant 1 : index
    %c0_11 = arith.constant 0 : index
    %c0_12 = arith.constant 0 : index
    %10 = vector.load %arg2[%c1_10, %c0_11, %c0_12] : memref<9x4x8xbf16, #tpu.memory_space<vmem>>, vector<1x4x8xbf16>
    %11 = vector.shape_cast %10 : vector<1x4x8xbf16> to vector<4x8xbf16>
    %cst_13 = arith.constant dense<0.000000e+00> : vector<288x8xf32>
    %12 = tpu.matmul %9, %11, %cst_13 {dimension_numbers = #tpu.dot_dimension_numbers<[1], [0], [0], [1], [0, 0, 1, 1], [], []>} : vector<288x4xbf16>, vector<4x8xbf16>, vector<288x8xf32> -> vector<288x8xf32>
    %c0_14 = arith.constant 0 : index
    %c0_15 = arith.constant 0 : index
    %c0_16 = arith.constant 0 : index
    %13 = vector.load %arg3[%c0_14, %c0_15, %c0_16] : memref<1x288x8xf32, #tpu.memory_space<vmem>>, vector<1x288x8xf32>
    %14 = vector.shape_cast %13 : vector<1x288x8xf32> to vector<288x8xf32>
    %15 = arith.addf %14, %12 : vector<288x8xf32>
    %c0_17 = arith.constant 0 : index
    %c0_18 = arith.constant 0 : index
    %c0_19 = arith.constant 0 : index
    %16 = vector.load %arg3[%c0_17, %c0_18, %c0_19] : memref<1x288x8xf32, #tpu.memory_space<vmem>>, vector<1x288x8xf32>
    %17 = vector.shape_cast %16 : vector<1x288x8xf32> to vector<288x8xf32>
    %18 = vector.shape_cast %15 : vector<288x8xf32> to vector<1x288x8xf32>
    tpu.vector_store %arg3[%c0_17, %c0_18, %c0_19], %18 {strides = array<i32>} : memref<1x288x8xf32, #tpu.memory_space<vmem>>, vector<1x288x8xf32>,
    %c0_20 = arith.constant 0 : index
    %c2 = arith.constant 2 : index
    %c0_21 = arith.constant 0 : index
    %19 = vector.load %arg1[%c0_20, %c2, %c0_21] : memref<1x328x4xbf16, #tpu.memory_space<vmem>>, vector<1x288x4xbf16>
    %20 = vector.shape_cast %19 : vector<1x288x4xbf16> to vector<288x4xbf16>
    %c2_22 = arith.constant 2 : index
    %c0_23 = arith.constant 0 : index
    %c0_24 = arith.constant 0 : index
    %21 = vector.load %arg2[%c2_22, %c0_23, %c0_24] : memref<9x4x8xbf16, #tpu.memory_space<vmem>>, vector<1x4x8xbf16>
    %22 = vector.shape_cast %21 : vector<1x4x8xbf16> to vector<4x8xbf16>
    %cst_25 = arith.constant dense<0.000000e+00> : vector<288x8xf32>
    %23 = tpu.matmul %20, %22, %cst_25 {dimension_numbers = #tpu.dot_dimension_numbers<[1], [0], [0], [1], [0, 0, 1, 1], [], []>} : vector<288x4xbf16>, vector<4x8xbf16>, vector<288x8xf32> -> vector<288x8xf32>
    %c0_26 = arith.constant 0 : index
    %c0_27 = arith.constant 0 : index
    %c0_28 = arith.constant 0 : index
    %24 = vector.load %arg3[%c0_26, %c0_27, %c0_28] : memref<1x288x8xf32, #tpu.memory_space<vmem>>, vector<1x288x8xf32>
    %25 = vector.shape_cast %24 : vector<1x288x8xf32> to vector<288x8xf32>
    %26 = arith.addf %25, %23 : vector<288x8xf32>
    %c0_29 = arith.constant 0 : index
    %c0_30 = arith.constant 0 : index
    %c0_31 = arith.constant 0 : index
    %27 = vector.load %arg3[%c0_29, %c0_30, %c0_31] : memref<1x288x8xf32, #tpu.memory_space<vmem>>, vector<1x288x8xf32>
    %28 = vector.shape_cast %27 : vector<1x288x8xf32> to vector<288x8xf32>
    %29 = vector.shape_cast %26 : vector<288x8xf32> to vector<1x288x8xf32>
    tpu.vector_store %arg3[%c0_29, %c0_30, %c0_31], %29 {strides = array<i32>} : memref<1x288x8xf32, #tpu.memory_space<vmem>>, vector<1x288x8xf32>,
    %c0_32 = arith.constant 0 : index
    %c18 = arith.constant 18 : index
    %c0_33 = arith.constant 0 : index
    %30 = vector.load %arg1[%c0_32, %c18, %c0_33] : memref<1x328x4xbf16, #tpu.memory_space<vmem>>, vector<1x288x4xbf16>
    %31 = vector.shape_cast %30 : vector<1x288x4xbf16> to vector<288x4xbf16>
    %c3 = arith.constant 3 : index
    %c0_34 = arith.constant 0 : index
    %c0_35 = arith.constant 0 : index
    %32 = vector.load %arg2[%c3, %c0_34, %c0_35] : memref<9x4x8xbf16, #tpu.memory_space<vmem>>, vector<1x4x8xbf16>
    %33 = vector.shape_cast %32 : vector<1x4x8xbf16> to vector<4x8xbf16>
    %cst_36 = arith.constant dense<0.000000e+00> : vector<288x8xf32>
    %34 = tpu.matmul %31, %33, %cst_36 {dimension_numbers = #tpu.dot_dimension_numbers<[1], [0], [0], [1], [0, 0, 1, 1], [], []>} : vector<288x4xbf16>, vector<4x8xbf16>, vector<288x8xf32> -> vector<288x8xf32>
    %c0_37 = arith.constant 0 : index
    %c0_38 = arith.constant 0 : index
    %c0_39 = arith.constant 0 : index
    %35 = vector.load %arg3[%c0_37, %c0_38, %c0_39] : memref<1x288x8xf32, #tpu.memory_space<vmem>>, vector<1x288x8xf32>
    %36 = vector.shape_cast %35 : vector<1x288x8xf32> to vector<288x8xf32>
    %37 = arith.addf %36, %34 : vector<288x8xf32>
    %c0_40 = arith.constant 0 : index
    %c0_41 = arith.constant 0 : index
    %c0_42 = arith.constant 0 : index
    %38 = vector.load %arg3[%c0_40, %c0_41, %c0_42] : memref<1x288x8xf32, #tpu.memory_space<vmem>>, vector<1x288x8xf32>
    %39 = vector.shape_cast %38 : vector<1x288x8xf32> to vector<288x8xf32>
    %40 = vector.shape_cast %37 : vector<288x8xf32> to vector<1x288x8xf32>
    tpu.vector_store %arg3[%c0_40, %c0_41, %c0_42], %40 {strides = array<i32>} : memref<1x288x8xf32, #tpu.memory_space<vmem>>, vector<1x288x8xf32>,
    %c0_43 = arith.constant 0 : index
    %c19 = arith.constant 19 : index
    %c0_44 = arith.constant 0 : index
    %41 = vector.load %arg1[%c0_43, %c19, %c0_44] : memref<1x328x4xbf16, #tpu.memory_space<vmem>>, vector<1x288x4xbf16>
    %42 = vector.shape_cast %41 : vector<1x288x4xbf16> to vector<288x4xbf16>
    %c4 = arith.constant 4 : index
    %c0_45 = arith.constant 0 : index
    %c0_46 = arith.constant 0 : index
    %43 = vector.load %arg2[%c4, %c0_45, %c0_46] : memref<9x4x8xbf16, #tpu.memory_space<vmem>>, vector<1x4x8xbf16>
    %44 = vector.shape_cast %43 : vector<1x4x8xbf16> to vector<4x8xbf16>
    %cst_47 = arith.constant dense<0.000000e+00> : vector<288x8xf32>
    %45 = tpu.matmul %42, %44, %cst_47 {dimension_numbers = #tpu.dot_dimension_numbers<[1], [0], [0], [1], [0, 0, 1, 1], [], []>} : vector<288x4xbf16>, vector<4x8xbf16>, vector<288x8xf32> -> vector<288x8xf32>
    %c0_48 = arith.constant 0 : index
    %c0_49 = arith.constant 0 : index
    %c0_50 = arith.constant 0 : index
    %46 = vector.load %arg3[%c0_48, %c0_49, %c0_50] : memref<1x288x8xf32, #tpu.memory_space<vmem>>, vector<1x288x8xf32>
    %47 = vector.shape_cast %46 : vector<1x288x8xf32> to vector<288x8xf32>
    %48 = arith.addf %47, %45 : vector<288x8xf32>
    %c0_51 = arith.constant 0 : index
    %c0_52 = arith.constant 0 : index
    %c0_53 = arith.constant 0 : index
    %49 = vector.load %arg3[%c0_51, %c0_52, %c0_53] : memref<1x288x8xf32, #tpu.memory_space<vmem>>, vector<1x288x8xf32>
    %50 = vector.shape_cast %49 : vector<1x288x8xf32> to vector<288x8xf32>
    %51 = vector.shape_cast %48 : vector<288x8xf32> to vector<1x288x8xf32>
    tpu.vector_store %arg3[%c0_51, %c0_52, %c0_53], %51 {strides = array<i32>} : memref<1x288x8xf32, #tpu.memory_space<vmem>>, vector<1x288x8xf32>,
    %c0_54 = arith.constant 0 : index
    %c20 = arith.constant 20 : index
    %c0_55 = arith.constant 0 : index
    %52 = vector.load %arg1[%c0_54, %c20, %c0_55] : memref<1x328x4xbf16, #tpu.memory_space<vmem>>, vector<1x288x4xbf16>
    %53 = vector.shape_cast %52 : vector<1x288x4xbf16> to vector<288x4xbf16>
    %c5 = arith.constant 5 : index
    %c0_56 = arith.constant 0 : index
    %c0_57 = arith.constant 0 : index
    %54 = vector.load %arg2[%c5, %c0_56, %c0_57] : memref<9x4x8xbf16, #tpu.memory_space<vmem>>, vector<1x4x8xbf16>
    %55 = vector.shape_cast %54 : vector<1x4x8xbf16> to vector<4x8xbf16>
    %cst_58 = arith.constant dense<0.000000e+00> : vector<288x8xf32>
    %56 = tpu.matmul %53, %55, %cst_58 {dimension_numbers = #tpu.dot_dimension_numbers<[1], [0], [0], [1], [0, 0, 1, 1], [], []>} : vector<288x4xbf16>, vector<4x8xbf16>, vector<288x8xf32> -> vector<288x8xf32>
    %c0_59 = arith.constant 0 : index
    %c0_60 = arith.constant 0 : index
    %c0_61 = arith.constant 0 : index
    %57 = vector.load %arg3[%c0_59, %c0_60, %c0_61] : memref<1x288x8xf32, #tpu.memory_space<vmem>>, vector<1x288x8xf32>
    %58 = vector.shape_cast %57 : vector<1x288x8xf32> to vector<288x8xf32>
    %59 = arith.addf %58, %56 : vector<288x8xf32>
    %c0_62 = arith.constant 0 : index
    %c0_63 = arith.constant 0 : index
    %c0_64 = arith.constant 0 : index
    %60 = vector.load %arg3[%c0_62, %c0_63, %c0_64] : memref<1x288x8xf32, #tpu.memory_space<vmem>>, vector<1x288x8xf32>
    %61 = vector.shape_cast %60 : vector<1x288x8xf32> to vector<288x8xf32>
    %62 = vector.shape_cast %59 : vector<288x8xf32> to vector<1x288x8xf32>
    tpu.vector_store %arg3[%c0_62, %c0_63, %c0_64], %62 {strides = array<i32>} : memref<1x288x8xf32, #tpu.memory_space<vmem>>, vector<1x288x8xf32>,
    %c0_65 = arith.constant 0 : index
    %c36 = arith.constant 36 : index
    %c0_66 = arith.constant 0 : index
    %63 = vector.load %arg1[%c0_65, %c36, %c0_66] : memref<1x328x4xbf16, #tpu.memory_space<vmem>>, vector<1x288x4xbf16>
    %64 = vector.shape_cast %63 : vector<1x288x4xbf16> to vector<288x4xbf16>
    %c6 = arith.constant 6 : index
    %c0_67 = arith.constant 0 : index
    %c0_68 = arith.constant 0 : index
    %65 = vector.load %arg2[%c6, %c0_67, %c0_68] : memref<9x4x8xbf16, #tpu.memory_space<vmem>>, vector<1x4x8xbf16>
    %66 = vector.shape_cast %65 : vector<1x4x8xbf16> to vector<4x8xbf16>
    %cst_69 = arith.constant dense<0.000000e+00> : vector<288x8xf32>
    %67 = tpu.matmul %64, %66, %cst_69 {dimension_numbers = #tpu.dot_dimension_numbers<[1], [0], [0], [1], [0, 0, 1, 1], [], []>} : vector<288x4xbf16>, vector<4x8xbf16>, vector<288x8xf32> -> vector<288x8xf32>
    %c0_70 = arith.constant 0 : index
    %c0_71 = arith.constant 0 : index
    %c0_72 = arith.constant 0 : index
    %68 = vector.load %arg3[%c0_70, %c0_71, %c0_72] : memref<1x288x8xf32, #tpu.memory_space<vmem>>, vector<1x288x8xf32>
    %69 = vector.shape_cast %68 : vector<1x288x8xf32> to vector<288x8xf32>
    %70 = arith.addf %69, %67 : vector<288x8xf32>
    %c0_73 = arith.constant 0 : index
    %c0_74 = arith.constant 0 : index
    %c0_75 = arith.constant 0 : index
    %71 = vector.load %arg3[%c0_73, %c0_74, %c0_75] : memref<1x288x8xf32, #tpu.memory_space<vmem>>, vector<1x288x8xf32>
    %72 = vector.shape_cast %71 : vector<1x288x8xf32> to vector<288x8xf32>
    %73 = vector.shape_cast %70 : vector<288x8xf32> to vector<1x288x8xf32>
    tpu.vector_store %arg3[%c0_73, %c0_74, %c0_75], %73 {strides = array<i32>} : memref<1x288x8xf32, #tpu.memory_space<vmem>>, vector<1x288x8xf32>,
    %c0_76 = arith.constant 0 : index
    %c37 = arith.constant 37 : index
    %c0_77 = arith.constant 0 : index
    %74 = vector.load %arg1[%c0_76, %c37, %c0_77] : memref<1x328x4xbf16, #tpu.memory_space<vmem>>, vector<1x288x4xbf16>
    %75 = vector.shape_cast %74 : vector<1x288x4xbf16> to vector<288x4xbf16>
    %c7 = arith.constant 7 : index
    %c0_78 = arith.constant 0 : index
    %c0_79 = arith.constant 0 : index
    %76 = vector.load %arg2[%c7, %c0_78, %c0_79] : memref<9x4x8xbf16, #tpu.memory_space<vmem>>, vector<1x4x8xbf16>
    %77 = vector.shape_cast %76 : vector<1x4x8xbf16> to vector<4x8xbf16>
    %cst_80 = arith.constant dense<0.000000e+00> : vector<288x8xf32>
    %78 = tpu.matmul %75, %77, %cst_80 {dimension_numbers = #tpu.dot_dimension_numbers<[1], [0], [0], [1], [0, 0, 1, 1], [], []>} : vector<288x4xbf16>, vector<4x8xbf16>, vector<288x8xf32> -> vector<288x8xf32>
    %c0_81 = arith.constant 0 : index
    %c0_82 = arith.constant 0 : index
    %c0_83 = arith.constant 0 : index
    %79 = vector.load %arg3[%c0_81, %c0_82, %c0_83] : memref<1x288x8xf32, #tpu.memory_space<vmem>>, vector<1x288x8xf32>
    %80 = vector.shape_cast %79 : vector<1x288x8xf32> to vector<288x8xf32>
    %81 = arith.addf %80, %78 : vector<288x8xf32>
    %c0_84 = arith.constant 0 : index
    %c0_85 = arith.constant 0 : index
    %c0_86 = arith.constant 0 : index
    %82 = vector.load %arg3[%c0_84, %c0_85, %c0_86] : memref<1x288x8xf32, #tpu.memory_space<vmem>>, vector<1x288x8xf32>
    %83 = vector.shape_cast %82 : vector<1x288x8xf32> to vector<288x8xf32>
    %84 = vector.shape_cast %81 : vector<288x8xf32> to vector<1x288x8xf32>
    tpu.vector_store %arg3[%c0_84, %c0_85, %c0_86], %84 {strides = array<i32>} : memref<1x288x8xf32, #tpu.memory_space<vmem>>, vector<1x288x8xf32>,
    %c0_87 = arith.constant 0 : index
    %c38 = arith.constant 38 : index
    %c0_88 = arith.constant 0 : index
    %85 = vector.load %arg1[%c0_87, %c38, %c0_88] : memref<1x328x4xbf16, #tpu.memory_space<vmem>>, vector<1x288x4xbf16>
    %86 = vector.shape_cast %85 : vector<1x288x4xbf16> to vector<288x4xbf16>
    %c8 = arith.constant 8 : index
    %c0_89 = arith.constant 0 : index
    %c0_90 = arith.constant 0 : index
    %87 = vector.load %arg2[%c8, %c0_89, %c0_90] : memref<9x4x8xbf16, #tpu.memory_space<vmem>>, vector<1x4x8xbf16>
    %88 = vector.shape_cast %87 : vector<1x4x8xbf16> to vector<4x8xbf16>
    %cst_91 = arith.constant dense<0.000000e+00> : vector<288x8xf32>
    %89 = tpu.matmul %86, %88, %cst_91 {dimension_numbers = #tpu.dot_dimension_numbers<[1], [0], [0], [1], [0, 0, 1, 1], [], []>} : vector<288x4xbf16>, vector<4x8xbf16>, vector<288x8xf32> -> vector<288x8xf32>
    %c0_92 = arith.constant 0 : index
    %c0_93 = arith.constant 0 : index
    %c0_94 = arith.constant 0 : index
    %90 = vector.load %arg3[%c0_92, %c0_93, %c0_94] : memref<1x288x8xf32, #tpu.memory_space<vmem>>, vector<1x288x8xf32>
    %91 = vector.shape_cast %90 : vector<1x288x8xf32> to vector<288x8xf32>
    %92 = arith.addf %91, %89 : vector<288x8xf32>
    %c0_95 = arith.constant 0 : index
    %c0_96 = arith.constant 0 : index
    %c0_97 = arith.constant 0 : index
    %93 = vector.load %arg3[%c0_95, %c0_96, %c0_97] : memref<1x288x8xf32, #tpu.memory_space<vmem>>, vector<1x288x8xf32>
    %94 = vector.shape_cast %93 : vector<1x288x8xf32> to vector<288x8xf32>
    %95 = vector.shape_cast %92 : vector<288x8xf32> to vector<1x288x8xf32>
    tpu.vector_store %arg3[%c0_95, %c0_96, %c0_97], %95 {strides = array<i32>} : memref<1x288x8xf32, #tpu.memory_space<vmem>>, vector<1x288x8xf32>,
    return
  }
  func.func @transform_0(%arg0: i32) -> (i32, i32, i32) {
    %c0_i32 = arith.constant 0 : i32
    %c0_i32_0 = arith.constant 0 : i32
    %c0_i32_1 = arith.constant 0 : i32
    return %arg0, %c0_i32, %c0_i32_0 : i32, i32, i32
  }
  func.func @transform_1(%arg0: i32) -> (i32, i32, i32) {
    %c0_i32 = arith.constant 0 : i32
    %c0_i32_0 = arith.constant 0 : i32
    %c0_i32_1 = arith.constant 0 : i32
    %c0_i32_2 = arith.constant 0 : i32
    return %c0_i32, %c0_i32_0, %c0_i32_1 : i32, i32, i32
  }
  func.func @transform_2(%arg0: i32) -> (i32, i32, i32) {
    %c0_i32 = arith.constant 0 : i32
    %c0_i32_0 = arith.constant 0 : i32
    %c0_i32_1 = arith.constant 0 : i32
    return %arg0, %c0_i32, %c0_i32_0 : i32, i32, i32
  }
}

</mosaic_0001>

<llo_original>
// kernel: quanoise_conv2d_pallas.1
$region0: #{quanoise_conv2d_pallas.1}
  #allocation0 [shape = 'u32[]', space=smem, size = 0x4, offset = 0x4, fixed_abs, tag = 'smem constant byte address 0x4 - core index']
  #allocation1 [shape = 'u32[144,128]{1,0:T(1,128)}', space=vmem, size = 0x12000, scoped, tag = 'internal scratch']
  %s0 = inlined_call_operand.vmem [shape: bf16[2,328,4], index: 0, kind: input, shape index: {}]
  %s1 = inlined_call_operand.vmem [shape: bf16[9,4,8], index: 1, kind: input, shape index: {}]
  %s2 = inlined_call_operand.vmem [shape: f32[2,288,8], index: 2, kind: output, shape index: {}]
  %s3 = sld [smem:[#allocation0]]
  $region41: #{quanoise_conv2d_pallas.1} parent=0
    _
  %s5 = ssub.s32 1, %s3
  %s6 = scalar_select 0, %s5, %s3
  loop: start=0, step=1, limit=4
  $region2: #{quanoise_conv2d_pallas.1} parent=0 // loop_pre_header
    _
  $region3: #{quanoise_conv2d_pallas.1} parent=0 // loop_header
    %s8 = sphi 0, %s12
    %p9 = scmp.ge.s32.totalorder %s8, 4
    %s18 = sphi 0, %s20
    %s21 = sphi 0, %s18
    %s22 = sphi 0, %s21
    %s38 = sphi 0, %s22
    %s42 = sphi 0, %s42
    %s44 = sphi 0, %s42
    %s45 = sphi 0, %s44
    %s59 = sphi 0, %s45
    %s65 = sphi 0, %s67
    %s68 = sphi 0, %s65
    %s69 = sphi 0, %s68
    %s85 = sphi 0, %s69
  $region4: #{quanoise_conv2d_pallas.1} parent=0 // loop_header_branch
    %11 = sbr.rel (%p9) target = $region8
  $region5: #{quanoise_conv2d_pallas.1} parent=0 // loop_body
    %s13 = ssub.s32 %s8, 1
    %s14 = ssub.s32 %s8, 2
    %s15 = sadd.s32 %s8, 1
    %s16 = ssub.s32 %s8, %s15
    %p17 = scmp.eq.s32.totalorder %s16, 0
    %s19 = sadd.s32 %s18, 1
    %s20 = scalar_select %p17, %s18, %s19
    %p23 = pneg %p17
    %p24 = scmp.eq.s32.totalorder %s8, 1
    %p25 = por %p23, %p24
    %p26 = scmp.ne.s32.totalorder %s18, %s21
    %p27 = scmp.eq.s32.totalorder %s8, 0
    %p28 = por %p26, %p27
    %p29 = scmp.ne.s32.totalorder %s18, %s21
    %p30 = scmp.eq.s32.totalorder %s13, 1
    %p31 = por %p29, %p30
    %p32 = scmp.ne.s32.totalorder %s21, %s22
    %p33 = scmp.eq.s32.totalorder %s13, 0
    %p34 = por %p32, %p33
    %p35 = scmp.ne.s32.totalorder %s21, %s22
    %p36 = scmp.eq.s32.totalorder %s14, 1
    %p37 = por %p35, %p36
    %p39 = scmp.ne.s32.totalorder %s22, %s38
    %p40 = scmp.eq.s32.totalorder %s14, 0
    %p41 = por %p39, %p40
    %s43 = sadd.s32 %s42, 1
    %p46 = scmp.eq.s32.totalorder %s8, 1
    %p47 = scmp.ne.s32.totalorder %s42, %s44
    %p48 = scmp.eq.s32.totalorder %s8, 0
    %p49 = por %p47, %p48
    %p50 = scmp.ne.s32.totalorder %s42, %s44
    %p51 = scmp.eq.s32.totalorder %s13, 1
    %p52 = por %p50, %p51
    %p53 = scmp.ne.s32.totalorder %s44, %s45
    %p54 = scmp.eq.s32.totalorder %s13, 0
    %p55 = por %p53, %p54
    %p56 = scmp.ne.s32.totalorder %s44, %s45
    %p57 = scmp.eq.s32.totalorder %s14, 1
    %p58 = por %p56, %p57
    %p60 = scmp.ne.s32.totalorder %s45, %s59
    %p61 = scmp.eq.s32.totalorder %s14, 0
    %p62 = por %p60, %p61
    %s63 = ssub.s32 %s8, %s15
    %p64 = scmp.eq.s32.totalorder %s63, 0
    %s66 = sadd.s32 %s65, 1
    %s67 = scalar_select %p64, %s65, %s66
    %p70 = pneg %p64
    %p71 = scmp.eq.s32.totalorder %s8, 1
    %p72 = por %p70, %p71
    %p73 = scmp.ne.s32.totalorder %s65, %s68
    %p74 = scmp.eq.s32.totalorder %s8, 0
    %p75 = por %p73, %p74
    %p76 = scmp.ne.s32.totalorder %s65, %s68
    %p77 = scmp.eq.s32.totalorder %s13, 1
    %p78 = por %p76, %p77
    %p79 = scmp.ne.s32.totalorder %s68, %s69
    %p80 = scmp.eq.s32.totalorder %s13, 0
    %p81 = por %p79, %p80
    %p82 = scmp.ne.s32.totalorder %s68, %s69
    %p83 = scmp.eq.s32.totalorder %s14, 1
    %p84 = por %p82, %p83
    %p86 = scmp.ne.s32.totalorder %s69, %s85
    %p87 = scmp.eq.s32.totalorder %s14, 0
    %p88 = por %p86, %p87
    %p89 = scmp.le.s32.totalorder 1, %s8
    %p90 = scmp.lt.s32.totalorder %s8, 3
    %p91 = pnand %p89, %p90
    %p92 = pneg %p91
    // Predicated region
    $region9: #{quanoise_conv2d_pallas.1} parent=5 // pred_check
      _
    $region10: #{quanoise_conv2d_pallas.1} parent=5 // pred_check_branch
      %94 = sbr.rel (%p91) target = $region12
    $region11: #{quanoise_conv2d_pallas.1} parent=5 // pred_region
      %s95 = ssub.s32 %s8, 1
      // Predicated region
      $region13: #{quanoise_conv2d_pallas.1} parent=11 // pred_check
        %p96 = pneg %p55
      $region14: #{quanoise_conv2d_pallas.1} parent=11 // pred_check_branch
        %98 = sbr.rel (%p96) target = $region16
      $region15: #{quanoise_conv2d_pallas.1} parent=11 // pred_region
        _
      $region16: #{quanoise_conv2d_pallas.1} parent=11 // pred_fallthru
        _
    $region12: #{quanoise_conv2d_pallas.1} parent=5 // pred_fallthru
      _
    %p99 = scmp.lt.s32.totalorder %s8, 2
    // Predicated region
    $region17: #{quanoise_conv2d_pallas.1} parent=5 // pred_check
      %p100 = pneg %p99
    $region18: #{quanoise_conv2d_pallas.1} parent=5 // pred_check_branch
      %102 = sbr.rel (%p100) target = $region20
    $region19: #{quanoise_conv2d_pallas.1} parent=5 // pred_region
      // Predicated region
      $region21: #{quanoise_conv2d_pallas.1} parent=19 // pred_check
        %p103 = pneg %p28
      $region22: #{quanoise_conv2d_pallas.1} parent=19 // pred_check_branch
        %105 = sbr.rel (%p103) target = $region24
      $region23: #{quanoise_conv2d_pallas.1} parent=19 // pred_region
        %p106 = scmp.lt.s32.totalorder %s8, 1
        %s107 = scalar_select %p106, %s8, 1
        %s108 = smul.addr %s107, 41
        %s109 = smul.addr %s108, 4
        %s110 = scalar_lea.vmem %s0, %s109
      $region24: #{quanoise_conv2d_pallas.1} parent=19 // pred_fallthru
        _
    $region20: #{quanoise_conv2d_pallas.1} parent=5 // pred_fallthru
      _
    %p111 = scmp.le.s32.totalorder 1, %s8
    %p112 = scmp.lt.s32.totalorder %s8, 3
    %p113 = pnand %p111, %p112
    %p114 = pneg %p113
    // Predicated region
    $region25: #{quanoise_conv2d_pallas.1} parent=5 // pred_check
      _
    $region26: #{quanoise_conv2d_pallas.1} parent=5 // pred_check_branch
      %116 = sbr.rel (%p113) target = $region28
    $region27: #{quanoise_conv2d_pallas.1} parent=5 // pred_region
      %s117 = ssub.s32 %s8, 1
      %p118 = scmp.lt.s32.totalorder %s13, 1
      %s119 = scalar_select %p118, %s13, 1
      %s120 = smul.addr %s119, 41
      %s121 = smul.addr %s120, 4
      %s122 = scalar_lea.vmem %s0, %s121
      %p123 = pneg %p34
      %p124 = pneg %p31
      %p125 = pneg %p55
      %p126 = pneg %p52
      %p127 = pneg %p81
      %p128 = pneg %p78
      %p129 = scmp.lt.s32.totalorder %s13, 1
      %s130 = scalar_select %p129, %s13, 1
      %s131 = smul.addr %s130, 36
      %s132 = smul.addr %s131, 8
      %s133 = scalar_lea.vmem %s2, %s132
      %p134 = scmp.lt.s32.totalorder %s13, 1
      %s135 = scalar_select %p134, %s13, 1
      %s136 = smul.addr %s135, 41
      %s137 = smul.addr %s136, 4
      %s138 = scalar_lea.vmem %s0, %s137
      %p139 = scmp.lt.s32.totalorder %s13, 1
      %s140 = scalar_select %p139, %s13, 1
      %s141 = smul.addr %s140, 36
      %s142 = smul.addr %s141, 8
      %s143 = scalar_lea.vmem %s2, %s142
      %v145 = vld [vmem:[%s138] sm:$0xf]
      %v146 = vld [vmem:[%s138 + $0x4] sm:$0xf]
      %v147 = vld [vmem:[%s138 + $0x8] sm:$0xf]
      %v148 = vld [vmem:[%s138 + $0xc] sm:$0xf]
      %v149 = vld [vmem:[%s138 + $0x10] sm:$0xf]
      %v150 = vld [vmem:[%s138 + $0x14] sm:$0xf]
      %v151 = vld [vmem:[%s138 + $0x18] sm:$0xf]
      %v152 = vld [vmem:[%s138 + $0x1c] sm:$0xf]
      %v153 = vld [vmem:[%s138 + $0x20] sm:$0xf]
      %v154 = vld [vmem:[%s138 + $0x24] sm:$0xf]
      %v155 = vld [vmem:[%s138 + $0x28] sm:$0xf]
      %v156 = vld [vmem:[%s138 + $0x2c] sm:$0xf]
      %v157 = vld [vmem:[%s138 + $0x30] sm:$0xf]
      %v158 = vld [vmem:[%s138 + $0x34] sm:$0xf]
      %v159 = vld [vmem:[%s138 + $0x38] sm:$0xf]
      %v160 = vld [vmem:[%s138 + $0x3c] sm:$0xf]
      %v161 = vld [vmem:[%s138 + $0x40] sm:$0xf]
      %v162 = vld [vmem:[%s138 + $0x44] sm:$0xf]
      %v163 = vld [vmem:[%s138 + $0x48] sm:$0xf]
      %v164 = vld [vmem:[%s138 + $0x4c] sm:$0xf]
      %v165 = vld [vmem:[%s138 + $0x50] sm:$0xf]
      %v166 = vld [vmem:[%s138 + $0x54] sm:$0xf]
      %v167 = vld [vmem:[%s138 + $0x58] sm:$0xf]
      %v168 = vld [vmem:[%s138 + $0x5c] sm:$0xf]
      %v169 = vld [vmem:[%s138 + $0x60] sm:$0xf]
      %v170 = vld [vmem:[%s138 + $0x64] sm:$0xf]
      %v171 = vld [vmem:[%s138 + $0x68] sm:$0xf]
      %v172 = vld [vmem:[%s138 + $0x6c] sm:$0xf]
      %v173 = vld [vmem:[%s138 + $0x70] sm:$0xf]
      %v174 = vld [vmem:[%s138 + $0x74] sm:$0xf]
      %v175 = vld [vmem:[%s138 + $0x78] sm:$0xf]
      %v176 = vld [vmem:[%s138 + $0x7c] sm:$0xf]
      %v177 = vld [vmem:[%s138 + $0x80] sm:$0xf]
      %v178 = vld [vmem:[%s138 + $0x84] sm:$0xf]
      %v179 = vld [vmem:[%s138 + $0x88] sm:$0xf]
      %v180 = vld [vmem:[%s138 + $0x8c] sm:$0xf]
      %v181 = vld [vmem:[%s1] sm:$0x3]
      %v218 = vunpack.c.l.b16 %v145
      %v219 = vunpack.c.l.b16 %v146
      %v220 = vunpack.c.l.b16 %v147
      %v221 = vunpack.c.l.b16 %v148
      %v222 = vunpack.c.l.b16 %v149
      %v223 = vunpack.c.l.b16 %v150
      %v224 = vunpack.c.l.b16 %v151
      %v225 = vunpack.c.l.b16 %v152
      %v226 = vunpack.c.l.b16 %v153
      %v227 = vunpack.c.l.b16 %v154
      %v228 = vunpack.c.l.b16 %v155
      %v229 = vunpack.c.l.b16 %v156
      %v230 = vunpack.c.l.b16 %v157
      %v231 = vunpack.c.l.b16 %v158
      %v232 = vunpack.c.l.b16 %v159
      %v233 = vunpack.c.l.b16 %v160
      %v234 = vunpack.c.l.b16 %v161
      %v235 = vunpack.c.l.b16 %v162
      %v236 = vunpack.c.l.b16 %v163
      %v237 = vunpack.c.l.b16 %v164
      %v238 = vunpack.c.l.b16 %v165
      %v239 = vunpack.c.l.b16 %v166
      %v240 = vunpack.c.l.b16 %v167
      %v241 = vunpack.c.l.b16 %v168
      %v242 = vunpack.c.l.b16 %v169
      %v243 = vunpack.c.l.b16 %v170
      %v244 = vunpack.c.l.b16 %v171
      %v245 = vunpack.c.l.b16 %v172
      %v246 = vunpack.c.l.b16 %v173
      %v247 = vunpack.c.l.b16 %v174
      %v248 = vunpack.c.l.b16 %v175
      %v249 = vunpack.c.l.b16 %v176
      %v250 = vunpack.c.l.b16 %v177
      %v251 = vunpack.c.l.b16 %v178
      %v252 = vunpack.c.l.b16 %v179
      %v253 = vunpack.c.l.b16 %v180
      %v254 = vpack.c.b16 %v219, %v218
      %v255 = vpack.c.b16 %v221, %v220
      %v256 = vpack.c.b16 %v223, %v222
      %v257 = vpack.c.b16 %v225, %v224
      %v258 = vpack.c.b16 %v227, %v226
      %v259 = vpack.c.b16 %v229, %v228
      %v260 = vpack.c.b16 %v231, %v230
      %v261 = vpack.c.b16 %v233, %v232
      %v262 = vpack.c.b16 %v235, %v234
      %v263 = vpack.c.b16 %v237, %v236
      %v264 = vpack.c.b16 %v239, %v238
      %v265 = vpack.c.b16 %v241, %v240
      %v266 = vpack.c.b16 %v243, %v242
      %v267 = vpack.c.b16 %v245, %v244
      %v268 = vpack.c.b16 %v247, %v246
      %v269 = vpack.c.b16 %v249, %v248
      %v270 = vpack.c.b16 %v251, %v250
      %v271 = vpack.c.b16 %v253, %v252
      %vm272 = vcmask 31744
      %v274 = vsel %vm272, %v254, 0
      %v277 = vsel %vm272, %v255, 0
      %v280 = vsel %vm272, %v256, 0
      %v283 = vsel %vm272, %v257, 0
      %v286 = vsel %vm272, %v258, 0
      %v289 = vsel %vm272, %v259, 0
      %v292 = vsel %vm272, %v260, 0
      %v295 = vsel %vm272, %v261, 0
      %v298 = vsel %vm272, %v262, 0
      %v301 = vsel %vm272, %v263, 0
      %v304 = vsel %vm272, %v264, 0
      %v307 = vsel %vm272, %v265, 0
      %v310 = vsel %vm272, %v266, 0
      %v313 = vsel %vm272, %v267, 0
      %v316 = vsel %vm272, %v268, 0
      %v319 = vsel %vm272, %v269, 0
      %v322 = vsel %vm272, %v270, 0
      %v325 = vsel %vm272, %v271, 0
      %vm327 = vcmask 1041408
      %v329 = vsel %vm327, %v181, 0
      %331 = vmatprep.subr.bf16.mxu0 0
      %332 = vmatpush1.bf16.msra.mxu0 %v329
      %333 = vmatprep.subr.bf16.mxu0 0
      %334 = vmatpush1.bf16.msra.mxu0 0
      %335 = vmatprep.subr.bf16.mxu0 0
      %336 = vmatpush1.bf16.msra.mxu0 0
      %337 = vmatprep.subr.bf16.mxu0 0
      %338 = vmatpush1.bf16.msra.mxu0 0
      %339 = vmatprep.subr.bf16.mxu0 0
      %340 = vmatpush1.bf16.msra.mxu0 0
      %341 = vmatprep.subr.bf16.mxu0 0
      %342 = vmatpush1.bf16.msra.mxu0 0
      %343 = vmatprep.subr.bf16.mxu0 0
      %344 = vmatpush1.bf16.msra.mxu0 0
      %345 = vmatprep.subr.bf16.mxu0 0
      %346 = vmatpush1.bf16.msra.mxu0 0
      %347 = vmatprep.subr.bf16.mxu0 0
      %348 = vmatpush1.bf16.msra.mxu0 0
      %349 = vmatprep.subr.bf16.mxu0 0
      %350 = vmatpush1.bf16.msra.mxu0 0
      %351 = vmatprep.subr.bf16.mxu0 0
      %352 = vmatpush1.bf16.msra.mxu0 0
      %353 = vmatprep.subr.bf16.mxu0 0
      %354 = vmatpush1.bf16.msra.mxu0 0
      %355 = vmatprep.subr.bf16.mxu0 0
      %356 = vmatpush1.bf16.msra.mxu0 0
      %357 = vmatprep.subr.bf16.mxu0 0
      %358 = vmatpush1.bf16.msra.mxu0 0
      %359 = vmatprep.subr.bf16.mxu0 0
      %360 = vmatpush1.bf16.msra.mxu0 0
      %361 = vmatprep.subr.bf16.mxu0 0
      %362 = vmatpush1.bf16.msra.mxu0 0
      %363 = vmatprep.mubr.bf16.mxu0 0
      %364 = vmatmul.mubr.bf16.gmra.mrb[0].mxu0 %v274
      %v365 = vpop.f32.mrb[0].mxu0
      %v366 = vadd.f32 0.0, %v365
      %v367 = vpop.f32.mrb[0].mxu0
      %v368 = vpop.f32.mrb[0].mxu0
      %v369 = vadd.f32 0.0, %v368
      %v370 = vpop.f32.mrb[0].mxu0
      %371 = vmatprep.mubr.bf16.mxu0 0
      %372 = vmatmul.mubr.bf16.gmra.mrb[0].mxu0 %v277
      %v373 = vpop.f32.mrb[0].mxu0
      %v374 = vadd.f32 0.0, %v373
      %v375 = vpop.f32.mrb[0].mxu0
      %v376 = vpop.f32.mrb[0].mxu0
      %v377 = vadd.f32 0.0, %v376
      %v378 = vpop.f32.mrb[0].mxu0
      %379 = vmatprep.mubr.bf16.mxu0 0
      %380 = vmatmul.mubr.bf16.gmra.mrb[0].mxu0 %v280
      %v381 = vpop.f32.mrb[0].mxu0
      %v382 = vadd.f32 0.0, %v381
      %v383 = vpop.f32.mrb[0].mxu0
      %v384 = vpop.f32.mrb[0].mxu0
      %v385 = vadd.f32 0.0, %v384
      %v386 = vpop.f32.mrb[0].mxu0
      %387 = vmatprep.mubr.bf16.mxu0 0
      %388 = vmatmul.mubr.bf16.gmra.mrb[0].mxu0 %v283
      %v389 = vpop.f32.mrb[0].mxu0
      %v390 = vadd.f32 0.0, %v389
      %v391 = vpop.f32.mrb[0].mxu0
      %v392 = vpop.f32.mrb[0].mxu0
      %v393 = vadd.f32 0.0, %v392
      %v394 = vpop.f32.mrb[0].mxu0
      %395 = vmatprep.mubr.bf16.mxu0 0
      %396 = vmatmul.mubr.bf16.gmra.mrb[0].mxu0 %v286
      %v397 = vpop.f32.mrb[0].mxu0
      %v398 = vadd.f32 0.0, %v397
      %v399 = vpop.f32.mrb[0].mxu0
      %v400 = vpop.f32.mrb[0].mxu0
      %v401 = vadd.f32 0.0, %v400
      %v402 = vpop.f32.mrb[0].mxu0
      %403 = vmatprep.mubr.bf16.mxu0 0
      %404 = vmatmul.mubr.bf16.gmra.mrb[0].mxu0 %v289
      %v405 = vpop.f32.mrb[0].mxu0
      %v406 = vadd.f32 0.0, %v405
      %v407 = vpop.f32.mrb[0].mxu0
      %v408 = vpop.f32.mrb[0].mxu0
      %v409 = vadd.f32 0.0, %v408
      %v410 = vpop.f32.mrb[0].mxu0
      %411 = vmatprep.mubr.bf16.mxu0 0
      %412 = vmatmul.mubr.bf16.gmra.mrb[0].mxu0 %v292
      %v413 = vpop.f32.mrb[0].mxu0
      %v414 = vadd.f32 0.0, %v413
      %v415 = vpop.f32.mrb[0].mxu0
      %v416 = vpop.f32.mrb[0].mxu0
      %v417 = vadd.f32 0.0, %v416
      %v418 = vpop.f32.mrb[0].mxu0
      %419 = vmatprep.mubr.bf16.mxu0 0
      %420 = vmatmul.mubr.bf16.gmra.mrb[0].mxu0 %v295
      %v421 = vpop.f32.mrb[0].mxu0
      %v422 = vadd.f32 0.0, %v421
      %v423 = vpop.f32.mrb[0].mxu0
      %v424 = vpop.f32.mrb[0].mxu0
      %v425 = vadd.f32 0.0, %v424
      %v426 = vpop.f32.mrb[0].mxu0
      %427 = vmatprep.mubr.bf16.mxu0 0
      %428 = vmatmul.mubr.bf16.gmra.mrb[0].mxu0 %v298
      %v429 = vpop.f32.mrb[0].mxu0
      %v430 = vadd.f32 0.0, %v429
      %v431 = vpop.f32.mrb[0].mxu0
      %v432 = vpop.f32.mrb[0].mxu0
      %v433 = vadd.f32 0.0, %v432
      %v434 = vpop.f32.mrb[0].mxu0
      %435 = vmatprep.mubr.bf16.mxu0 0
      %436 = vmatmul.mubr.bf16.gmra.mrb[0].mxu0 %v301
      %v437 = vpop.f32.mrb[0].mxu0
      %v438 = vadd.f32 0.0, %v437
      %v439 = vpop.f32.mrb[0].mxu0
      %v440 = vpop.f32.mrb[0].mxu0
      %v441 = vadd.f32 0.0, %v440
      %v442 = vpop.f32.mrb[0].mxu0
      %443 = vmatprep.mubr.bf16.mxu0 0
      %444 = vmatmul.mubr.bf16.gmra.mrb[0].mxu0 %v304
      %v445 = vpop.f32.mrb[0].mxu0
      %v446 = vadd.f32 0.0, %v445
      %v447 = vpop.f32.mrb[0].mxu0
      %v448 = vpop.f32.mrb[0].mxu0
      %v449 = vadd.f32 0.0, %v448
      %v450 = vpop.f32.mrb[0].mxu0
      %451 = vmatprep.mubr.bf16.mxu0 0
      %452 = vmatmul.mubr.bf16.gmra.mrb[0].mxu0 %v307
      %v453 = vpop.f32.mrb[0].mxu0
      %v454 = vadd.f32 0.0, %v453
      %v455 = vpop.f32.mrb[0].mxu0
      %v456 = vpop.f32.mrb[0].mxu0
      %v457 = vadd.f32 0.0, %v456
      %v458 = vpop.f32.mrb[0].mxu0
      %459 = vmatprep.mubr.bf16.mxu0 0
      %460 = vmatmul.mubr.bf16.gmra.mrb[0].mxu0 %v310
      %v461 = vpop.f32.mrb[0].mxu0
      %v462 = vadd.f32 0.0, %v461
      %v463 = vpop.f32.mrb[0].mxu0
      %v464 = vpop.f32.mrb[0].mxu0
      %v465 = vadd.f32 0.0, %v464
      %v466 = vpop.f32.mrb[0].mxu0
      %467 = vmatprep.mubr.bf16.mxu0 0
      %468 = vmatmul.mubr.bf16.gmra.mrb[0].mxu0 %v313
      %v469 = vpop.f32.mrb[0].mxu0
      %v470 = vadd.f32 0.0, %v469
      %v471 = vpop.f32.mrb[0].mxu0
      %v472 = vpop.f32.mrb[0].mxu0
      %v473 = vadd.f32 0.0, %v472
      %v474 = vpop.f32.mrb[0].mxu0
      %475 = vmatprep.mubr.bf16.mxu0 0
      %476 = vmatmul.mubr.bf16.gmra.mrb[0].mxu0 %v316
      %v477 = vpop.f32.mrb[0].mxu0
      %v478 = vadd.f32 0.0, %v477
      %v479 = vpop.f32.mrb[0].mxu0
      %v480 = vpop.f32.mrb[0].mxu0
      %v481 = vadd.f32 0.0, %v480
      %v482 = vpop.f32.mrb[0].mxu0
      %483 = vmatprep.mubr.bf16.mxu0 0
      %484 = vmatmul.mubr.bf16.gmra.mrb[0].mxu0 %v319
      %v485 = vpop.f32.mrb[0].mxu0
      %v486 = vadd.f32 0.0, %v485
      %v487 = vpop.f32.mrb[0].mxu0
      %v488 = vpop.f32.mrb[0].mxu0
      %v489 = vadd.f32 0.0, %v488
      %v490 = vpop.f32.mrb[0].mxu0
      %491 = vmatprep.mubr.bf16.mxu0 0
      %492 = vmatmul.mubr.bf16.gmra.mrb[0].mxu0 %v322
      %v493 = vpop.f32.mrb[0].mxu0
      %v494 = vadd.f32 0.0, %v493
      %v495 = vpop.f32.mrb[0].mxu0
      %v496 = vpop.f32.mrb[0].mxu0
      %v497 = vadd.f32 0.0, %v496
      %v498 = vpop.f32.mrb[0].mxu0
      %499 = vmatprep.mubr.bf16.mxu0 0
      %500 = vmatmul.mubr.bf16.gmra.mrb[0].mxu0 %v325
      %v501 = vpop.f32.mrb[0].mxu0
      %v502 = vadd.f32 0.0, %v501
      %v503 = vpop.f32.mrb[0].mxu0
      %v504 = vpop.f32.mrb[0].mxu0
      %v505 = vadd.f32 0.0, %v504
      %v506 = vpop.f32.mrb[0].mxu0
      %507 = vdwg.mxu0
      %vm508 = vcmask 64512
      %509 = vst.msk [vmem:[%s143] sm:$0xff] %vm508, %v366
      %510 = vst.msk [vmem:[%s143 + $0x8] sm:$0xff] %vm508, %v369
      %511 = vst.msk [vmem:[%s143 + $0x10] sm:$0xff] %vm508, %v374
      %512 = vst.msk [vmem:[%s143 + $0x18] sm:$0xff] %vm508, %v377
      %513 = vst.msk [vmem:[%s143 + $0x20] sm:$0xff] %vm508, %v382
      %514 = vst.msk [vmem:[%s143 + $0x28] sm:$0xff] %vm508, %v385
      %515 = vst.msk [vmem:[%s143 + $0x30] sm:$0xff] %vm508, %v390
      %516 = vst.msk [vmem:[%s143 + $0x38] sm:$0xff] %vm508, %v393
      %517 = vst.msk [vmem:[%s143 + $0x40] sm:$0xff] %vm508, %v398
      %518 = vst.msk [vmem:[%s143 + $0x48] sm:$0xff] %vm508, %v401
      %519 = vst.msk [vmem:[%s143 + $0x50] sm:$0xff] %vm508, %v406
      %520 = vst.msk [vmem:[%s143 + $0x58] sm:$0xff] %vm508, %v409
      %521 = vst.msk [vmem:[%s143 + $0x60] sm:$0xff] %vm508, %v414
      %522 = vst.msk [vmem:[%s143 + $0x68] sm:$0xff] %vm508, %v417
      %523 = vst.msk [vmem:[%s143 + $0x70] sm:$0xff] %vm508, %v422
      %524 = vst.msk [vmem:[%s143 + $0x78] sm:$0xff] %vm508, %v425
      %525 = vst.msk [vmem:[%s143 + $0x80] sm:$0xff] %vm508, %v430
      %526 = vst.msk [vmem:[%s143 + $0x88] sm:$0xff] %vm508, %v433
      %527 = vst.msk [vmem:[%s143 + $0x90] sm:$0xff] %vm508, %v438
      %528 = vst.msk [vmem:[%s143 + $0x98] sm:$0xff] %vm508, %v441
      %529 = vst.msk [vmem:[%s143 + $0xa0] sm:$0xff] %vm508, %v446
      %530 = vst.msk [vmem:[%s143 + $0xa8] sm:$0xff] %vm508, %v449
      %531 = vst.msk [vmem:[%s143 + $0xb0] sm:$0xff] %vm508, %v454
      %532 = vst.msk [vmem:[%s143 + $0xb8] sm:$0xff] %vm508, %v457
      %533 = vst.msk [vmem:[%s143 + $0xc0] sm:$0xff] %vm508, %v462
      %534 = vst.msk [vmem:[%s143 + $0xc8] sm:$0xff] %vm508, %v465
      %535 = vst.msk [vmem:[%s143 + $0xd0] sm:$0xff] %vm508, %v470
      %536 = vst.msk [vmem:[%s143 + $0xd8] sm:$0xff] %vm508, %v473
      %537 = vst.msk [vmem:[%s143 + $0xe0] sm:$0xff] %vm508, %v478
      %538 = vst.msk [vmem:[%s143 + $0xe8] sm:$0xff] %vm508, %v481
      %539 = vst.msk [vmem:[%s143 + $0xf0] sm:$0xff] %vm508, %v486
      %540 = vst.msk [vmem:[%s143 + $0xf8] sm:$0xff] %vm508, %v489
      %541 = vst.msk [vmem:[%s143 + $0x100] sm:$0xff] %vm508, %v494
      %542 = vst.msk [vmem:[%s143 + $0x108] sm:$0xff] %vm508, %v497
      %543 = vst.msk [vmem:[%s143 + $0x110] sm:$0xff] %vm508, %v502
      %544 = vst.msk [vmem:[%s143 + $0x118] sm:$0xff] %vm508, %v505
      %v545 = vld [vmem:[%s138] sm:$0xf]
      %v546 = vld [vmem:[%s138 + $0x4] sm:$0xf]
      %v547 = vld [vmem:[%s138 + $0x8] sm:$0xf]
      %v548 = vld [vmem:[%s138 + $0xc] sm:$0xf]
      %v549 = vld [vmem:[%s138 + $0x10] sm:$0xf]
      %v550 = vld [vmem:[%s138 + $0x14] sm:$0xf]
      %v551 = vld [vmem:[%s138 + $0x18] sm:$0xf]
      %v552 = vld [vmem:[%s138 + $0x1c] sm:$0xf]
      %v553 = vld [vmem:[%s138 + $0x20] sm:$0xf]
      %v554 = vld [vmem:[%s138 + $0x24] sm:$0xf]
      %v555 = vld [vmem:[%s138 + $0x28] sm:$0xf]
      %v556 = vld [vmem:[%s138 + $0x2c] sm:$0xf]
      %v557 = vld [vmem:[%s138 + $0x30] sm:$0xf]
      %v558 = vld [vmem:[%s138 + $0x34] sm:$0xf]
      %v559 = vld [vmem:[%s138 + $0x38] sm:$0xf]
      %v560 = vld [vmem:[%s138 + $0x3c] sm:$0xf]
      %v561 = vld [vmem:[%s138 + $0x40] sm:$0xf]
      %v562 = vld [vmem:[%s138 + $0x44] sm:$0xf]
      %v563 = vld [vmem:[%s138 + $0x48] sm:$0xf]
      %v564 = vld [vmem:[%s138 + $0x4c] sm:$0xf]
      %v565 = vld [vmem:[%s138 + $0x50] sm:$0xf]
      %v566 = vld [vmem:[%s138 + $0x54] sm:$0xf]
      %v567 = vld [vmem:[%s138 + $0x58] sm:$0xf]
      %v568 = vld [vmem:[%s138 + $0x5c] sm:$0xf]
      %v569 = vld [vmem:[%s138 + $0x60] sm:$0xf]
      %v570 = vld [vmem:[%s138 + $0x64] sm:$0xf]
      %v571 = vld [vmem:[%s138 + $0x68] sm:$0xf]
      %v572 = vld [vmem:[%s138 + $0x6c] sm:$0xf]
      %v573 = vld [vmem:[%s138 + $0x70] sm:$0xf]
      %v574 = vld [vmem:[%s138 + $0x74] sm:$0xf]
      %v575 = vld [vmem:[%s138 + $0x78] sm:$0xf]
      %v576 = vld [vmem:[%s138 + $0x7c] sm:$0xf]
      %v577 = vld [vmem:[%s138 + $0x80] sm:$0xf]
      %v578 = vld [vmem:[%s138 + $0x84] sm:$0xf]
      %v579 = vld [vmem:[%s138 + $0x88] sm:$0xf]
      %v580 = vld [vmem:[%s138 + $0x8c] sm:$0xf]
      %v581 = vld [vmem:[%s138 + $0x90] sm:$0x1]
      %s582 = scalar_lea.vmem %s1, 2
      %v583 = vld [vmem:[%s582] sm:$0x3]
      %v621 = vunpack.c.l.b16 %v545
      %v622 = vunpack.c.l.b16 %v546
      %v623 = vunpack.c.l.b16 %v547
      %v624 = vunpack.c.l.b16 %v548
      %v625 = vunpack.c.l.b16 %v549
      %v626 = vunpack.c.l.b16 %v550
      %v627 = vunpack.c.l.b16 %v551
      %v628 = vunpack.c.l.b16 %v552
      %v629 = vunpack.c.l.b16 %v553
      %v630 = vunpack.c.l.b16 %v554
      %v631 = vunpack.c.l.b16 %v555
      %v632 = vunpack.c.l.b16 %v556
      %v633 = vunpack.c.l.b16 %v557
      %v634 = vunpack.c.l.b16 %v558
      %v635 = vunpack.c.l.b16 %v559
      %v636 = vunpack.c.l.b16 %v560
      %v637 = vunpack.c.l.b16 %v561
      %v638 = vunpack.c.l.b16 %v562
      %v639 = vunpack.c.l.b16 %v563
      %v640 = vunpack.c.l.b16 %v564
      %v641 = vunpack.c.l.b16 %v565
      %v642 = vunpack.c.l.b16 %v566
      %v643 = vunpack.c.l.b16 %v567
      %v644 = vunpack.c.l.b16 %v568
      %v645 = vunpack.c.l.b16 %v569
      %v646 = vunpack.c.l.b16 %v570
      %v647 = vunpack.c.l.b16 %v571
      %v648 = vunpack.c.l.b16 %v572
      %v649 = vunpack.c.l.b16 %v573
      %v650 = vunpack.c.l.b16 %v574
      %v651 = vunpack.c.l.b16 %v575
      %v652 = vunpack.c.l.b16 %v576
      %v653 = vunpack.c.l.b16 %v577
      %v654 = vunpack.c.l.b16 %v578
      %v655 = vunpack.c.l.b16 %v579
      %v656 = vunpack.c.l.b16 %v580
      %v657 = vunpack.c.l.b16 %v581
      %v658 = vpack.c.b16 %v622, %v621
      %v659 = vpack.c.b16 %v624, %v623
      %v660 = vpack.c.b16 %v626, %v625
      %v661 = vpack.c.b16 %v628, %v627
      %v662 = vpack.c.b16 %v630, %v629
      %v663 = vpack.c.b16 %v632, %v631
      %v664 = vpack.c.b16 %v634, %v633
      %v665 = vpack.c.b16 %v636, %v635
      %v666 = vpack.c.b16 %v638, %v637
      %v667 = vpack.c.b16 %v640, %v639
      %v668 = vpack.c.b16 %v642, %v641
      %v669 = vpack.c.b16 %v644, %v643
      %v670 = vpack.c.b16 %v646, %v645
      %v671 = vpack.c.b16 %v648, %v647
      %v672 = vpack.c.b16 %v650, %v649
      %v673 = vpack.c.b16 %v652, %v651
      %v674 = vpack.c.b16 %v654, %v653
      %v675 = vpack.c.b16 %v656, %v655
      %v676 = vpack.c.b16 %v657, %v657
      %vm677 = vsmask.f32 7424
      %v679 = vshrl.u32 %v658, 16
      %v681 = vshll.u32 %v658, 16
      %v683 = vrot.slane %v681, 1
      %v684 = vor.u32 %v679, %v683
      %v686 = vshll.u32 %v659, 16
      %v688 = vrot.slane %v686, 1
      %v689 = vsel %vm677, %v684, %v688
      %v690 = vshrl.u32 %v659, 16
      %v692 = vor.u32 %v690, %v688
      %v694 = vshll.u32 %v660, 16
      %v696 = vrot.slane %v694, 1
      %v697 = vsel %vm677, %v692, %v696
      %v698 = vshrl.u32 %v660, 16
      %v700 = vor.u32 %v698, %v696
      %v702 = vshll.u32 %v661, 16
      %v704 = vrot.slane %v702, 1
      %v705 = vsel %vm677, %v700, %v704
      %v706 = vshrl.u32 %v661, 16
      %v708 = vor.u32 %v706, %v704
      %v710 = vshll.u32 %v662, 16
      %v712 = vrot.slane %v710, 1
      %v713 = vsel %vm677, %v708, %v712
      %v714 = vshrl.u32 %v662, 16
      %v716 = vor.u32 %v714, %v712
      %v718 = vshll.u32 %v663, 16
      %v720 = vrot.slane %v718, 1
      %v721 = vsel %vm677, %v716, %v720
      %v722 = vshrl.u32 %v663, 16
      %v724 = vor.u32 %v722, %v720
      %v726 = vshll.u32 %v664, 16
      %v728 = vrot.slane %v726, 1
      %v729 = vsel %vm677, %v724, %v728
      %v730 = vshrl.u32 %v664, 16
      %v732 = vor.u32 %v730, %v728
      %v734 = vshll.u32 %v665, 16
      %v736 = vrot.slane %v734, 1
      %v737 = vsel %vm677, %v732, %v736
      %v738 = vshrl.u32 %v665, 16
      %v740 = vor.u32 %v738, %v736
      %v742 = vshll.u32 %v666, 16
      %v744 = vrot.slane %v742, 1
      %v745 = vsel %vm677, %v740, %v744
      %v746 = vshrl.u32 %v666, 16
      %v748 = vor.u32 %v746, %v744
      %v750 = vshll.u32 %v667, 16
      %v752 = vrot.slane %v750, 1
      %v753 = vsel %vm677, %v748, %v752
      %v754 = vshrl.u32 %v667, 16
      %v756 = vor.u32 %v754, %v752
      %v758 = vshll.u32 %v668, 16
      %v760 = vrot.slane %v758, 1
      %v761 = vsel %vm677, %v756, %v760
      %v762 = vshrl.u32 %v668, 16
      %v764 = vor.u32 %v762, %v760
      %v766 = vshll.u32 %v669, 16
      %v768 = vrot.slane %v766, 1
      %v769 = vsel %vm677, %v764, %v768
      %v770 = vshrl.u32 %v669, 16
      %v772 = vor.u32 %v770, %v768
      %v774 = vshll.u32 %v670, 16
      %v776 = vrot.slane %v774, 1
      %v777 = vsel %vm677, %v772, %v776
      %v778 = vshrl.u32 %v670, 16
      %v780 = vor.u32 %v778, %v776
      %v782 = vshll.u32 %v671, 16
      %v784 = vrot.slane %v782, 1
      %v785 = vsel %vm677, %v780, %v784
      %v786 = vshrl.u32 %v671, 16
      %v788 = vor.u32 %v786, %v784
      %v790 = vshll.u32 %v672, 16
      %v792 = vrot.slane %v790, 1
      %v793 = vsel %vm677, %v788, %v792
      %v794 = vshrl.u32 %v672, 16
      %v796 = vor.u32 %v794, %v792
      %v798 = vshll.u32 %v673, 16
      %v800 = vrot.slane %v798, 1
      %v801 = vsel %vm677, %v796, %v800
      %v802 = vshrl.u32 %v673, 16
      %v804 = vor.u32 %v802, %v800
      %v806 = vshll.u32 %v674, 16
      %v808 = vrot.slane %v806, 1
      %v809 = vsel %vm677, %v804, %v808
      %v810 = vshrl.u32 %v674, 16
      %v812 = vor.u32 %v810, %v808
      %v814 = vshll.u32 %v675, 16
      %v816 = vrot.slane %v814, 1
      %v817 = vsel %vm677, %v812, %v816
      %v818 = vshrl.u32 %v675, 16
      %v820 = vor.u32 %v818, %v816
      %v822 = vshll.u32 %v676, 16
      %v824 = vrot.slane %v822, 1
      %v825 = vsel %vm677, %v820, %v824
      %v827 = vsel %vm272, %v689, 0
      %v830 = vsel %vm272, %v697, 0
      %v833 = vsel %vm272, %v705, 0
      %v836 = vsel %vm272, %v713, 0
      %v839 = vsel %vm272, %v721, 0
      %v842 = vsel %vm272, %v729, 0
      %v845 = vsel %vm272, %v737, 0
      %v848 = vsel %vm272, %v745, 0
      %v851 = vsel %vm272, %v753, 0
      %v854 = vsel %vm272, %v761, 0
      %v857 = vsel %vm272, %v769, 0
      %v860 = vsel %vm272, %v777, 0
      %v863 = vsel %vm272, %v785, 0
      %v866 = vsel %vm272, %v793, 0
      %v869 = vsel %vm272, %v801, 0
      %v872 = vsel %vm272, %v809, 0
      %v875 = vsel %vm272, %v817, 0
      %v878 = vsel %vm272, %v825, 0
      %v881 = vsel %vm327, %v583, 0
      %883 = vmatprep.subr.bf16.mxu0 0
      %884 = vmatpush1.bf16.msra.mxu0 %v881
      %885 = vmatprep.subr.bf16.mxu0 0
      %886 = vmatpush1.bf16.msra.mxu0 0
      %887 = vmatprep.subr.bf16.mxu0 0
      %888 = vmatpush1.bf16.msra.mxu0 0
      %889 = vmatprep.subr.bf16.mxu0 0
      %890 = vmatpush1.bf16.msra.mxu0 0
      %891 = vmatprep.subr.bf16.mxu0 0
      %892 = vmatpush1.bf16.msra.mxu0 0
      %893 = vmatprep.subr.bf16.mxu0 0
      %894 = vmatpush1.bf16.msra.mxu0 0
      %895 = vmatprep.subr.bf16.mxu0 0
      %896 = vmatpush1.bf16.msra.mxu0 0
      %897 = vmatprep.subr.bf16.mxu0 0
      %898 = vmatpush1.bf16.msra.mxu0 0
      %899 = vmatprep.subr.bf16.mxu0 0
      %900 = vmatpush1.bf16.msra.mxu0 0
      %901 = vmatprep.subr.bf16.mxu0 0
      %902 = vmatpush1.bf16.msra.mxu0 0
      %903 = vmatprep.subr.bf16.mxu0 0
      %904 = vmatpush1.bf16.msra.mxu0 0
      %905 = vmatprep.subr.bf16.mxu0 0
      %906 = vmatpush1.bf16.msra.mxu0 0
      %907 = vmatprep.subr.bf16.mxu0 0
      %908 = vmatpush1.bf16.msra.mxu0 0
      %909 = vmatprep.subr.bf16.mxu0 0
      %910 = vmatpush1.bf16.msra.mxu0 0
      %911 = vmatprep.subr.bf16.mxu0 0
      %912 = vmatpush1.bf16.msra.mxu0 0
      %913 = vmatprep.subr.bf16.mxu0 0
      %914 = vmatpush1.bf16.msra.mxu0 0
      %915 = vmatprep.mubr.bf16.mxu0 0
      %916 = vmatmul.mubr.bf16.gmra.mrb[0].mxu0 %v827
      %v917 = vpop.f32.mrb[0].mxu0
      %v918 = vadd.f32 0.0, %v917
      %v919 = vpop.f32.mrb[0].mxu0
      %v920 = vpop.f32.mrb[0].mxu0
      %v921 = vadd.f32 0.0, %v920
      %v922 = vpop.f32.mrb[0].mxu0
      %923 = vmatprep.mubr.bf16.mxu0 0
      %924 = vmatmul.mubr.bf16.gmra.mrb[0].mxu0 %v830
      %v925 = vpop.f32.mrb[0].mxu0
      %v926 = vadd.f32 0.0, %v925
      %v927 = vpop.f32.mrb[0].mxu0
      %v928 = vpop.f32.mrb[0].mxu0
      %v929 = vadd.f32 0.0, %v928
      %v930 = vpop.f32.mrb[0].mxu0
      %931 = vmatprep.mubr.bf16.mxu0 0
      %932 = vmatmul.mubr.bf16.gmra.mrb[0].mxu0 %v833
      %v933 = vpop.f32.mrb[0].mxu0
      %v934 = vadd.f32 0.0, %v933
      %v935 = vpop.f32.mrb[0].mxu0
      %v936 = vpop.f32.mrb[0].mxu0
      %v937 = vadd.f32 0.0, %v936
      %v938 = vpop.f32.mrb[0].mxu0
      %939 = vmatprep.mubr.bf16.mxu0 0
      %940 = vmatmul.mubr.bf16.gmra.mrb[0].mxu0 %v836
      %v941 = vpop.f32.mrb[0].mxu0
      %v942 = vadd.f32 0.0, %v941
      %v943 = vpop.f32.mrb[0].mxu0
      %v944 = vpop.f32.mrb[0].mxu0
      %v945 = vadd.f32 0.0, %v944
      %v946 = vpop.f32.mrb[0].mxu0
      %947 = vmatprep.mubr.bf16.mxu0 0
      %948 = vmatmul.mubr.bf16.gmra.mrb[0].mxu0 %v839
      %v949 = vpop.f32.mrb[0].mxu0
      %v950 = vadd.f32 0.0, %v949
      %v951 = vpop.f32.mrb[0].mxu0
      %v952 = vpop.f32.mrb[0].mxu0
      %v953 = vadd.f32 0.0, %v952
      %v954 = vpop.f32.mrb[0].mxu0
      %955 = vmatprep.mubr.bf16.mxu0 0
      %956 = vmatmul.mubr.bf16.gmra.mrb[0].mxu0 %v842
      %v957 = vpop.f32.mrb[0].mxu0
      %v958 = vadd.f32 0.0, %v957
      %v959 = vpop.f32.mrb[0].mxu0
      %v960 = vpop.f32.mrb[0].mxu0
      %v961 = vadd.f32 0.0, %v960
      %v962 = vpop.f32.mrb[0].mxu0
      %963 = vmatprep.mubr.bf16.mxu0 0
      %964 = vmatmul.mubr.bf16.gmra.mrb[0].mxu0 %v845
      %v965 = vpop.f32.mrb[0].mxu0
      %v966 = vadd.f32 0.0, %v965
      %v967 = vpop.f32.mrb[0].mxu0
      %v968 = vpop.f32.mrb[0].mxu0
      %v969 = vadd.f32 0.0, %v968
      %v970 = vpop.f32.mrb[0].mxu0
      %971 = vmatprep.mubr.bf16.mxu0 0
      %972 = vmatmul.mubr.bf16.gmra.mrb[0].mxu0 %v848
      %v973 = vpop.f32.mrb[0].mxu0
      %v974 = vadd.f32 0.0, %v973
      %v975 = vpop.f32.mrb[0].mxu0
      %v976 = vpop.f32.mrb[0].mxu0
      %v977 = vadd.f32 0.0, %v976
      %v978 = vpop.f32.mrb[0].mxu0
      %979 = vmatprep.mubr.bf16.mxu0 0
      %980 = vmatmul.mubr.bf16.gmra.mrb[0].mxu0 %v851
      %v981 = vpop.f32.mrb[0].mxu0
      %v982 = vadd.f32 0.0, %v981
      %v983 = vpop.f32.mrb[0].mxu0
      %v984 = vpop.f32.mrb[0].mxu0
      %v985 = vadd.f32 0.0, %v984
      %v986 = vpop.f32.mrb[0].mxu0
      %987 = vmatprep.mubr.bf16.mxu0 0
      %988 = vmatmul.mubr.bf16.gmra.mrb[0].mxu0 %v854
      %v989 = vpop.f32.mrb[0].mxu0
      %v990 = vadd.f32 0.0, %v989
      %v991 = vpop.f32.mrb[0].mxu0
      %v992 = vpop.f32.mrb[0].mxu0
      %v993 = vadd.f32 0.0, %v992
      %v994 = vpop.f32.mrb[0].mxu0
      %995 = vmatprep.mubr.bf16.mxu0 0
      %996 = vmatmul.mubr.bf16.gmra.mrb[0].mxu0 %v857
      %v997 = vpop.f32.mrb[0].mxu0
      %v998 = vadd.f32 0.0, %v997
      %v999 = vpop.f32.mrb[0].mxu0
      %v1000 = vpop.f32.mrb[0].mxu0
      %v1001 = vadd.f32 0.0, %v1000
      %v1002 = vpop.f32.mrb[0].mxu0
      %1003 = vmatprep.mubr.bf16.mxu0 0
      %1004 = vmatmul.mubr.bf16.gmra.mrb[0].mxu0 %v860
      %v1005 = vpop.f32.mrb[0].mxu0
      %v1006 = vadd.f32 0.0, %v1005
      %v1007 = vpop.f32.mrb[0].mxu0
      %v1008 = vpop.f32.mrb[0].mxu0
      %v1009 = vadd.f32 0.0, %v1008
      %v1010 = vpop.f32.mrb[0].mxu0
      %1011 = vmatprep.mubr.bf16.mxu0 0
      %1012 = vmatmul.mubr.bf16.gmra.mrb[0].mxu0 %v863
      %v1013 = vpop.f32.mrb[0].mxu0
      %v1014 = vadd.f32 0.0, %v1013
      %v1015 = vpop.f32.mrb[0].mxu0
      %v1016 = vpop.f32.mrb[0].mxu0
      %v1017 = vadd.f32 0.0, %v1016
      %v1018 = vpop.f32.mrb[0].mxu0
      %1019 = vmatprep.mubr.bf16.mxu0 0
      %1020 = vmatmul.mubr.bf16.gmra.mrb[0].mxu0 %v866
      %v1021 = vpop.f32.mrb[0].mxu0
      %v1022 = vadd.f32 0.0, %v1021
      %v1023 = vpop.f32.mrb[0].mxu0
      %v1024 = vpop.f32.mrb[0].mxu0
      %v1025 = vadd.f32 0.0, %v1024
      %v1026 = vpop.f32.mrb[0].mxu0
      %1027 = vmatprep.mubr.bf16.mxu0 0
      %1028 = vmatmul.mubr.bf16.gmra.mrb[0].mxu0 %v869
      %v1029 = vpop.f32.mrb[0].mxu0
      %v1030 = vadd.f32 0.0, %v1029
      %v1031 = vpop.f32.mrb[0].mxu0
      %v1032 = vpop.f32.mrb[0].mxu0
      %v1033 = vadd.f32 0.0, %v1032
      %v1034 = vpop.f32.mrb[0].mxu0
      %1035 = vmatprep.mubr.bf16.mxu0 0
      %1036 = vmatmul.mubr.bf16.gmra.mrb[0].mxu0 %v872
      %v1037 = vpop.f32.mrb[0].mxu0
      %v1038 = vadd.f32 0.0, %v1037
      %v1039 = vpop.f32.mrb[0].mxu0
      %v1040 = vpop.f32.mrb[0].mxu0
      %v1041 = vadd.f32 0.0, %v1040
      %v1042 = vpop.f32.mrb[0].mxu0
      %1043 = vmatprep.mubr.bf16.mxu0 0
      %1044 = vmatmul.mubr.bf16.gmra.mrb[0].mxu0 %v875
      %v1045 = vpop.f32.mrb[0].mxu0
      %v1046 = vadd.f32 0.0, %v1045
      %v1047 = vpop.f32.mrb[0].mxu0
      %v1048 = vpop.f32.mrb[0].mxu0
      %v1049 = vadd.f32 0.0, %v1048
      %v1050 = vpop.f32.mrb[0].mxu0
      %1051 = vmatprep.mubr.bf16.mxu0 0
      %1052 = vmatmul.mubr.bf16.gmra.mrb[0].mxu0 %v878
      %v1053 = vpop.f32.mrb[0].mxu0
      %v1054 = vadd.f32 0.0, %v1053
      %v1055 = vpop.f32.mrb[0].mxu0
      %v1056 = vpop.f32.mrb[0].mxu0
      %v1057 = vadd.f32 0.0, %v1056
      %v1058 = vpop.f32.mrb[0].mxu0
      %1059 = vdwg.mxu0
      %v1060 = vld [vmem:[%s143] sm:$0xff]
      %v1061 = vld [vmem:[%s143 + $0x8] sm:$0xff]
      %v1062 = vld [vmem:[%s143 + $0x10] sm:$0xff]
      %v1063 = vld [vmem:[%s143 + $0x18] sm:$0xff]
      %v1064 = vld [vmem:[%s143 + $0x20] sm:$0xff]
      %v1065 = vld [vmem:[%s143 + $0x28] sm:$0xff]
      %v1066 = vld [vmem:[%s143 + $0x30] sm:$0xff]
      %v1067 = vld [vmem:[%s143 + $0x38] sm:$0xff]
      %v1068 = vld [vmem:[%s143 + $0x40] sm:$0xff]
      %v1069 = vld [vmem:[%s143 + $0x48] sm:$0xff]
      %v1070 = vld [vmem:[%s143 + $0x50] sm:$0xff]
      %v1071 = vld [vmem:[%s143 + $0x58] sm:$0xff]
      %v1072 = vld [vmem:[%s143 + $0x60] sm:$0xff]
      %v1073 = vld [vmem:[%s143 + $0x68] sm:$0xff]
      %v1074 = vld [vmem:[%s143 + $0x70] sm:$0xff]
      %v1075 = vld [vmem:[%s143 + $0x78] sm:$0xff]
      %v1076 = vld [vmem:[%s143 + $0x80] sm:$0xff]
      %v1077 = vld [vmem:[%s143 + $0x88] sm:$0xff]
      %v1078 = vld [vmem:[%s143 + $0x90] sm:$0xff]
      %v1079 = vld [vmem:[%s143 + $0x98] sm:$0xff]
      %v1080 = vld [vmem:[%s143 + $0xa0] sm:$0xff]
      %v1081 = vld [vmem:[%s143 + $0xa8] sm:$0xff]
      %v1082 = vld [vmem:[%s143 + $0xb0] sm:$0xff]
      %v1083 = vld [vmem:[%s143 + $0xb8] sm:$0xff]
      %v1084 = vld [vmem:[%s143 + $0xc0] sm:$0xff]
      %v1085 = vld [vmem:[%s143 + $0xc8] sm:$0xff]
      %v1086 = vld [vmem:[%s143 + $0xd0] sm:$0xff]
      %v1087 = vld [vmem:[%s143 + $0xd8] sm:$0xff]
      %v1088 = vld [vmem:[%s143 + $0xe0] sm:$0xff]
      %v1089 = vld [vmem:[%s143 + $0xe8] sm:$0xff]
      %v1090 = vld [vmem:[%s143 + $0xf0] sm:$0xff]
      %v1091 = vld [vmem:[%s143 + $0xf8] sm:$0xff]
      %v1092 = vld [vmem:[%s143 + $0x100] sm:$0xff]
      %v1093 = vld [vmem:[%s143 + $0x108] sm:$0xff]
      %v1094 = vld [vmem:[%s143 + $0x110] sm:$0xff]
      %v1095 = vld [vmem:[%s143 + $0x118] sm:$0xff]
      %v1096 = vadd.f32 %v1060, %v918
      %v1097 = vadd.f32 %v1061, %v921
      %v1098 = vadd.f32 %v1062, %v926
      %v1099 = vadd.f32 %v1063, %v929
      %v1100 = vadd.f32 %v1064, %v934
      %v1101 = vadd.f32 %v1065, %v937
      %v1102 = vadd.f32 %v1066, %v942
      %v1103 = vadd.f32 %v1067, %v945
      %v1104 = vadd.f32 %v1068, %v950
      %v1105 = vadd.f32 %v1069, %v953
      %v1106 = vadd.f32 %v1070, %v958
      %v1107 = vadd.f32 %v1071, %v961
      %v1108 = vadd.f32 %v1072, %v966
      %v1109 = vadd.f32 %v1073, %v969
      %v1110 = vadd.f32 %v1074, %v974
      %v1111 = vadd.f32 %v1075, %v977
      %v1112 = vadd.f32 %v1076, %v982
      %v1113 = vadd.f32 %v1077, %v985
      %v1114 = vadd.f32 %v1078, %v990
      %v1115 = vadd.f32 %v1079, %v993
      %v1116 = vadd.f32 %v1080, %v998
      %v1117 = vadd.f32 %v1081, %v1001
      %v1118 = vadd.f32 %v1082, %v1006
      %v1119 = vadd.f32 %v1083, %v1009
      %v1120 = vadd.f32 %v1084, %v1014
      %v1121 = vadd.f32 %v1085, %v1017
      %v1122 = vadd.f32 %v1086, %v1022
      %v1123 = vadd.f32 %v1087, %v1025
      %v1124 = vadd.f32 %v1088, %v1030
      %v1125 = vadd.f32 %v1089, %v1033
      %v1126 = vadd.f32 %v1090, %v1038
      %v1127 = vadd.f32 %v1091, %v1041
      %v1128 = vadd.f32 %v1092, %v1046
      %v1129 = vadd.f32 %v1093, %v1049
      %v1130 = vadd.f32 %v1094, %v1054
      %v1131 = vadd.f32 %v1095, %v1057
      %1132 = vst.msk [vmem:[%s143] sm:$0xff] %vm508, %v1096
      %1133 = vst.msk [vmem:[%s143 + $0x8] sm:$0xff] %vm508, %v1097
      %1134 = vst.msk [vmem:[%s143 + $0x10] sm:$0xff] %vm508, %v1098
      %1135 = vst.msk [vmem:[%s143 + $0x18] sm:$0xff] %vm508, %v1099
      %1136 = vst.msk [vmem:[%s143 + $0x20] sm:$0xff] %vm508, %v1100
      %1137 = vst.msk [vmem:[%s143 + $0x28] sm:$0xff] %vm508, %v1101
      %1138 = vst.msk [vmem:[%s143 + $0x30] sm:$0xff] %vm508, %v1102
      %1139 = vst.msk [vmem:[%s143 + $0x38] sm:$0xff] %vm508, %v1103
      %1140 = vst.msk [vmem:[%s143 + $0x40] sm:$0xff] %vm508, %v1104
      %1141 = vst.msk [vmem:[%s143 + $0x48] sm:$0xff] %vm508, %v1105
      %1142 = vst.msk [vmem:[%s143 + $0x50] sm:$0xff] %vm508, %v1106
      %1143 = vst.msk [vmem:[%s143 + $0x58] sm:$0xff] %vm508, %v1107
      %1144 = vst.msk [vmem:[%s143 + $0x60] sm:$0xff] %vm508, %v1108
      %1145 = vst.msk [vmem:[%s143 + $0x68] sm:$0xff] %vm508, %v1109
      %1146 = vst.msk [vmem:[%s143 + $0x70] sm:$0xff] %vm508, %v1110
      %1147 = vst.msk [vmem:[%s143 + $0x78] sm:$0xff] %vm508, %v1111
      %1148 = vst.msk [vmem:[%s143 + $0x80] sm:$0xff] %vm508, %v1112
      %1149 = vst.msk [vmem:[%s143 + $0x88] sm:$0xff] %vm508, %v1113
      %1150 = vst.msk [vmem:[%s143 + $0x90] sm:$0xff] %vm508, %v1114
      %1151 = vst.msk [vmem:[%s143 + $0x98] sm:$0xff] %vm508, %v1115
      %1152 = vst.msk [vmem:[%s143 + $0xa0] sm:$0xff] %vm508, %v1116
      %1153 = vst.msk [vmem:[%s143 + $0xa8] sm:$0xff] %vm508, %v1117
      %1154 = vst.msk [vmem:[%s143 + $0xb0] sm:$0xff] %vm508, %v1118
      %1155 = vst.msk [vmem:[%s143 + $0xb8] sm:$0xff] %vm508, %v1119
      %1156 = vst.msk [vmem:[%s143 + $0xc0] sm:$0xff] %vm508, %v1120
      %1157 = vst.msk [vmem:[%s143 + $0xc8] sm:$0xff] %vm508, %v1121
      %1158 = vst.msk [vmem:[%s143 + $0xd0] sm:$0xff] %vm508, %v1122
      %1159 = vst.msk [vmem:[%s143 + $0xd8] sm:$0xff] %vm508, %v1123
      %1160 = vst.msk [vmem:[%s143 + $0xe0] sm:$0xff] %vm508, %v1124
      %1161 = vst.msk [vmem:[%s143 + $0xe8] sm:$0xff] %vm508, %v1125
      %1162 = vst.msk [vmem:[%s143 + $0xf0] sm:$0xff] %vm508, %v1126
      %1163 = vst.msk [vmem:[%s143 + $0xf8] sm:$0xff] %vm508, %v1127
      %1164 = vst.msk [vmem:[%s143 + $0x100] sm:$0xff] %vm508, %v1128
      %1165 = vst.msk [vmem:[%s143 + $0x108] sm:$0xff] %vm508, %v1129
      %1166 = vst.msk [vmem:[%s143 + $0x110] sm:$0xff] %vm508, %v1130
      %1167 = vst.msk [vmem:[%s143 + $0x118] sm:$0xff] %vm508, %v1131
      %v1168 = vld [vmem:[%s138] sm:$0xe]
      %v1169 = vld [vmem:[%s138 + $0x4] sm:$0xf]
      %v1170 = vld [vmem:[%s138 + $0x8] sm:$0xf]
      %v1171 = vld [vmem:[%s138 + $0xc] sm:$0xf]
      %v1172 = vld [vmem:[%s138 + $0x10] sm:$0xf]
      %v1173 = vld [vmem:[%s138 + $0x14] sm:$0xf]
      %v1174 = vld [vmem:[%s138 + $0x18] sm:$0xf]
      %v1175 = vld [vmem:[%s138 + $0x1c] sm:$0xf]
      %v1176 = vld [vmem:[%s138 + $0x20] sm:$0xf]
      %v1177 = vld [vmem:[%s138 + $0x24] sm:$0xf]
      %v1178 = vld [vmem:[%s138 + $0x28] sm:$0xf]
      %v1179 = vld [vmem:[%s138 + $0x2c] sm:$0xf]
      %v1180 = vld [vmem:[%s138 + $0x30] sm:$0xf]
      %v1181 = vld [vmem:[%s138 + $0x34] sm:$0xf]
      %v1182 = vld [vmem:[%s138 + $0x38] sm:$0xf]
      %v1183 = vld [vmem:[%s138 + $0x3c] sm:$0xf]
      %v1184 = vld [vmem:[%s138 + $0x40] sm:$0xf]
      %v1185 = vld [vmem:[%s138 + $0x44] sm:$0xf]
      %v1186 = vld [vmem:[%s138 + $0x48] sm:$0xf]
      %v1187 = vld [vmem:[%s138 + $0x4c] sm:$0xf]
      %v1188 = vld [vmem:[%s138 + $0x50] sm:$0xf]
      %v1189 = vld [vmem:[%s138 + $0x54] sm:$0xf]
      %v1190 = vld [vmem:[%s138 + $0x58] sm:$0xf]
      %v1191 = vld [vmem:[%s138 + $0x5c] sm:$0xf]
      %v1192 = vld [vmem:[%s138 + $0x60] sm:$0xf]
      %v1193 = vld [vmem:[%s138 + $0x64] sm:$0xf]
      %v1194 = vld [vmem:[%s138 + $0x68] sm:$0xf]
      %v1195 = vld [vmem:[%s138 + $0x6c] sm:$0xf]
      %v1196 = vld [vmem:[%s138 + $0x70] sm:$0xf]
      %v1197 = vld [vmem:[%s138 + $0x74] sm:$0xf]
      %v1198 = vld [vmem:[%s138 + $0x78] sm:$0xf]
      %v1199 = vld [vmem:[%s138 + $0x7c] sm:$0xf]
      %v1200 = vld [vmem:[%s138 + $0x80] sm:$0xf]
      %v1201 = vld [vmem:[%s138 + $0x84] sm:$0xf]
      %v1202 = vld [vmem:[%s138 + $0x88] sm:$0xf]
      %v1203 = vld [vmem:[%s138 + $0x8c] sm:$0xf]
      %v1204 = vld [vmem:[%s138 + $0x90] sm:$0x1]
      %s1205 = scalar_lea.vmem %s1, 4
      %v1206 = vld [vmem:[%s1205] sm:$0x3]
      %v1244 = vunpack.c.l.b16 %v1168
      %v1245 = vunpack.c.l.b16 %v1169
      %v1246 = vunpack.c.l.b16 %v1170
      %v1247 = vunpack.c.l.b16 %v1171
      %v1248 = vunpack.c.l.b16 %v1172
      %v1249 = vunpack.c.l.b16 %v1173
      %v1250 = vunpack.c.l.b16 %v1174
      %v1251 = vunpack.c.l.b16 %v1175
      %v1252 = vunpack.c.l.b16 %v1176
      %v1253 = vunpack.c.l.b16 %v1177
      %v1254 = vunpack.c.l.b16 %v1178
      %v1255 = vunpack.c.l.b16 %v1179
      %v1256 = vunpack.c.l.b16 %v1180
      %v1257 = vunpack.c.l.b16 %v1181
      %v1258 = vunpack.c.l.b16 %v1182
      %v1259 = vunpack.c.l.b16 %v1183
      %v1260 = vunpack.c.l.b16 %v1184
      %v1261 = vunpack.c.l.b16 %v1185
      %v1262 = vunpack.c.l.b16 %v1186
      %v1263 = vunpack.c.l.b16 %v1187
      %v1264 = vunpack.c.l.b16 %v1188
      %v1265 = vunpack.c.l.b16 %v1189
      %v1266 = vunpack.c.l.b16 %v1190
      %v1267 = vunpack.c.l.b16 %v1191
      %v1268 = vunpack.c.l.b16 %v1192
      %v1269 = vunpack.c.l.b16 %v1193
      %v1270 = vunpack.c.l.b16 %v1194
      %v1271 = vunpack.c.l.b16 %v1195
      %v1272 = vunpack.c.l.b16 %v1196
      %v1273 = vunpack.c.l.b16 %v1197
      %v1274 = vunpack.c.l.b16 %v1198
      %v1275 = vunpack.c.l.b16 %v1199
      %v1276 = vunpack.c.l.b16 %v1200
      %v1277 = vunpack.c.l.b16 %v1201
      %v1278 = vunpack.c.l.b16 %v1202
      %v1279 = vunpack.c.l.b16 %v1203
      %v1280 = vunpack.c.l.b16 %v1204
      %v1281 = vpack.c.b16 %v1245, %v1244
      %v1282 = vpack.c.b16 %v1247, %v1246
      %v1283 = vpack.c.b16 %v1249, %v1248
      %v1284 = vpack.c.b16 %v1251, %v1250
      %v1285 = vpack.c.b16 %v1253, %v1252
      %v1286 = vpack.c.b16 %v1255, %v1254
      %v1287 = vpack.c.b16 %v1257, %v1256
      %v1288 = vpack.c.b16 %v1259, %v1258
      %v1289 = vpack.c.b16 %v1261, %v1260
      %v1290 = vpack.c.b16 %v1263, %v1262
      %v1291 = vpack.c.b16 %v1265, %v1264
      %v1292 = vpack.c.b16 %v1267, %v1266
      %v1293 = vpack.c.b16 %v1269, %v1268
      %v1294 = vpack.c.b16 %v1271, %v1270
      %v1295 = vpack.c.b16 %v1273, %v1272
      %v1296 = vpack.c.b16 %v1275, %v1274
      %v1297 = vpack.c.b16 %v1277, %v1276
      %v1298 = vpack.c.b16 %v1279, %v1278
      %v1299 = vpack.c.b16 %v1280, %v1280
      %vm1300 = vcmask 1046528
      %v1301 = vrot.slane %v1281, 1
      %v1302 = vrot.slane %v1282, 1
      %v1303 = vsel %vm1300, %v1301, %v1302
      %v1304 = vrot.slane %v1283, 1
      %v1305 = vsel %vm1300, %v1302, %v1304
      %v1306 = vrot.slane %v1284, 1
      %v1307 = vsel %vm1300, %v1304, %v1306
      %v1308 = vrot.slane %v1285, 1
      %v1309 = vsel %vm1300, %v1306, %v1308
      %v1310 = vrot.slane %v1286, 1
      %v1311 = vsel %vm1300, %v1308, %v1310
      %v1312 = vrot.slane %v1287, 1
      %v1313 = vsel %vm1300, %v1310, %v1312
      %v1314 = vrot.slane %v1288, 1
      %v1315 = vsel %vm1300, %v1312, %v1314
      %v1316 = vrot.slane %v1289, 1
      %v1317 = vsel %vm1300, %v1314, %v1316
      %v1318 = vrot.slane %v1290, 1
      %v1319 = vsel %vm1300, %v1316, %v1318
      %v1320 = vrot.slane %v1291, 1
      %v1321 = vsel %vm1300, %v1318, %v1320
      %v1322 = vrot.slane %v1292, 1
      %v1323 = vsel %vm1300, %v1320, %v1322
      %v1324 = vrot.slane %v1293, 1
      %v1325 = vsel %vm1300, %v1322, %v1324
      %v1326 = vrot.slane %v1294, 1
      %v1327 = vsel %vm1300, %v1324, %v1326
      %v1328 = vrot.slane %v1295, 1
      %v1329 = vsel %vm1300, %v1326, %v1328
      %v1330 = vrot.slane %v1296, 1
      %v1331 = vsel %vm1300, %v1328, %v1330
      %v1332 = vrot.slane %v1297, 1
      %v1333 = vsel %vm1300, %v1330, %v1332
      %v1334 = vrot.slane %v1298, 1
      %v1335 = vsel %vm1300, %v1332, %v1334
      %v1336 = vrot.slane %v1299, 1
      %v1337 = vsel %vm1300, %v1334, %v1336
      %v1339 = vsel %vm272, %v1303, 0
      %v1342 = vsel %vm272, %v1305, 0
      %v1345 = vsel %vm272, %v1307, 0
      %v1348 = vsel %vm272, %v1309, 0
      %v1351 = vsel %vm272, %v1311, 0
      %v1354 = vsel %vm272, %v1313, 0
      %v1357 = vsel %vm272, %v1315, 0
      %v1360 = vsel %vm272, %v1317, 0
      %v1363 = vsel %vm272, %v1319, 0
      %v1366 = vsel %vm272, %v1321, 0
      %v1369 = vsel %vm272, %v1323, 0
      %v1372 = vsel %vm272, %v1325, 0
      %v1375 = vsel %vm272, %v1327, 0
      %v1378 = vsel %vm272, %v1329, 0
      %v1381 = vsel %vm272, %v1331, 0
      %v1384 = vsel %vm272, %v1333, 0
      %v1387 = vsel %vm272, %v1335, 0
      %v1390 = vsel %vm272, %v1337, 0
      %v1393 = vsel %vm327, %v1206, 0
      %1395 = vmatprep.subr.bf16.mxu0 0
      %1396 = vmatpush1.bf16.msra.mxu0 %v1393
      %1397 = vmatprep.subr.bf16.mxu0 0
      %1398 = vmatpush1.bf16.msra.mxu0 0
      %1399 = vmatprep.subr.bf16.mxu0 0
      %1400 = vmatpush1.bf16.msra.mxu0 0
      %1401 = vmatprep.subr.bf16.mxu0 0
      %1402 = vmatpush1.bf16.msra.mxu0 0
      %1403 = vmatprep.subr.bf16.mxu0 0
      %1404 = vmatpush1.bf16.msra.mxu0 0
      %1405 = vmatprep.subr.bf16.mxu0 0
      %1406 = vmatpush1.bf16.msra.mxu0 0
      %1407 = vmatprep.subr.bf16.mxu0 0
      %1408 = vmatpush1.bf16.msra.mxu0 0
      %1409 = vmatprep.subr.bf16.mxu0 0
      %1410 = vmatpush1.bf16.msra.mxu0 0
      %1411 = vmatprep.subr.bf16.mxu0 0
      %1412 = vmatpush1.bf16.msra.mxu0 0
      %1413 = vmatprep.subr.bf16.mxu0 0
      %1414 = vmatpush1.bf16.msra.mxu0 0
      %1415 = vmatprep.subr.bf16.mxu0 0
      %1416 = vmatpush1.bf16.msra.mxu0 0
      %1417 = vmatprep.subr.bf16.mxu0 0
      %1418 = vmatpush1.bf16.msra.mxu0 0
      %1419 = vmatprep.subr.bf16.mxu0 0
      %1420 = vmatpush1.bf16.msra.mxu0 0
      %1421 = vmatprep.subr.bf16.mxu0 0
      %1422 = vmatpush1.bf16.msra.mxu0 0
      %1423 = vmatprep.subr.bf16.mxu0 0
      %1424 = vmatpush1.bf16.msra.mxu0 0
      %1425 = vmatprep.subr.bf16.mxu0 0
      %1426 = vmatpush1.bf16.msra.mxu0 0
      %1427 = vmatprep.mubr.bf16.mxu0 0
      %1428 = vmatmul.mubr.bf16.gmra.mrb[0].mxu0 %v1339
      %v1429 = vpop.f32.mrb[0].mxu0
      %v1430 = vadd.f32 0.0, %v1429
      %v1431 = vpop.f32.mrb[0].mxu0
      %v1432 = vpop.f32.mrb[0].mxu0
      %v1433 = vadd.f32 0.0, %v1432
      %v1434 = vpop.f32.mrb[0].mxu0
      %1435 = vmatprep.mubr.bf16.mxu0 0
      %1436 = vmatmul.mubr.bf16.gmra.mrb[0].mxu0 %v1342
      %v1437 = vpop.f32.mrb[0].mxu0
      %v1438 = vadd.f32 0.0, %v1437
      %v1439 = vpop.f32.mrb[0].mxu0
      %v1440 = vpop.f32.mrb[0].mxu0
      %v1441 = vadd.f32 0.0, %v1440
      %v1442 = vpop.f32.mrb[0].mxu0
      %1443 = vmatprep.mubr.bf16.mxu0 0
      %1444 = vmatmul.mubr.bf16.gmra.mrb[0].mxu0 %v1345
      %v1445 = vpop.f32.mrb[0].mxu0
      %v1446 = vadd.f32 0.0, %v1445
      %v1447 = vpop.f32.mrb[0].mxu0
      %v1448 = vpop.f32.mrb[0].mxu0
      %v1449 = vadd.f32 0.0, %v1448
      %v1450 = vpop.f32.mrb[0].mxu0
      %1451 = vmatprep.mubr.bf16.mxu0 0
      %1452 = vmatmul.mubr.bf16.gmra.mrb[0].mxu0 %v1348
      %v1453 = vpop.f32.mrb[0].mxu0
      %v1454 = vadd.f32 0.0, %v1453
      %v1455 = vpop.f32.mrb[0].mxu0
      %v1456 = vpop.f32.mrb[0].mxu0
      %v1457 = vadd.f32 0.0, %v1456
      %v1458 = vpop.f32.mrb[0].mxu0
      %1459 = vmatprep.mubr.bf16.mxu0 0
      %1460 = vmatmul.mubr.bf16.gmra.mrb[0].mxu0 %v1351
      %v1461 = vpop.f32.mrb[0].mxu0
      %v1462 = vadd.f32 0.0, %v1461
      %v1463 = vpop.f32.mrb[0].mxu0
      %v1464 = vpop.f32.mrb[0].mxu0
      %v1465 = vadd.f32 0.0, %v1464
      %v1466 = vpop.f32.mrb[0].mxu0
      %1467 = vmatprep.mubr.bf16.mxu0 0
      %1468 = vmatmul.mubr.bf16.gmra.mrb[0].mxu0 %v1354
      %v1469 = vpop.f32.mrb[0].mxu0
      %v1470 = vadd.f32 0.0, %v1469
      %v1471 = vpop.f32.mrb[0].mxu0
      %v1472 = vpop.f32.mrb[0].mxu0
      %v1473 = vadd.f32 0.0, %v1472
      %v1474 = vpop.f32.mrb[0].mxu0
      %1475 = vmatprep.mubr.bf16.mxu0 0
      %1476 = vmatmul.mubr.bf16.gmra.mrb[0].mxu0 %v1357
      %v1477 = vpop.f32.mrb[0].mxu0
      %v1478 = vadd.f32 0.0, %v1477
      %v1479 = vpop.f32.mrb[0].mxu0
      %v1480 = vpop.f32.mrb[0].mxu0
      %v1481 = vadd.f32 0.0, %v1480
      %v1482 = vpop.f32.mrb[0].mxu0
      %1483 = vmatprep.mubr.bf16.mxu0 0
      %1484 = vmatmul.mubr.bf16.gmra.mrb[0].mxu0 %v1360
      %v1485 = vpop.f32.mrb[0].mxu0
      %v1486 = vadd.f32 0.0, %v1485
      %v1487 = vpop.f32.mrb[0].mxu0
      %v1488 = vpop.f32.mrb[0].mxu0
      %v1489 = vadd.f32 0.0, %v1488
      %v1490 = vpop.f32.mrb[0].mxu0
      %1491 = vmatprep.mubr.bf16.mxu0 0
      %1492 = vmatmul.mubr.bf16.gmra.mrb[0].mxu0 %v1363
      %v1493 = vpop.f32.mrb[0].mxu0
      %v1494 = vadd.f32 0.0, %v1493
      %v1495 = vpop.f32.mrb[0].mxu0
      %v1496 = vpop.f32.mrb[0].mxu0
      %v1497 = vadd.f32 0.0, %v1496
      %v1498 = vpop.f32.mrb[0].mxu0
      %1499 = vmatprep.mubr.bf16.mxu0 0
      %1500 = vmatmul.mubr.bf16.gmra.mrb[0].mxu0 %v1366
      %v1501 = vpop.f32.mrb[0].mxu0
      %v1502 = vadd.f32 0.0, %v1501
      %v1503 = vpop.f32.mrb[0].mxu0
      %v1504 = vpop.f32.mrb[0].mxu0
      %v1505 = vadd.f32 0.0, %v1504
      %v1506 = vpop.f32.mrb[0].mxu0
      %1507 = vmatprep.mubr.bf16.mxu0 0
      %1508 = vmatmul.mubr.bf16.gmra.mrb[0].mxu0 %v1369
      %v1509 = vpop.f32.mrb[0].mxu0
      %v1510 = vadd.f32 0.0, %v1509
      %v1511 = vpop.f32.mrb[0].mxu0
      %v1512 = vpop.f32.mrb[0].mxu0
      %v1513 = vadd.f32 0.0, %v1512
      %v1514 = vpop.f32.mrb[0].mxu0
      %1515 = vmatprep.mubr.bf16.mxu0 0
      %1516 = vmatmul.mubr.bf16.gmra.mrb[0].mxu0 %v1372
      %v1517 = vpop.f32.mrb[0].mxu0
      %v1518 = vadd.f32 0.0, %v1517
      %v1519 = vpop.f32.mrb[0].mxu0
      %v1520 = vpop.f32.mrb[0].mxu0
      %v1521 = vadd.f32 0.0, %v1520
      %v1522 = vpop.f32.mrb[0].mxu0
      %1523 = vmatprep.mubr.bf16.mxu0 0
      %1524 = vmatmul.mubr.bf16.gmra.mrb[0].mxu0 %v1375
      %v1525 = vpop.f32.mrb[0].mxu0
      %v1526 = vadd.f32 0.0, %v1525
      %v1527 = vpop.f32.mrb[0].mxu0
      %v1528 = vpop.f32.mrb[0].mxu0
      %v1529 = vadd.f32 0.0, %v1528
      %v1530 = vpop.f32.mrb[0].mxu0
      %1531 = vmatprep.mubr.bf16.mxu0 0
      %1532 = vmatmul.mubr.bf16.gmra.mrb[0].mxu0 %v1378
      %v1533 = vpop.f32.mrb[0].mxu0
      %v1534 = vadd.f32 0.0, %v1533
      %v1535 = vpop.f32.mrb[0].mxu0
      %v1536 = vpop.f32.mrb[0].mxu0
      %v1537 = vadd.f32 0.0, %v1536
      %v1538 = vpop.f32.mrb[0].mxu0
      %1539 = vmatprep.mubr.bf16.mxu0 0
      %1540 = vmatmul.mubr.bf16.gmra.mrb[0].mxu0 %v1381
      %v1541 = vpop.f32.mrb[0].mxu0
      %v1542 = vadd.f32 0.0, %v1541
      %v1543 = vpop.f32.mrb[0].mxu0
      %v1544 = vpop.f32.mrb[0].mxu0
      %v1545 = vadd.f32 0.0, %v1544
      %v1546 = vpop.f32.mrb[0].mxu0
      %1547 = vmatprep.mubr.bf16.mxu0 0
      %1548 = vmatmul.mubr.bf16.gmra.mrb[0].mxu0 %v1384
      %v1549 = vpop.f32.mrb[0].mxu0
      %v1550 = vadd.f32 0.0, %v1549
      %v1551 = vpop.f32.mrb[0].mxu0
      %v1552 = vpop.f32.mrb[0].mxu0
      %v1553 = vadd.f32 0.0, %v1552
      %v1554 = vpop.f32.mrb[0].mxu0
      %1555 = vmatprep.mubr.bf16.mxu0 0
      %1556 = vmatmul.mubr.bf16.gmra.mrb[0].mxu0 %v1387
      %v1557 = vpop.f32.mrb[0].mxu0
      %v1558 = vadd.f32 0.0, %v1557
      %v1559 = vpop.f32.mrb[0].mxu0
      %v1560 = vpop.f32.mrb[0].mxu0
      %v1561 = vadd.f32 0.0, %v1560
      %v1562 = vpop.f32.mrb[0].mxu0
      %1563 = vmatprep.mubr.bf16.mxu0 0
      %1564 = vmatmul.mubr.bf16.gmra.mrb[0].mxu0 %v1390
      %v1565 = vpop.f32.mrb[0].mxu0
      %v1566 = vadd.f32 0.0, %v1565
      %v1567 = vpop.f32.mrb[0].mxu0
      %v1568 = vpop.f32.mrb[0].mxu0
      %v1569 = vadd.f32 0.0, %v1568
      %v1570 = vpop.f32.mrb[0].mxu0
      %1571 = vdwg.mxu0
      %v1572 = vld [vmem:[%s143] sm:$0xff]
      %v1573 = vld [vmem:[%s143 + $0x8] sm:$0xff]
      %v1574 = vld [vmem:[%s143 + $0x10] sm:$0xff]
      %v1575 = vld [vmem:[%s143 + $0x18] sm:$0xff]
      %v1576 = vld [vmem:[%s143 + $0x20] sm:$0xff]
      %v1577 = vld [vmem:[%s143 + $0x28] sm:$0xff]
      %v1578 = vld [vmem:[%s143 + $0x30] sm:$0xff]
      %v1579 = vld [vmem:[%s143 + $0x38] sm:$0xff]
      %v1580 = vld [vmem:[%s143 + $0x40] sm:$0xff]
      %v1581 = vld [vmem:[%s143 + $0x48] sm:$0xff]
      %v1582 = vld [vmem:[%s143 + $0x50] sm:$0xff]
      %v1583 = vld [vmem:[%s143 + $0x58] sm:$0xff]
      %v1584 = vld [vmem:[%s143 + $0x60] sm:$0xff]
      %v1585 = vld [vmem:[%s143 + $0x68] sm:$0xff]
      %v1586 = vld [vmem:[%s143 + $0x70] sm:$0xff]
      %v1587 = vld [vmem:[%s143 + $0x78] sm:$0xff]
      %v1588 = vld [vmem:[%s143 + $0x80] sm:$0xff]
      %v1589 = vld [vmem:[%s143 + $0x88] sm:$0xff]
      %v1590 = vld [vmem:[%s143 + $0x90] sm:$0xff]
      %v1591 = vld [vmem:[%s143 + $0x98] sm:$0xff]
      %v1592 = vld [vmem:[%s143 + $0xa0] sm:$0xff]
      %v1593 = vld [vmem:[%s143 + $0xa8] sm:$0xff]
      %v1594 = vld [vmem:[%s143 + $0xb0] sm:$0xff]
      %v1595 = vld [vmem:[%s143 + $0xb8] sm:$0xff]
      %v1596 = vld [vmem:[%s143 + $0xc0] sm:$0xff]
      %v1597 = vld [vmem:[%s143 + $0xc8] sm:$0xff]
      %v1598 = vld [vmem:[%s143 + $0xd0] sm:$0xff]
      %v1599 = vld [vmem:[%s143 + $0xd8] sm:$0xff]
      %v1600 = vld [vmem:[%s143 + $0xe0] sm:$0xff]
      %v1601 = vld [vmem:[%s143 + $0xe8] sm:$0xff]
      %v1602 = vld [vmem:[%s143 + $0xf0] sm:$0xff]
      %v1603 = vld [vmem:[%s143 + $0xf8] sm:$0xff]
      %v1604 = vld [vmem:[%s143 + $0x100] sm:$0xff]
      %v1605 = vld [vmem:[%s143 + $0x108] sm:$0xff]
      %v1606 = vld [vmem:[%s143 + $0x110] sm:$0xff]
      %v1607 = vld [vmem:[%s143 + $0x118] sm:$0xff]
      %v1608 = vadd.f32 %v1572, %v1430
      %v1609 = vadd.f32 %v1573, %v1433
      %v1610 = vadd.f32 %v1574, %v1438
      %v1611 = vadd.f32 %v1575, %v1441
      %v1612 = vadd.f32 %v1576, %v1446
      %v1613 = vadd.f32 %v1577, %v1449
      %v1614 = vadd.f32 %v1578, %v1454
      %v1615 = vadd.f32 %v1579, %v1457
      %v1616 = vadd.f32 %v1580, %v1462
      %v1617 = vadd.f32 %v1581, %v1465
      %v1618 = vadd.f32 %v1582, %v1470
      %v1619 = vadd.f32 %v1583, %v1473
      %v1620 = vadd.f32 %v1584, %v1478
      %v1621 = vadd.f32 %v1585, %v1481
      %v1622 = vadd.f32 %v1586, %v1486
      %v1623 = vadd.f32 %v1587, %v1489
      %v1624 = vadd.f32 %v1588, %v1494
      %v1625 = vadd.f32 %v1589, %v1497
      %v1626 = vadd.f32 %v1590, %v1502
      %v1627 = vadd.f32 %v1591, %v1505
      %v1628 = vadd.f32 %v1592, %v1510
      %v1629 = vadd.f32 %v1593, %v1513
      %v1630 = vadd.f32 %v1594, %v1518
      %v1631 = vadd.f32 %v1595, %v1521
      %v1632 = vadd.f32 %v1596, %v1526
      %v1633 = vadd.f32 %v1597, %v1529
      %v1634 = vadd.f32 %v1598, %v1534
      %v1635 = vadd.f32 %v1599, %v1537
      %v1636 = vadd.f32 %v1600, %v1542
      %v1637 = vadd.f32 %v1601, %v1545
      %v1638 = vadd.f32 %v1602, %v1550
      %v1639 = vadd.f32 %v1603, %v1553
      %v1640 = vadd.f32 %v1604, %v1558
      %v1641 = vadd.f32 %v1605, %v1561
      %v1642 = vadd.f32 %v1606, %v1566
      %v1643 = vadd.f32 %v1607, %v1569
      %1644 = vst.msk [vmem:[%s143] sm:$0xff] %vm508, %v1608
      %1645 = vst.msk [vmem:[%s143 + $0x8] sm:$0xff] %vm508, %v1609
      %1646 = vst.msk [vmem:[%s143 + $0x10] sm:$0xff] %vm508, %v1610
      %1647 = vst.msk [vmem:[%s143 + $0x18] sm:$0xff] %vm508, %v1611
      %1648 = vst.msk [vmem:[%s143 + $0x20] sm:$0xff] %vm508, %v1612
      %1649 = vst.msk [vmem:[%s143 + $0x28] sm:$0xff] %vm508, %v1613
      %1650 = vst.msk [vmem:[%s143 + $0x30] sm:$0xff] %vm508, %v1614
      %1651 = vst.msk [vmem:[%s143 + $0x38] sm:$0xff] %vm508, %v1615
      %1652 = vst.msk [vmem:[%s143 + $0x40] sm:$0xff] %vm508, %v1616
      %1653 = vst.msk [vmem:[%s143 + $0x48] sm:$0xff] %vm508, %v1617
      %1654 = vst.msk [vmem:[%s143 + $0x50] sm:$0xff] %vm508, %v1618
      %1655 = vst.msk [vmem:[%s143 + $0x58] sm:$0xff] %vm508, %v1619
      %1656 = vst.msk [vmem:[%s143 + $0x60] sm:$0xff] %vm508, %v1620
      %1657 = vst.msk [vmem:[%s143 + $0x68] sm:$0xff] %vm508, %v1621
      %1658 = vst.msk [vmem:[%s143 + $0x70] sm:$0xff] %vm508, %v1622
      %1659 = vst.msk [vmem:[%s143 + $0x78] sm:$0xff] %vm508, %v1623
      %1660 = vst.msk [vmem:[%s143 + $0x80] sm:$0xff] %vm508, %v1624
      %1661 = vst.msk [vmem:[%s143 + $0x88] sm:$0xff] %vm508, %v1625
      %1662 = vst.msk [vmem:[%s143 + $0x90] sm:$0xff] %vm508, %v1626
      %1663 = vst.msk [vmem:[%s143 + $0x98] sm:$0xff] %vm508, %v1627
      %1664 = vst.msk [vmem:[%s143 + $0xa0] sm:$0xff] %vm508, %v1628
      %1665 = vst.msk [vmem:[%s143 + $0xa8] sm:$0xff] %vm508, %v1629
      %1666 = vst.msk [vmem:[%s143 + $0xb0] sm:$0xff] %vm508, %v1630
      %1667 = vst.msk [vmem:[%s143 + $0xb8] sm:$0xff] %vm508, %v1631
      %1668 = vst.msk [vmem:[%s143 + $0xc0] sm:$0xff] %vm508, %v1632
      %1669 = vst.msk [vmem:[%s143 + $0xc8] sm:$0xff] %vm508, %v1633
      %1670 = vst.msk [vmem:[%s143 + $0xd0] sm:$0xff] %vm508, %v1634
      %1671 = vst.msk [vmem:[%s143 + $0xd8] sm:$0xff] %vm508, %v1635
      %1672 = vst.msk [vmem:[%s143 + $0xe0] sm:$0xff] %vm508, %v1636
      %1673 = vst.msk [vmem:[%s143 + $0xe8] sm:$0xff] %vm508, %v1637
      %1674 = vst.msk [vmem:[%s143 + $0xf0] sm:$0xff] %vm508, %v1638
      %1675 = vst.msk [vmem:[%s143 + $0xf8] sm:$0xff] %vm508, %v1639
      %1676 = vst.msk [vmem:[%s143 + $0x100] sm:$0xff] %vm508, %v1640
      %1677 = vst.msk [vmem:[%s143 + $0x108] sm:$0xff] %vm508, %v1641
      %1678 = vst.msk [vmem:[%s143 + $0x110] sm:$0xff] %vm508, %v1642
      %1679 = vst.msk [vmem:[%s143 + $0x118] sm:$0xff] %vm508, %v1643
      %v1680 = vld [vmem:[%s138 + $0x8] sm:$0xe]
      %v1681 = vld [vmem:[%s138 + $0xc] sm:$0xf]
      %v1682 = vld [vmem:[%s138 + $0x10] sm:$0xf]
      %v1683 = vld [vmem:[%s138 + $0x14] sm:$0xf]
      %v1684 = vld [vmem:[%s138 + $0x18] sm:$0xf]
      %v1685 = vld [vmem:[%s138 + $0x1c] sm:$0xf]
      %v1686 = vld [vmem:[%s138 + $0x20] sm:$0xf]
      %v1687 = vld [vmem:[%s138 + $0x24] sm:$0xf]
      %v1688 = vld [vmem:[%s138 + $0x28] sm:$0xf]
      %v1689 = vld [vmem:[%s138 + $0x2c] sm:$0xf]
      %v1690 = vld [vmem:[%s138 + $0x30] sm:$0xf]
      %v1691 = vld [vmem:[%s138 + $0x34] sm:$0xf]
      %v1692 = vld [vmem:[%s138 + $0x38] sm:$0xf]
      %v1693 = vld [vmem:[%s138 + $0x3c] sm:$0xf]
      %v1694 = vld [vmem:[%s138 + $0x40] sm:$0xf]
      %v1695 = vld [vmem:[%s138 + $0x44] sm:$0xf]
      %v1696 = vld [vmem:[%s138 + $0x48] sm:$0xf]
      %v1697 = vld [vmem:[%s138 + $0x4c] sm:$0xf]
      %v1698 = vld [vmem:[%s138 + $0x50] sm:$0xf]
      %v1699 = vld [vmem:[%s138 + $0x54] sm:$0xf]
      %v1700 = vld [vmem:[%s138 + $0x58] sm:$0xf]
      %v1701 = vld [vmem:[%s138 + $0x5c] sm:$0xf]
      %v1702 = vld [vmem:[%s138 + $0x60] sm:$0xf]
      %v1703 = vld [vmem:[%s138 + $0x64] sm:$0xf]
      %v1704 = vld [vmem:[%s138 + $0x68] sm:$0xf]
      %v1705 = vld [vmem:[%s138 + $0x6c] sm:$0xf]
      %v1706 = vld [vmem:[%s138 + $0x70] sm:$0xf]
      %v1707 = vld [vmem:[%s138 + $0x74] sm:$0xf]
      %v1708 = vld [vmem:[%s138 + $0x78] sm:$0xf]
      %v1709 = vld [vmem:[%s138 + $0x7c] sm:$0xf]
      %v1710 = vld [vmem:[%s138 + $0x80] sm:$0xf]
      %v1711 = vld [vmem:[%s138 + $0x84] sm:$0xf]
      %v1712 = vld [vmem:[%s138 + $0x88] sm:$0xf]
      %v1713 = vld [vmem:[%s138 + $0x8c] sm:$0xf]
      %v1714 = vld [vmem:[%s138 + $0x90] sm:$0xf]
      %v1715 = vld [vmem:[%s138 + $0x94] sm:$0xf]
      %v1716 = vld [vmem:[%s138 + $0x98] sm:$0x1]
      %s1717 = scalar_lea.vmem %s1, 6
      %v1718 = vld [vmem:[%s1717] sm:$0x3]
      %v1756 = vunpack.c.l.b16 %v1680
      %v1757 = vunpack.c.l.b16 %v1681
      %v1758 = vunpack.c.l.b16 %v1682
      %v1759 = vunpack.c.l.b16 %v1683
      %v1760 = vunpack.c.l.b16 %v1684
      %v1761 = vunpack.c.l.b16 %v1685
      %v1762 = vunpack.c.l.b16 %v1686
      %v1763 = vunpack.c.l.b16 %v1687
      %v1764 = vunpack.c.l.b16 %v1688
      %v1765 = vunpack.c.l.b16 %v1689
      %v1766 = vunpack.c.l.b16 %v1690
      %v1767 = vunpack.c.l.b16 %v1691
      %v1768 = vunpack.c.l.b16 %v1692
      %v1769 = vunpack.c.l.b16 %v1693
      %v1770 = vunpack.c.l.b16 %v1694
      %v1771 = vunpack.c.l.b16 %v1695
      %v1772 = vunpack.c.l.b16 %v1696
      %v1773 = vunpack.c.l.b16 %v1697
      %v1774 = vunpack.c.l.b16 %v1698
      %v1775 = vunpack.c.l.b16 %v1699
      %v1776 = vunpack.c.l.b16 %v1700
      %v1777 = vunpack.c.l.b16 %v1701
      %v1778 = vunpack.c.l.b16 %v1702
      %v1779 = vunpack.c.l.b16 %v1703
      %v1780 = vunpack.c.l.b16 %v1704
      %v1781 = vunpack.c.l.b16 %v1705
      %v1782 = vunpack.c.l.b16 %v1706
      %v1783 = vunpack.c.l.b16 %v1707
      %v1784 = vunpack.c.l.b16 %v1708
      %v1785 = vunpack.c.l.b16 %v1709
      %v1786 = vunpack.c.l.b16 %v1710
      %v1787 = vunpack.c.l.b16 %v1711
      %v1788 = vunpack.c.l.b16 %v1712
      %v1789 = vunpack.c.l.b16 %v1713
      %v1790 = vunpack.c.l.b16 %v1714
      %v1791 = vunpack.c.l.b16 %v1715
      %v1792 = vunpack.c.l.b16 %v1716
      %v1793 = vpack.c.b16 %v1757, %v1756
      %v1794 = vpack.c.b16 %v1759, %v1758
      %v1795 = vpack.c.b16 %v1761, %v1760
      %v1796 = vpack.c.b16 %v1763, %v1762
      %v1797 = vpack.c.b16 %v1765, %v1764
      %v1798 = vpack.c.b16 %v1767, %v1766
      %v1799 = vpack.c.b16 %v1769, %v1768
      %v1800 = vpack.c.b16 %v1771, %v1770
      %v1801 = vpack.c.b16 %v1773, %v1772
      %v1802 = vpack.c.b16 %v1775, %v1774
      %v1803 = vpack.c.b16 %v1777, %v1776
      %v1804 = vpack.c.b16 %v1779, %v1778
      %v1805 = vpack.c.b16 %v1781, %v1780
      %v1806 = vpack.c.b16 %v1783, %v1782
      %v1807 = vpack.c.b16 %v1785, %v1784
      %v1808 = vpack.c.b16 %v1787, %v1786
      %v1809 = vpack.c.b16 %v1789, %v1788
      %v1810 = vpack.c.b16 %v1791, %v1790
      %v1811 = vpack.c.b16 %v1792, %v1792
      %v1812 = vrot.slane %v1793, 1
      %v1813 = vrot.slane %v1794, 1
      %v1814 = vsel %vm1300, %v1812, %v1813
      %v1815 = vrot.slane %v1795, 1
      %v1816 = vsel %vm1300, %v1813, %v1815
      %v1817 = vrot.slane %v1796, 1
      %v1818 = vsel %vm1300, %v1815, %v1817
      %v1819 = vrot.slane %v1797, 1
      %v1820 = vsel %vm1300, %v1817, %v1819
      %v1821 = vrot.slane %v1798, 1
      %v1822 = vsel %vm1300, %v1819, %v1821
      %v1823 = vrot.slane %v1799, 1
      %v1824 = vsel %vm1300, %v1821, %v1823
      %v1825 = vrot.slane %v1800, 1
      %v1826 = vsel %vm1300, %v1823, %v1825
      %v1827 = vrot.slane %v1801, 1
      %v1828 = vsel %vm1300, %v1825, %v1827
      %v1829 = vrot.slane %v1802, 1
      %v1830 = vsel %vm1300, %v1827, %v1829
      %v1831 = vrot.slane %v1803, 1
      %v1832 = vsel %vm1300, %v1829, %v1831
      %v1833 = vrot.slane %v1804, 1
      %v1834 = vsel %vm1300, %v1831, %v1833
      %v1835 = vrot.slane %v1805, 1
      %v1836 = vsel %vm1300, %v1833, %v1835
      %v1837 = vrot.slane %v1806, 1
      %v1838 = vsel %vm1300, %v1835, %v1837
      %v1839 = vrot.slane %v1807, 1
      %v1840 = vsel %vm1300, %v1837, %v1839
      %v1841 = vrot.slane %v1808, 1
      %v1842 = vsel %vm1300, %v1839, %v1841
      %v1843 = vrot.slane %v1809, 1
      %v1844 = vsel %vm1300, %v1841, %v1843
      %v1845 = vrot.slane %v1810, 1
      %v1846 = vsel %vm1300, %v1843, %v1845
      %v1847 = vrot.slane %v1811, 1
      %v1848 = vsel %vm1300, %v1845, %v1847
      %v1850 = vsel %vm272, %v1814, 0
      %v1853 = vsel %vm272, %v1816, 0
      %v1856 = vsel %vm272, %v1818, 0
      %v1859 = vsel %vm272, %v1820, 0
      %v1862 = vsel %vm272, %v1822, 0
      %v1865 = vsel %vm272, %v1824, 0
      %v1868 = vsel %vm272, %v1826, 0
      %v1871 = vsel %vm272, %v1828, 0
      %v1874 = vsel %vm272, %v1830, 0
      %v1877 = vsel %vm272, %v1832, 0
      %v1880 = vsel %vm272, %v1834, 0
      %v1883 = vsel %vm272, %v1836, 0
      %v1886 = vsel %vm272, %v1838, 0
      %v1889 = vsel %vm272, %v1840, 0
      %v1892 = vsel %vm272, %v1842, 0
      %v1895 = vsel %vm272, %v1844, 0
      %v1898 = vsel %vm272, %v1846, 0
      %v1901 = vsel %vm272, %v1848, 0
      %v1904 = vsel %vm327, %v1718, 0
      %1906 = vmatprep.subr.bf16.mxu0 0
      %1907 = vmatpush1.bf16.msra.mxu0 %v1904
      %1908 = vmatprep.subr.bf16.mxu0 0
      %1909 = vmatpush1.bf16.msra.mxu0 0
      %1910 = vmatprep.subr.bf16.mxu0 0
      %1911 = vmatpush1.bf16.msra.mxu0 0
      %1912 = vmatprep.subr.bf16.mxu0 0
      %1913 = vmatpush1.bf16.msra.mxu0 0
      %1914 = vmatprep.subr.bf16.mxu0 0
      %1915 = vmatpush1.bf16.msra.mxu0 0
      %1916 = vmatprep.subr.bf16.mxu0 0
      %1917 = vmatpush1.bf16.msra.mxu0 0
      %1918 = vmatprep.subr.bf16.mxu0 0
      %1919 = vmatpush1.bf16.msra.mxu0 0
      %1920 = vmatprep.subr.bf16.mxu0 0
      %1921 = vmatpush1.bf16.msra.mxu0 0
      %1922 = vmatprep.subr.bf16.mxu0 0
      %1923 = vmatpush1.bf16.msra.mxu0 0
      %1924 = vmatprep.subr.bf16.mxu0 0
      %1925 = vmatpush1.bf16.msra.mxu0 0
      %1926 = vmatprep.subr.bf16.mxu0 0
      %1927 = vmatpush1.bf16.msra.mxu0 0
      %1928 = vmatprep.subr.bf16.mxu0 0
      %1929 = vmatpush1.bf16.msra.mxu0 0
      %1930 = vmatprep.subr.bf16.mxu0 0
      %1931 = vmatpush1.bf16.msra.mxu0 0
      %1932 = vmatprep.subr.bf16.mxu0 0
      %1933 = vmatpush1.bf16.msra.mxu0 0
      %1934 = vmatprep.subr.bf16.mxu0 0
      %1935 = vmatpush1.bf16.msra.mxu0 0
      %1936 = vmatprep.subr.bf16.mxu0 0
      %1937 = vmatpush1.bf16.msra.mxu0 0
      %1938 = vmatprep.mubr.bf16.mxu0 0
      %1939 = vmatmul.mubr.bf16.gmra.mrb[0].mxu0 %v1850
      %v1940 = vpop.f32.mrb[0].mxu0
      %v1941 = vadd.f32 0.0, %v1940
      %v1942 = vpop.f32.mrb[0].mxu0
      %v1943 = vpop.f32.mrb[0].mxu0
      %v1944 = vadd.f32 0.0, %v1943
      %v1945 = vpop.f32.mrb[0].mxu0
      %1946 = vmatprep.mubr.bf16.mxu0 0
      %1947 = vmatmul.mubr.bf16.gmra.mrb[0].mxu0 %v1853
      %v1948 = vpop.f32.mrb[0].mxu0
      %v1949 = vadd.f32 0.0, %v1948
      %v1950 = vpop.f32.mrb[0].mxu0
      %v1951 = vpop.f32.mrb[0].mxu0
      %v1952 = vadd.f32 0.0, %v1951
      %v1953 = vpop.f32.mrb[0].mxu0
      %1954 = vmatprep.mubr.bf16.mxu0 0
      %1955 = vmatmul.mubr.bf16.gmra.mrb[0].mxu0 %v1856
      %v1956 = vpop.f32.mrb[0].mxu0
      %v1957 = vadd.f32 0.0, %v1956
      %v1958 = vpop.f32.mrb[0].mxu0
      %v1959 = vpop.f32.mrb[0].mxu0
      %v1960 = vadd.f32 0.0, %v1959
      %v1961 = vpop.f32.mrb[0].mxu0
      %1962 = vmatprep.mubr.bf16.mxu0 0
      %1963 = vmatmul.mubr.bf16.gmra.mrb[0].mxu0 %v1859
      %v1964 = vpop.f32.mrb[0].mxu0
      %v1965 = vadd.f32 0.0, %v1964
      %v1966 = vpop.f32.mrb[0].mxu0
      %v1967 = vpop.f32.mrb[0].mxu0
      %v1968 = vadd.f32 0.0, %v1967
      %v1969 = vpop.f32.mrb[0].mxu0
      %1970 = vmatprep.mubr.bf16.mxu0 0
      %1971 = vmatmul.mubr.bf16.gmra.mrb[0].mxu0 %v1862
      %v1972 = vpop.f32.mrb[0].mxu0
      %v1973 = vadd.f32 0.0, %v1972
      %v1974 = vpop.f32.mrb[0].mxu0
      %v1975 = vpop.f32.mrb[0].mxu0
      %v1976 = vadd.f32 0.0, %v1975
      %v1977 = vpop.f32.mrb[0].mxu0
      %1978 = vmatprep.mubr.bf16.mxu0 0
      %1979 = vmatmul.mubr.bf16.gmra.mrb[0].mxu0 %v1865
      %v1980 = vpop.f32.mrb[0].mxu0
      %v1981 = vadd.f32 0.0, %v1980
      %v1982 = vpop.f32.mrb[0].mxu0
      %v1983 = vpop.f32.mrb[0].mxu0
      %v1984 = vadd.f32 0.0, %v1983
      %v1985 = vpop.f32.mrb[0].mxu0
      %1986 = vmatprep.mubr.bf16.mxu0 0
      %1987 = vmatmul.mubr.bf16.gmra.mrb[0].mxu0 %v1868
      %v1988 = vpop.f32.mrb[0].mxu0
      %v1989 = vadd.f32 0.0, %v1988
      %v1990 = vpop.f32.mrb[0].mxu0
      %v1991 = vpop.f32.mrb[0].mxu0
      %v1992 = vadd.f32 0.0, %v1991
      %v1993 = vpop.f32.mrb[0].mxu0
      %1994 = vmatprep.mubr.bf16.mxu0 0
      %1995 = vmatmul.mubr.bf16.gmra.mrb[0].mxu0 %v1871
      %v1996 = vpop.f32.mrb[0].mxu0
      %v1997 = vadd.f32 0.0, %v1996
      %v1998 = vpop.f32.mrb[0].mxu0
      %v1999 = vpop.f32.mrb[0].mxu0
      %v2000 = vadd.f32 0.0, %v1999
      %v2001 = vpop.f32.mrb[0].mxu0
      %2002 = vmatprep.mubr.bf16.mxu0 0
      %2003 = vmatmul.mubr.bf16.gmra.mrb[0].mxu0 %v1874
      %v2004 = vpop.f32.mrb[0].mxu0
      %v2005 = vadd.f32 0.0, %v2004
      %v2006 = vpop.f32.mrb[0].mxu0
      %v2007 = vpop.f32.mrb[0].mxu0
      %v2008 = vadd.f32 0.0, %v2007
      %v2009 = vpop.f32.mrb[0].mxu0
      %2010 = vmatprep.mubr.bf16.mxu0 0
      %2011 = vmatmul.mubr.bf16.gmra.mrb[0].mxu0 %v1877
      %v2012 = vpop.f32.mrb[0].mxu0
      %v2013 = vadd.f32 0.0, %v2012
      %v2014 = vpop.f32.mrb[0].mxu0
      %v2015 = vpop.f32.mrb[0].mxu0
      %v2016 = vadd.f32 0.0, %v2015
      %v2017 = vpop.f32.mrb[0].mxu0
      %2018 = vmatprep.mubr.bf16.mxu0 0
      %2019 = vmatmul.mubr.bf16.gmra.mrb[0].mxu0 %v1880
      %v2020 = vpop.f32.mrb[0].mxu0
      %v2021 = vadd.f32 0.0, %v2020
      %v2022 = vpop.f32.mrb[0].mxu0
      %v2023 = vpop.f32.mrb[0].mxu0
      %v2024 = vadd.f32 0.0, %v2023
      %v2025 = vpop.f32.mrb[0].mxu0
      %2026 = vmatprep.mubr.bf16.mxu0 0
      %2027 = vmatmul.mubr.bf16.gmra.mrb[0].mxu0 %v1883
      %v2028 = vpop.f32.mrb[0].mxu0
      %v2029 = vadd.f32 0.0, %v2028
      %v2030 = vpop.f32.mrb[0].mxu0
      %v2031 = vpop.f32.mrb[0].mxu0
      %v2032 = vadd.f32 0.0, %v2031
      %v2033 = vpop.f32.mrb[0].mxu0
      %2034 = vmatprep.mubr.bf16.mxu0 0
      %2035 = vmatmul.mubr.bf16.gmra.mrb[0].mxu0 %v1886
      %v2036 = vpop.f32.mrb[0].mxu0
      %v2037 = vadd.f32 0.0, %v2036
      %v2038 = vpop.f32.mrb[0].mxu0
      %v2039 = vpop.f32.mrb[0].mxu0
      %v2040 = vadd.f32 0.0, %v2039
      %v2041 = vpop.f32.mrb[0].mxu0
      %2042 = vmatprep.mubr.bf16.mxu0 0
      %2043 = vmatmul.mubr.bf16.gmra.mrb[0].mxu0 %v1889
      %v2044 = vpop.f32.mrb[0].mxu0
      %v2045 = vadd.f32 0.0, %v2044
      %v2046 = vpop.f32.mrb[0].mxu0
      %v2047 = vpop.f32.mrb[0].mxu0
      %v2048 = vadd.f32 0.0, %v2047
      %v2049 = vpop.f32.mrb[0].mxu0
      %2050 = vmatprep.mubr.bf16.mxu0 0
      %2051 = vmatmul.mubr.bf16.gmra.mrb[0].mxu0 %v1892
      %v2052 = vpop.f32.mrb[0].mxu0
      %v2053 = vadd.f32 0.0, %v2052
      %v2054 = vpop.f32.mrb[0].mxu0
      %v2055 = vpop.f32.mrb[0].mxu0
      %v2056 = vadd.f32 0.0, %v2055
      %v2057 = vpop.f32.mrb[0].mxu0
      %2058 = vmatprep.mubr.bf16.mxu0 0
      %2059 = vmatmul.mubr.bf16.gmra.mrb[0].mxu0 %v1895
      %v2060 = vpop.f32.mrb[0].mxu0
      %v2061 = vadd.f32 0.0, %v2060
      %v2062 = vpop.f32.mrb[0].mxu0
      %v2063 = vpop.f32.mrb[0].mxu0
      %v2064 = vadd.f32 0.0, %v2063
      %v2065 = vpop.f32.mrb[0].mxu0
      %2066 = vmatprep.mubr.bf16.mxu0 0
      %2067 = vmatmul.mubr.bf16.gmra.mrb[0].mxu0 %v1898
      %v2068 = vpop.f32.mrb[0].mxu0
      %v2069 = vadd.f32 0.0, %v2068
      %v2070 = vpop.f32.mrb[0].mxu0
      %v2071 = vpop.f32.mrb[0].mxu0
      %v2072 = vadd.f32 0.0, %v2071
      %v2073 = vpop.f32.mrb[0].mxu0
      %2074 = vmatprep.mubr.bf16.mxu0 0
      %2075 = vmatmul.mubr.bf16.gmra.mrb[0].mxu0 %v1901
      %v2076 = vpop.f32.mrb[0].mxu0
      %v2077 = vadd.f32 0.0, %v2076
      %v2078 = vpop.f32.mrb[0].mxu0
      %v2079 = vpop.f32.mrb[0].mxu0
      %v2080 = vadd.f32 0.0, %v2079
      %v2081 = vpop.f32.mrb[0].mxu0
      %2082 = vdwg.mxu0
      %v2083 = vld [vmem:[%s143] sm:$0xff]
      %v2084 = vld [vmem:[%s143 + $0x8] sm:$0xff]
      %v2085 = vld [vmem:[%s143 + $0x10] sm:$0xff]
      %v2086 = vld [vmem:[%s143 + $0x18] sm:$0xff]
      %v2087 = vld [vmem:[%s143 + $0x20] sm:$0xff]
      %v2088 = vld [vmem:[%s143 + $0x28] sm:$0xff]
      %v2089 = vld [vmem:[%s143 + $0x30] sm:$0xff]
      %v2090 = vld [vmem:[%s143 + $0x38] sm:$0xff]
      %v2091 = vld [vmem:[%s143 + $0x40] sm:$0xff]
      %v2092 = vld [vmem:[%s143 + $0x48] sm:$0xff]
      %v2093 = vld [vmem:[%s143 + $0x50] sm:$0xff]
      %v2094 = vld [vmem:[%s143 + $0x58] sm:$0xff]
      %v2095 = vld [vmem:[%s143 + $0x60] sm:$0xff]
      %v2096 = vld [vmem:[%s143 + $0x68] sm:$0xff]
      %v2097 = vld [vmem:[%s143 + $0x70] sm:$0xff]
      %v2098 = vld [vmem:[%s143 + $0x78] sm:$0xff]
      %v2099 = vld [vmem:[%s143 + $0x80] sm:$0xff]
      %v2100 = vld [vmem:[%s143 + $0x88] sm:$0xff]
      %v2101 = vld [vmem:[%s143 + $0x90] sm:$0xff]
      %v2102 = vld [vmem:[%s143 + $0x98] sm:$0xff]
      %v2103 = vld [vmem:[%s143 + $0xa0] sm:$0xff]
      %v2104 = vld [vmem:[%s143 + $0xa8] sm:$0xff]
      %v2105 = vld [vmem:[%s143 + $0xb0] sm:$0xff]
      %v2106 = vld [vmem:[%s143 + $0xb8] sm:$0xff]
      %v2107 = vld [vmem:[%s143 + $0xc0] sm:$0xff]
      %v2108 = vld [vmem:[%s143 + $0xc8] sm:$0xff]
      %v2109 = vld [vmem:[%s143 + $0xd0] sm:$0xff]
      %v2110 = vld [vmem:[%s143 + $0xd8] sm:$0xff]
      %v2111 = vld [vmem:[%s143 + $0xe0] sm:$0xff]
      %v2112 = vld [vmem:[%s143 + $0xe8] sm:$0xff]
      %v2113 = vld [vmem:[%s143 + $0xf0] sm:$0xff]
      %v2114 = vld [vmem:[%s143 + $0xf8] sm:$0xff]
      %v2115 = vld [vmem:[%s143 + $0x100] sm:$0xff]
      %v2116 = vld [vmem:[%s143 + $0x108] sm:$0xff]
      %v2117 = vld [vmem:[%s143 + $0x110] sm:$0xff]
      %v2118 = vld [vmem:[%s143 + $0x118] sm:$0xff]
      %v2119 = vadd.f32 %v2083, %v1941
      %v2120 = vadd.f32 %v2084, %v1944
      %v2121 = vadd.f32 %v2085, %v1949
      %v2122 = vadd.f32 %v2086, %v1952
      %v2123 = vadd.f32 %v2087, %v1957
      %v2124 = vadd.f32 %v2088, %v1960
      %v2125 = vadd.f32 %v2089, %v1965
      %v2126 = vadd.f32 %v2090, %v1968
      %v2127 = vadd.f32 %v2091, %v1973
      %v2128 = vadd.f32 %v2092, %v1976
      %v2129 = vadd.f32 %v2093, %v1981
      %v2130 = vadd.f32 %v2094, %v1984
      %v2131 = vadd.f32 %v2095, %v1989
      %v2132 = vadd.f32 %v2096, %v1992
      %v2133 = vadd.f32 %v2097, %v1997
      %v2134 = vadd.f32 %v2098, %v2000
      %v2135 = vadd.f32 %v2099, %v2005
      %v2136 = vadd.f32 %v2100, %v2008
      %v2137 = vadd.f32 %v2101, %v2013
      %v2138 = vadd.f32 %v2102, %v2016
      %v2139 = vadd.f32 %v2103, %v2021
      %v2140 = vadd.f32 %v2104, %v2024
      %v2141 = vadd.f32 %v2105, %v2029
      %v2142 = vadd.f32 %v2106, %v2032
      %v2143 = vadd.f32 %v2107, %v2037
      %v2144 = vadd.f32 %v2108, %v2040
      %v2145 = vadd.f32 %v2109, %v2045
      %v2146 = vadd.f32 %v2110, %v2048
      %v2147 = vadd.f32 %v2111, %v2053
      %v2148 = vadd.f32 %v2112, %v2056
      %v2149 = vadd.f32 %v2113, %v2061
      %v2150 = vadd.f32 %v2114, %v2064
      %v2151 = vadd.f32 %v2115, %v2069
      %v2152 = vadd.f32 %v2116, %v2072
      %v2153 = vadd.f32 %v2117, %v2077
      %v2154 = vadd.f32 %v2118, %v2080
      %2155 = vst.msk [vmem:[%s143] sm:$0xff] %vm508, %v2119
      %2156 = vst.msk [vmem:[%s143 + $0x8] sm:$0xff] %vm508, %v2120
      %2157 = vst.msk [vmem:[%s143 + $0x10] sm:$0xff] %vm508, %v2121
      %2158 = vst.msk [vmem:[%s143 + $0x18] sm:$0xff] %vm508, %v2122
      %2159 = vst.msk [vmem:[%s143 + $0x20] sm:$0xff] %vm508, %v2123
      %2160 = vst.msk [vmem:[%s143 + $0x28] sm:$0xff] %vm508, %v2124
      %2161 = vst.msk [vmem:[%s143 + $0x30] sm:$0xff] %vm508, %v2125
      %2162 = vst.msk [vmem:[%s143 + $0x38] sm:$0xff] %vm508, %v2126
      %2163 = vst.msk [vmem:[%s143 + $0x40] sm:$0xff] %vm508, %v2127
      %2164 = vst.msk [vmem:[%s143 + $0x48] sm:$0xff] %vm508, %v2128
      %2165 = vst.msk [vmem:[%s143 + $0x50] sm:$0xff] %vm508, %v2129
      %2166 = vst.msk [vmem:[%s143 + $0x58] sm:$0xff] %vm508, %v2130
      %2167 = vst.msk [vmem:[%s143 + $0x60] sm:$0xff] %vm508, %v2131
      %2168 = vst.msk [vmem:[%s143 + $0x68] sm:$0xff] %vm508, %v2132
      %2169 = vst.msk [vmem:[%s143 + $0x70] sm:$0xff] %vm508, %v2133
      %2170 = vst.msk [vmem:[%s143 + $0x78] sm:$0xff] %vm508, %v2134
      %2171 = vst.msk [vmem:[%s143 + $0x80] sm:$0xff] %vm508, %v2135
      %2172 = vst.msk [vmem:[%s143 + $0x88] sm:$0xff] %vm508, %v2136
      %2173 = vst.msk [vmem:[%s143 + $0x90] sm:$0xff] %vm508, %v2137
      %2174 = vst.msk [vmem:[%s143 + $0x98] sm:$0xff] %vm508, %v2138
      %2175 = vst.msk [vmem:[%s143 + $0xa0] sm:$0xff] %vm508, %v2139
      %2176 = vst.msk [vmem:[%s143 + $0xa8] sm:$0xff] %vm508, %v2140
      %2177 = vst.msk [vmem:[%s143 + $0xb0] sm:$0xff] %vm508, %v2141
      %2178 = vst.msk [vmem:[%s143 + $0xb8] sm:$0xff] %vm508, %v2142
      %2179 = vst.msk [vmem:[%s143 + $0xc0] sm:$0xff] %vm508, %v2143
      %2180 = vst.msk [vmem:[%s143 + $0xc8] sm:$0xff] %vm508, %v2144
      %2181 = vst.msk [vmem:[%s143 + $0xd0] sm:$0xff] %vm508, %v2145
      %2182 = vst.msk [vmem:[%s143 + $0xd8] sm:$0xff] %vm508, %v2146
      %2183 = vst.msk [vmem:[%s143 + $0xe0] sm:$0xff] %vm508, %v2147
      %2184 = vst.msk [vmem:[%s143 + $0xe8] sm:$0xff] %vm508, %v2148
      %2185 = vst.msk [vmem:[%s143 + $0xf0] sm:$0xff] %vm508, %v2149
      %2186 = vst.msk [vmem:[%s143 + $0xf8] sm:$0xff] %vm508, %v2150
      %2187 = vst.msk [vmem:[%s143 + $0x100] sm:$0xff] %vm508, %v2151
      %2188 = vst.msk [vmem:[%s143 + $0x108] sm:$0xff] %vm508, %v2152
      %2189 = vst.msk [vmem:[%s143 + $0x110] sm:$0xff] %vm508, %v2153
      %2190 = vst.msk [vmem:[%s143 + $0x118] sm:$0xff] %vm508, %v2154
      %v2191 = vld [vmem:[%s138 + $0x8] sm:$0xe]
      %v2192 = vld [vmem:[%s138 + $0xc] sm:$0xf]
      %v2193 = vld [vmem:[%s138 + $0x10] sm:$0xf]
      %v2194 = vld [vmem:[%s138 + $0x14] sm:$0xf]
      %v2195 = vld [vmem:[%s138 + $0x18] sm:$0xf]
      %v2196 = vld [vmem:[%s138 + $0x1c] sm:$0xf]
      %v2197 = vld [vmem:[%s138 + $0x20] sm:$0xf]
      %v2198 = vld [vmem:[%s138 + $0x24] sm:$0xf]
      %v2199 = vld [vmem:[%s138 + $0x28] sm:$0xf]
      %v2200 = vld [vmem:[%s138 + $0x2c] sm:$0xf]
      %v2201 = vld [vmem:[%s138 + $0x30] sm:$0xf]
      %v2202 = vld [vmem:[%s138 + $0x34] sm:$0xf]
      %v2203 = vld [vmem:[%s138 + $0x38] sm:$0xf]
      %v2204 = vld [vmem:[%s138 + $0x3c] sm:$0xf]
      %v2205 = vld [vmem:[%s138 + $0x40] sm:$0xf]
      %v2206 = vld [vmem:[%s138 + $0x44] sm:$0xf]
      %v2207 = vld [vmem:[%s138 + $0x48] sm:$0xf]
      %v2208 = vld [vmem:[%s138 + $0x4c] sm:$0xf]
      %v2209 = vld [vmem:[%s138 + $0x50] sm:$0xf]
      %v2210 = vld [vmem:[%s138 + $0x54] sm:$0xf]
      %v2211 = vld [vmem:[%s138 + $0x58] sm:$0xf]
      %v2212 = vld [vmem:[%s138 + $0x5c] sm:$0xf]
      %v2213 = vld [vmem:[%s138 + $0x60] sm:$0xf]
      %v2214 = vld [vmem:[%s138 + $0x64] sm:$0xf]
      %v2215 = vld [vmem:[%s138 + $0x68] sm:$0xf]
      %v2216 = vld [vmem:[%s138 + $0x6c] sm:$0xf]
      %v2217 = vld [vmem:[%s138 + $0x70] sm:$0xf]
      %v2218 = vld [vmem:[%s138 + $0x74] sm:$0xf]
      %v2219 = vld [vmem:[%s138 + $0x78] sm:$0xf]
      %v2220 = vld [vmem:[%s138 + $0x7c] sm:$0xf]
      %v2221 = vld [vmem:[%s138 + $0x80] sm:$0xf]
      %v2222 = vld [vmem:[%s138 + $0x84] sm:$0xf]
      %v2223 = vld [vmem:[%s138 + $0x88] sm:$0xf]
      %v2224 = vld [vmem:[%s138 + $0x8c] sm:$0xf]
      %v2225 = vld [vmem:[%s138 + $0x90] sm:$0xf]
      %v2226 = vld [vmem:[%s138 + $0x94] sm:$0xf]
      %v2227 = vld [vmem:[%s138 + $0x98] sm:$0x3]
      %s2228 = scalar_lea.vmem %s1, 8
      %v2229 = vld [vmem:[%s2228] sm:$0x3]
      %v2267 = vunpack.c.l.b16 %v2191
      %v2268 = vunpack.c.l.b16 %v2192
      %v2269 = vunpack.c.l.b16 %v2193
      %v2270 = vunpack.c.l.b16 %v2194
      %v2271 = vunpack.c.l.b16 %v2195
      %v2272 = vunpack.c.l.b16 %v2196
      %v2273 = vunpack.c.l.b16 %v2197
      %v2274 = vunpack.c.l.b16 %v2198
      %v2275 = vunpack.c.l.b16 %v2199
      %v2276 = vunpack.c.l.b16 %v2200
      %v2277 = vunpack.c.l.b16 %v2201
      %v2278 = vunpack.c.l.b16 %v2202
      %v2279 = vunpack.c.l.b16 %v2203
      %v2280 = vunpack.c.l.b16 %v2204
      %v2281 = vunpack.c.l.b16 %v2205
      %v2282 = vunpack.c.l.b16 %v2206
      %v2283 = vunpack.c.l.b16 %v2207
      %v2284 = vunpack.c.l.b16 %v2208
      %v2285 = vunpack.c.l.b16 %v2209
      %v2286 = vunpack.c.l.b16 %v2210
      %v2287 = vunpack.c.l.b16 %v2211
      %v2288 = vunpack.c.l.b16 %v2212
      %v2289 = vunpack.c.l.b16 %v2213
      %v2290 = vunpack.c.l.b16 %v2214
      %v2291 = vunpack.c.l.b16 %v2215
      %v2292 = vunpack.c.l.b16 %v2216
      %v2293 = vunpack.c.l.b16 %v2217
      %v2294 = vunpack.c.l.b16 %v2218
      %v2295 = vunpack.c.l.b16 %v2219
      %v2296 = vunpack.c.l.b16 %v2220
      %v2297 = vunpack.c.l.b16 %v2221
      %v2298 = vunpack.c.l.b16 %v2222
      %v2299 = vunpack.c.l.b16 %v2223
      %v2300 = vunpack.c.l.b16 %v2224
      %v2301 = vunpack.c.l.b16 %v2225
      %v2302 = vunpack.c.l.b16 %v2226
      %v2303 = vunpack.c.l.b16 %v2227
      %v2304 = vpack.c.b16 %v2268, %v2267
      %v2305 = vpack.c.b16 %v2270, %v2269
      %v2306 = vpack.c.b16 %v2272, %v2271
      %v2307 = vpack.c.b16 %v2274, %v2273
      %v2308 = vpack.c.b16 %v2276, %v2275
      %v2309 = vpack.c.b16 %v2278, %v2277
      %v2310 = vpack.c.b16 %v2280, %v2279
      %v2311 = vpack.c.b16 %v2282, %v2281
      %v2312 = vpack.c.b16 %v2284, %v2283
      %v2313 = vpack.c.b16 %v2286, %v2285
      %v2314 = vpack.c.b16 %v2288, %v2287
      %v2315 = vpack.c.b16 %v2290, %v2289
      %v2316 = vpack.c.b16 %v2292, %v2291
      %v2317 = vpack.c.b16 %v2294, %v2293
      %v2318 = vpack.c.b16 %v2296, %v2295
      %v2319 = vpack.c.b16 %v2298, %v2297
      %v2320 = vpack.c.b16 %v2300, %v2299
      %v2321 = vpack.c.b16 %v2302, %v2301
      %v2322 = vpack.c.b16 %v2303, %v2303
      %vm2323 = vsmask.f32 6400
      %v2325 = vshrl.u32 %v2304, 16
      %v2327 = vrot.slane %v2325, 1
      %v2328 = vshll.u32 %v2304, 16
      %v2330 = vrot.slane %v2328, 2
      %v2331 = vor.u32 %v2327, %v2330
      %v2333 = vshrl.u32 %v2305, 16
      %v2335 = vrot.slane %v2333, 1
      %v2336 = vshll.u32 %v2305, 16
      %v2338 = vrot.slane %v2336, 2
      %v2339 = vor.u32 %v2335, %v2338
      %v2340 = vsel %vm2323, %v2331, %v2339
      %v2342 = vshrl.u32 %v2306, 16
      %v2344 = vrot.slane %v2342, 1
      %v2345 = vshll.u32 %v2306, 16
      %v2347 = vrot.slane %v2345, 2
      %v2348 = vor.u32 %v2344, %v2347
      %v2349 = vsel %vm2323, %v2339, %v2348
      %v2351 = vshrl.u32 %v2307, 16
      %v2353 = vrot.slane %v2351, 1
      %v2354 = vshll.u32 %v2307, 16
      %v2356 = vrot.slane %v2354, 2
      %v2357 = vor.u32 %v2353, %v2356
      %v2358 = vsel %vm2323, %v2348, %v2357
      %v2360 = vshrl.u32 %v2308, 16
      %v2362 = vrot.slane %v2360, 1
      %v2363 = vshll.u32 %v2308, 16
      %v2365 = vrot.slane %v2363, 2
      %v2366 = vor.u32 %v2362, %v2365
      %v2367 = vsel %vm2323, %v2357, %v2366
      %v2369 = vshrl.u32 %v2309, 16
      %v2371 = vrot.slane %v2369, 1
      %v2372 = vshll.u32 %v2309, 16
      %v2374 = vrot.slane %v2372, 2
      %v2375 = vor.u32 %v2371, %v2374
      %v2376 = vsel %vm2323, %v2366, %v2375
      %v2378 = vshrl.u32 %v2310, 16
      %v2380 = vrot.slane %v2378, 1
      %v2381 = vshll.u32 %v2310, 16
      %v2383 = vrot.slane %v2381, 2
      %v2384 = vor.u32 %v2380, %v2383
      %v2385 = vsel %vm2323, %v2375, %v2384
      %v2387 = vshrl.u32 %v2311, 16
      %v2389 = vrot.slane %v2387, 1
      %v2390 = vshll.u32 %v2311, 16
      %v2392 = vrot.slane %v2390, 2
      %v2393 = vor.u32 %v2389, %v2392
      %v2394 = vsel %vm2323, %v2384, %v2393
      %v2396 = vshrl.u32 %v2312, 16
      %v2398 = vrot.slane %v2396, 1
      %v2399 = vshll.u32 %v2312, 16
      %v2401 = vrot.slane %v2399, 2
      %v2402 = vor.u32 %v2398, %v2401
      %v2403 = vsel %vm2323, %v2393, %v2402
      %v2405 = vshrl.u32 %v2313, 16
      %v2407 = vrot.slane %v2405, 1
      %v2408 = vshll.u32 %v2313, 16
      %v2410 = vrot.slane %v2408, 2
      %v2411 = vor.u32 %v2407, %v2410
      %v2412 = vsel %vm2323, %v2402, %v2411
      %v2414 = vshrl.u32 %v2314, 16
      %v2416 = vrot.slane %v2414, 1
      %v2417 = vshll.u32 %v2314, 16
      %v2419 = vrot.slane %v2417, 2
      %v2420 = vor.u32 %v2416, %v2419
      %v2421 = vsel %vm2323, %v2411, %v2420
      %v2423 = vshrl.u32 %v2315, 16
      %v2425 = vrot.slane %v2423, 1
      %v2426 = vshll.u32 %v2315, 16
      %v2428 = vrot.slane %v2426, 2
      %v2429 = vor.u32 %v2425, %v2428
      %v2430 = vsel %vm2323, %v2420, %v2429
      %v2432 = vshrl.u32 %v2316, 16
      %v2434 = vrot.slane %v2432, 1
      %v2435 = vshll.u32 %v2316, 16
      %v2437 = vrot.slane %v2435, 2
      %v2438 = vor.u32 %v2434, %v2437
      %v2439 = vsel %vm2323, %v2429, %v2438
      %v2441 = vshrl.u32 %v2317, 16
      %v2443 = vrot.slane %v2441, 1
      %v2444 = vshll.u32 %v2317, 16
      %v2446 = vrot.slane %v2444, 2
      %v2447 = vor.u32 %v2443, %v2446
      %v2448 = vsel %vm2323, %v2438, %v2447
      %v2450 = vshrl.u32 %v2318, 16
      %v2452 = vrot.slane %v2450, 1
      %v2453 = vshll.u32 %v2318, 16
      %v2455 = vrot.slane %v2453, 2
      %v2456 = vor.u32 %v2452, %v2455
      %v2457 = vsel %vm2323, %v2447, %v2456
      %v2459 = vshrl.u32 %v2319, 16
      %v2461 = vrot.slane %v2459, 1
      %v2462 = vshll.u32 %v2319, 16
      %v2464 = vrot.slane %v2462, 2
      %v2465 = vor.u32 %v2461, %v2464
      %v2466 = vsel %vm2323, %v2456, %v2465
      %v2468 = vshrl.u32 %v2320, 16
      %v2470 = vrot.slane %v2468, 1
      %v2471 = vshll.u32 %v2320, 16
      %v2473 = vrot.slane %v2471, 2
      %v2474 = vor.u32 %v2470, %v2473
      %v2475 = vsel %vm2323, %v2465, %v2474
      %v2477 = vshrl.u32 %v2321, 16
      %v2479 = vrot.slane %v2477, 1
      %v2480 = vshll.u32 %v2321, 16
      %v2482 = vrot.slane %v2480, 2
      %v2483 = vor.u32 %v2479, %v2482
      %v2484 = vsel %vm2323, %v2474, %v2483
      %v2486 = vshrl.u32 %v2322, 16
      %v2488 = vrot.slane %v2486, 1
      %v2489 = vshll.u32 %v2322, 16
      %v2491 = vrot.slane %v2489, 2
      %v2492 = vor.u32 %v2488, %v2491
      %v2493 = vsel %vm2323, %v2483, %v2492
      %v2495 = vsel %vm272, %v2340, 0
      %v2498 = vsel %vm272, %v2349, 0
      %v2501 = vsel %vm272, %v2358, 0
      %v2504 = vsel %vm272, %v2367, 0
      %v2507 = vsel %vm272, %v2376, 0
      %v2510 = vsel %vm272, %v2385, 0
      %v2513 = vsel %vm272, %v2394, 0
      %v2516 = vsel %vm272, %v2403, 0
      %v2519 = vsel %vm272, %v2412, 0
      %v2522 = vsel %vm272, %v2421, 0
      %v2525 = vsel %vm272, %v2430, 0
      %v2528 = vsel %vm272, %v2439, 0
      %v2531 = vsel %vm272, %v2448, 0
      %v2534 = vsel %vm272, %v2457, 0
      %v2537 = vsel %vm272, %v2466, 0
      %v2540 = vsel %vm272, %v2475, 0
      %v2543 = vsel %vm272, %v2484, 0
      %v2546 = vsel %vm272, %v2493, 0
      %v2549 = vsel %vm327, %v2229, 0
      %2551 = vmatprep.subr.bf16.mxu0 0
      %2552 = vmatpush1.bf16.msra.mxu0 %v2549
      %2553 = vmatprep.subr.bf16.mxu0 0
      %2554 = vmatpush1.bf16.msra.mxu0 0
      %2555 = vmatprep.subr.bf16.mxu0 0
      %2556 = vmatpush1.bf16.msra.mxu0 0
      %2557 = vmatprep.subr.bf16.mxu0 0
      %2558 = vmatpush1.bf16.msra.mxu0 0
      %2559 = vmatprep.subr.bf16.mxu0 0
      %2560 = vmatpush1.bf16.msra.mxu0 0
      %2561 = vmatprep.subr.bf16.mxu0 0
      %2562 = vmatpush1.bf16.msra.mxu0 0
      %2563 = vmatprep.subr.bf16.mxu0 0
      %2564 = vmatpush1.bf16.msra.mxu0 0
      %2565 = vmatprep.subr.bf16.mxu0 0
      %2566 = vmatpush1.bf16.msra.mxu0 0
      %2567 = vmatprep.subr.bf16.mxu0 0
      %2568 = vmatpush1.bf16.msra.mxu0 0
      %2569 = vmatprep.subr.bf16.mxu0 0
      %2570 = vmatpush1.bf16.msra.mxu0 0
      %2571 = vmatprep.subr.bf16.mxu0 0
      %2572 = vmatpush1.bf16.msra.mxu0 0
      %2573 = vmatprep.subr.bf16.mxu0 0
      %2574 = vmatpush1.bf16.msra.mxu0 0
      %2575 = vmatprep.subr.bf16.mxu0 0
      %2576 = vmatpush1.bf16.msra.mxu0 0
      %2577 = vmatprep.subr.bf16.mxu0 0
      %2578 = vmatpush1.bf16.msra.mxu0 0
      %2579 = vmatprep.subr.bf16.mxu0 0
      %2580 = vmatpush1.bf16.msra.mxu0 0
      %2581 = vmatprep.subr.bf16.mxu0 0
      %2582 = vmatpush1.bf16.msra.mxu0 0
      %2583 = vmatprep.mubr.bf16.mxu0 0
      %2584 = vmatmul.mubr.bf16.gmra.mrb[0].mxu0 %v2495
      %v2585 = vpop.f32.mrb[0].mxu0
      %v2586 = vadd.f32 0.0, %v2585
      %v2587 = vpop.f32.mrb[0].mxu0
      %v2588 = vpop.f32.mrb[0].mxu0
      %v2589 = vadd.f32 0.0, %v2588
      %v2590 = vpop.f32.mrb[0].mxu0
      %2591 = vmatprep.mubr.bf16.mxu0 0
      %2592 = vmatmul.mubr.bf16.gmra.mrb[0].mxu0 %v2498
      %v2593 = vpop.f32.mrb[0].mxu0
      %v2594 = vadd.f32 0.0, %v2593
      %v2595 = vpop.f32.mrb[0].mxu0
      %v2596 = vpop.f32.mrb[0].mxu0
      %v2597 = vadd.f32 0.0, %v2596
      %v2598 = vpop.f32.mrb[0].mxu0
      %2599 = vmatprep.mubr.bf16.mxu0 0
      %2600 = vmatmul.mubr.bf16.gmra.mrb[0].mxu0 %v2501
      %v2601 = vpop.f32.mrb[0].mxu0
      %v2602 = vadd.f32 0.0, %v2601
      %v2603 = vpop.f32.mrb[0].mxu0
      %v2604 = vpop.f32.mrb[0].mxu0
      %v2605 = vadd.f32 0.0, %v2604
      %v2606 = vpop.f32.mrb[0].mxu0
      %2607 = vmatprep.mubr.bf16.mxu0 0
      %2608 = vmatmul.mubr.bf16.gmra.mrb[0].mxu0 %v2504
      %v2609 = vpop.f32.mrb[0].mxu0
      %v2610 = vadd.f32 0.0, %v2609
      %v2611 = vpop.f32.mrb[0].mxu0
      %v2612 = vpop.f32.mrb[0].mxu0
      %v2613 = vadd.f32 0.0, %v2612
      %v2614 = vpop.f32.mrb[0].mxu0
      %2615 = vmatprep.mubr.bf16.mxu0 0
      %2616 = vmatmul.mubr.bf16.gmra.mrb[0].mxu0 %v2507
      %v2617 = vpop.f32.mrb[0].mxu0
      %v2618 = vadd.f32 0.0, %v2617
      %v2619 = vpop.f32.mrb[0].mxu0
      %v2620 = vpop.f32.mrb[0].mxu0
      %v2621 = vadd.f32 0.0, %v2620
      %v2622 = vpop.f32.mrb[0].mxu0
      %2623 = vmatprep.mubr.bf16.mxu0 0
      %2624 = vmatmul.mubr.bf16.gmra.mrb[0].mxu0 %v2510
      %v2625 = vpop.f32.mrb[0].mxu0
      %v2626 = vadd.f32 0.0, %v2625
      %v2627 = vpop.f32.mrb[0].mxu0
      %v2628 = vpop.f32.mrb[0].mxu0
      %v2629 = vadd.f32 0.0, %v2628
      %v2630 = vpop.f32.mrb[0].mxu0
      %2631 = vmatprep.mubr.bf16.mxu0 0
      %2632 = vmatmul.mubr.bf16.gmra.mrb[0].mxu0 %v2513
      %v2633 = vpop.f32.mrb[0].mxu0
      %v2634 = vadd.f32 0.0, %v2633
      %v2635 = vpop.f32.mrb[0].mxu0
      %v2636 = vpop.f32.mrb[0].mxu0
      %v2637 = vadd.f32 0.0, %v2636
      %v2638 = vpop.f32.mrb[0].mxu0
      %2639 = vmatprep.mubr.bf16.mxu0 0
      %2640 = vmatmul.mubr.bf16.gmra.mrb[0].mxu0 %v2516
      %v2641 = vpop.f32.mrb[0].mxu0
      %v2642 = vadd.f32 0.0, %v2641
      %v2643 = vpop.f32.mrb[0].mxu0
      %v2644 = vpop.f32.mrb[0].mxu0
      %v2645 = vadd.f32 0.0, %v2644
      %v2646 = vpop.f32.mrb[0].mxu0
      %2647 = vmatprep.mubr.bf16.mxu0 0
      %2648 = vmatmul.mubr.bf16.gmra.mrb[0].mxu0 %v2519
      %v2649 = vpop.f32.mrb[0].mxu0
      %v2650 = vadd.f32 0.0, %v2649
      %v2651 = vpop.f32.mrb[0].mxu0
      %v2652 = vpop.f32.mrb[0].mxu0
      %v2653 = vadd.f32 0.0, %v2652
      %v2654 = vpop.f32.mrb[0].mxu0
      %2655 = vmatprep.mubr.bf16.mxu0 0
      %2656 = vmatmul.mubr.bf16.gmra.mrb[0].mxu0 %v2522
      %v2657 = vpop.f32.mrb[0].mxu0
      %v2658 = vadd.f32 0.0, %v2657
      %v2659 = vpop.f32.mrb[0].mxu0
      %v2660 = vpop.f32.mrb[0].mxu0
      %v2661 = vadd.f32 0.0, %v2660
      %v2662 = vpop.f32.mrb[0].mxu0
      %2663 = vmatprep.mubr.bf16.mxu0 0
      %2664 = vmatmul.mubr.bf16.gmra.mrb[0].mxu0 %v2525
      %v2665 = vpop.f32.mrb[0].mxu0
      %v2666 = vadd.f32 0.0, %v2665
      %v2667 = vpop.f32.mrb[0].mxu0
      %v2668 = vpop.f32.mrb[0].mxu0
      %v2669 = vadd.f32 0.0, %v2668
      %v2670 = vpop.f32.mrb[0].mxu0
      %2671 = vmatprep.mubr.bf16.mxu0 0
      %2672 = vmatmul.mubr.bf16.gmra.mrb[0].mxu0 %v2528
      %v2673 = vpop.f32.mrb[0].mxu0
      %v2674 = vadd.f32 0.0, %v2673
      %v2675 = vpop.f32.mrb[0].mxu0
      %v2676 = vpop.f32.mrb[0].mxu0
      %v2677 = vadd.f32 0.0, %v2676
      %v2678 = vpop.f32.mrb[0].mxu0
      %2679 = vmatprep.mubr.bf16.mxu0 0
      %2680 = vmatmul.mubr.bf16.gmra.mrb[0].mxu0 %v2531
      %v2681 = vpop.f32.mrb[0].mxu0
      %v2682 = vadd.f32 0.0, %v2681
      %v2683 = vpop.f32.mrb[0].mxu0
      %v2684 = vpop.f32.mrb[0].mxu0
      %v2685 = vadd.f32 0.0, %v2684
      %v2686 = vpop.f32.mrb[0].mxu0
      %2687 = vmatprep.mubr.bf16.mxu0 0
      %2688 = vmatmul.mubr.bf16.gmra.mrb[0].mxu0 %v2534
      %v2689 = vpop.f32.mrb[0].mxu0
      %v2690 = vadd.f32 0.0, %v2689
      %v2691 = vpop.f32.mrb[0].mxu0
      %v2692 = vpop.f32.mrb[0].mxu0
      %v2693 = vadd.f32 0.0, %v2692
      %v2694 = vpop.f32.mrb[0].mxu0
      %2695 = vmatprep.mubr.bf16.mxu0 0
      %2696 = vmatmul.mubr.bf16.gmra.mrb[0].mxu0 %v2537
      %v2697 = vpop.f32.mrb[0].mxu0
      %v2698 = vadd.f32 0.0, %v2697
      %v2699 = vpop.f32.mrb[0].mxu0
      %v2700 = vpop.f32.mrb[0].mxu0
      %v2701 = vadd.f32 0.0, %v2700
      %v2702 = vpop.f32.mrb[0].mxu0
      %2703 = vmatprep.mubr.bf16.mxu0 0
      %2704 = vmatmul.mubr.bf16.gmra.mrb[0].mxu0 %v2540
      %v2705 = vpop.f32.mrb[0].mxu0
      %v2706 = vadd.f32 0.0, %v2705
      %v2707 = vpop.f32.mrb[0].mxu0
      %v2708 = vpop.f32.mrb[0].mxu0
      %v2709 = vadd.f32 0.0, %v2708
      %v2710 = vpop.f32.mrb[0].mxu0
      %2711 = vmatprep.mubr.bf16.mxu0 0
      %2712 = vmatmul.mubr.bf16.gmra.mrb[0].mxu0 %v2543
      %v2713 = vpop.f32.mrb[0].mxu0
      %v2714 = vadd.f32 0.0, %v2713
      %v2715 = vpop.f32.mrb[0].mxu0
      %v2716 = vpop.f32.mrb[0].mxu0
      %v2717 = vadd.f32 0.0, %v2716
      %v2718 = vpop.f32.mrb[0].mxu0
      %2719 = vmatprep.mubr.bf16.mxu0 0
      %2720 = vmatmul.mubr.bf16.gmra.mrb[0].mxu0 %v2546
      %v2721 = vpop.f32.mrb[0].mxu0
      %v2722 = vadd.f32 0.0, %v2721
      %v2723 = vpop.f32.mrb[0].mxu0
      %v2724 = vpop.f32.mrb[0].mxu0
      %v2725 = vadd.f32 0.0, %v2724
      %v2726 = vpop.f32.mrb[0].mxu0
      %2727 = vdwg.mxu0
      %v2728 = vld [vmem:[%s143] sm:$0xff]
      %v2729 = vld [vmem:[%s143 + $0x8] sm:$0xff]
      %v2730 = vld [vmem:[%s143 + $0x10] sm:$0xff]
      %v2731 = vld [vmem:[%s143 + $0x18] sm:$0xff]
      %v2732 = vld [vmem:[%s143 + $0x20] sm:$0xff]
      %v2733 = vld [vmem:[%s143 + $0x28] sm:$0xff]
      %v2734 = vld [vmem:[%s143 + $0x30] sm:$0xff]
      %v2735 = vld [vmem:[%s143 + $0x38] sm:$0xff]
      %v2736 = vld [vmem:[%s143 + $0x40] sm:$0xff]
      %v2737 = vld [vmem:[%s143 + $0x48] sm:$0xff]
      %v2738 = vld [vmem:[%s143 + $0x50] sm:$0xff]
      %v2739 = vld [vmem:[%s143 + $0x58] sm:$0xff]
      %v2740 = vld [vmem:[%s143 + $0x60] sm:$0xff]
      %v2741 = vld [vmem:[%s143 + $0x68] sm:$0xff]
      %v2742 = vld [vmem:[%s143 + $0x70] sm:$0xff]
      %v2743 = vld [vmem:[%s143 + $0x78] sm:$0xff]
      %v2744 = vld [vmem:[%s143 + $0x80] sm:$0xff]
      %v2745 = vld [vmem:[%s143 + $0x88] sm:$0xff]
      %v2746 = vld [vmem:[%s143 + $0x90] sm:$0xff]
      %v2747 = vld [vmem:[%s143 + $0x98] sm:$0xff]
      %v2748 = vld [vmem:[%s143 + $0xa0] sm:$0xff]
      %v2749 = vld [vmem:[%s143 + $0xa8] sm:$0xff]
      %v2750 = vld [vmem:[%s143 + $0xb0] sm:$0xff]
      %v2751 = vld [vmem:[%s143 + $0xb8] sm:$0xff]
      %v2752 = vld [vmem:[%s143 + $0xc0] sm:$0xff]
      %v2753 = vld [vmem:[%s143 + $0xc8] sm:$0xff]
      %v2754 = vld [vmem:[%s143 + $0xd0] sm:$0xff]
      %v2755 = vld [vmem:[%s143 + $0xd8] sm:$0xff]
      %v2756 = vld [vmem:[%s143 + $0xe0] sm:$0xff]
      %v2757 = vld [vmem:[%s143 + $0xe8] sm:$0xff]
      %v2758 = vld [vmem:[%s143 + $0xf0] sm:$0xff]
      %v2759 = vld [vmem:[%s143 + $0xf8] sm:$0xff]
      %v2760 = vld [vmem:[%s143 + $0x100] sm:$0xff]
      %v2761 = vld [vmem:[%s143 + $0x108] sm:$0xff]
      %v2762 = vld [vmem:[%s143 + $0x110] sm:$0xff]
      %v2763 = vld [vmem:[%s143 + $0x118] sm:$0xff]
      %v2764 = vadd.f32 %v2728, %v2586
      %v2765 = vadd.f32 %v2729, %v2589
      %v2766 = vadd.f32 %v2730, %v2594
      %v2767 = vadd.f32 %v2731, %v2597
      %v2768 = vadd.f32 %v2732, %v2602
      %v2769 = vadd.f32 %v2733, %v2605
      %v2770 = vadd.f32 %v2734, %v2610
      %v2771 = vadd.f32 %v2735, %v2613
      %v2772 = vadd.f32 %v2736, %v2618
      %v2773 = vadd.f32 %v2737, %v2621
      %v2774 = vadd.f32 %v2738, %v2626
      %v2775 = vadd.f32 %v2739, %v2629
      %v2776 = vadd.f32 %v2740, %v2634
      %v2777 = vadd.f32 %v2741, %v2637
      %v2778 = vadd.f32 %v2742, %v2642
      %v2779 = vadd.f32 %v2743, %v2645
      %v2780 = vadd.f32 %v2744, %v2650
      %v2781 = vadd.f32 %v2745, %v2653
      %v2782 = vadd.f32 %v2746, %v2658
      %v2783 = vadd.f32 %v2747, %v2661
      %v2784 = vadd.f32 %v2748, %v2666
      %v2785 = vadd.f32 %v2749, %v2669
      %v2786 = vadd.f32 %v2750, %v2674
      %v2787 = vadd.f32 %v2751, %v2677
      %v2788 = vadd.f32 %v2752, %v2682
      %v2789 = vadd.f32 %v2753, %v2685
      %v2790 = vadd.f32 %v2754, %v2690
      %v2791 = vadd.f32 %v2755, %v2693
      %v2792 = vadd.f32 %v2756, %v2698
      %v2793 = vadd.f32 %v2757, %v2701
      %v2794 = vadd.f32 %v2758, %v2706
      %v2795 = vadd.f32 %v2759, %v2709
      %v2796 = vadd.f32 %v2760, %v2714
      %v2797 = vadd.f32 %v2761, %v2717
      %v2798 = vadd.f32 %v2762, %v2722
      %v2799 = vadd.f32 %v2763, %v2725
      %2800 = vst.msk [vmem:[%s143] sm:$0xff] %vm508, %v2764
      %2801 = vst.msk [vmem:[%s143 + $0x8] sm:$0xff] %vm508, %v2765
      %2802 = vst.msk [vmem:[%s143 + $0x10] sm:$0xff] %vm508, %v2766
      %2803 = vst.msk [vmem:[%s143 + $0x18] sm:$0xff] %vm508, %v2767
      %2804 = vst.msk [vmem:[%s143 + $0x20] sm:$0xff] %vm508, %v2768
      %2805 = vst.msk [vmem:[%s143 + $0x28] sm:$0xff] %vm508, %v2769
      %2806 = vst.msk [vmem:[%s143 + $0x30] sm:$0xff] %vm508, %v2770
      %2807 = vst.msk [vmem:[%s143 + $0x38] sm:$0xff] %vm508, %v2771
      %2808 = vst.msk [vmem:[%s143 + $0x40] sm:$0xff] %vm508, %v2772
      %2809 = vst.msk [vmem:[%s143 + $0x48] sm:$0xff] %vm508, %v2773
      %2810 = vst.msk [vmem:[%s143 + $0x50] sm:$0xff] %vm508, %v2774
      %2811 = vst.msk [vmem:[%s143 + $0x58] sm:$0xff] %vm508, %v2775
      %2812 = vst.msk [vmem:[%s143 + $0x60] sm:$0xff] %vm508, %v2776
      %2813 = vst.msk [vmem:[%s143 + $0x68] sm:$0xff] %vm508, %v2777
      %2814 = vst.msk [vmem:[%s143 + $0x70] sm:$0xff] %vm508, %v2778
      %2815 = vst.msk [vmem:[%s143 + $0x78] sm:$0xff] %vm508, %v2779
      %2816 = vst.msk [vmem:[%s143 + $0x80] sm:$0xff] %vm508, %v2780
      %2817 = vst.msk [vmem:[%s143 + $0x88] sm:$0xff] %vm508, %v2781
      %2818 = vst.msk [vmem:[%s143 + $0x90] sm:$0xff] %vm508, %v2782
      %2819 = vst.msk [vmem:[%s143 + $0x98] sm:$0xff] %vm508, %v2783
      %2820 = vst.msk [vmem:[%s143 + $0xa0] sm:$0xff] %vm508, %v2784
      %2821 = vst.msk [vmem:[%s143 + $0xa8] sm:$0xff] %vm508, %v2785
      %2822 = vst.msk [vmem:[%s143 + $0xb0] sm:$0xff] %vm508, %v2786
      %2823 = vst.msk [vmem:[%s143 + $0xb8] sm:$0xff] %vm508, %v2787
      %2824 = vst.msk [vmem:[%s143 + $0xc0] sm:$0xff] %vm508, %v2788
      %2825 = vst.msk [vmem:[%s143 + $0xc8] sm:$0xff] %vm508, %v2789
      %2826 = vst.msk [vmem:[%s143 + $0xd0] sm:$0xff] %vm508, %v2790
      %2827 = vst.msk [vmem:[%s143 + $0xd8] sm:$0xff] %vm508, %v2791
      %2828 = vst.msk [vmem:[%s143 + $0xe0] sm:$0xff] %vm508, %v2792
      %2829 = vst.msk [vmem:[%s143 + $0xe8] sm:$0xff] %vm508, %v2793
      %2830 = vst.msk [vmem:[%s143 + $0xf0] sm:$0xff] %vm508, %v2794
      %2831 = vst.msk [vmem:[%s143 + $0xf8] sm:$0xff] %vm508, %v2795
      %2832 = vst.msk [vmem:[%s143 + $0x100] sm:$0xff] %vm508, %v2796
      %2833 = vst.msk [vmem:[%s143 + $0x108] sm:$0xff] %vm508, %v2797
      %2834 = vst.msk [vmem:[%s143 + $0x110] sm:$0xff] %vm508, %v2798
      %2835 = vst.msk [vmem:[%s143 + $0x118] sm:$0xff] %vm508, %v2799
      %v2836 = vld [vmem:[%s138 + $0x8] sm:$0xc]
      %v2837 = vld [vmem:[%s138 + $0xc] sm:$0xf]
      %v2838 = vld [vmem:[%s138 + $0x10] sm:$0xf]
      %v2839 = vld [vmem:[%s138 + $0x14] sm:$0xf]
      %v2840 = vld [vmem:[%s138 + $0x18] sm:$0xf]
      %v2841 = vld [vmem:[%s138 + $0x1c] sm:$0xf]
      %v2842 = vld [vmem:[%s138 + $0x20] sm:$0xf]
      %v2843 = vld [vmem:[%s138 + $0x24] sm:$0xf]
      %v2844 = vld [vmem:[%s138 + $0x28] sm:$0xf]
      %v2845 = vld [vmem:[%s138 + $0x2c] sm:$0xf]
      %v2846 = vld [vmem:[%s138 + $0x30] sm:$0xf]
      %v2847 = vld [vmem:[%s138 + $0x34] sm:$0xf]
      %v2848 = vld [vmem:[%s138 + $0x38] sm:$0xf]
      %v2849 = vld [vmem:[%s138 + $0x3c] sm:$0xf]
      %v2850 = vld [vmem:[%s138 + $0x40] sm:$0xf]
      %v2851 = vld [vmem:[%s138 + $0x44] sm:$0xf]
      %v2852 = vld [vmem:[%s138 + $0x48] sm:$0xf]
      %v2853 = vld [vmem:[%s138 + $0x4c] sm:$0xf]
      %v2854 = vld [vmem:[%s138 + $0x50] sm:$0xf]
      %v2855 = vld [vmem:[%s138 + $0x54] sm:$0xf]
      %v2856 = vld [vmem:[%s138 + $0x58] sm:$0xf]
      %v2857 = vld [vmem:[%s138 + $0x5c] sm:$0xf]
      %v2858 = vld [vmem:[%s138 + $0x60] sm:$0xf]
      %v2859 = vld [vmem:[%s138 + $0x64] sm:$0xf]
      %v2860 = vld [vmem:[%s138 + $0x68] sm:$0xf]
      %v2861 = vld [vmem:[%s138 + $0x6c] sm:$0xf]
      %v2862 = vld [vmem:[%s138 + $0x70] sm:$0xf]
      %v2863 = vld [vmem:[%s138 + $0x74] sm:$0xf]
      %v2864 = vld [vmem:[%s138 + $0x78] sm:$0xf]
      %v2865 = vld [vmem:[%s138 + $0x7c] sm:$0xf]
      %v2866 = vld [vmem:[%s138 + $0x80] sm:$0xf]
      %v2867 = vld [vmem:[%s138 + $0x84] sm:$0xf]
      %v2868 = vld [vmem:[%s138 + $0x88] sm:$0xf]
      %v2869 = vld [vmem:[%s138 + $0x8c] sm:$0xf]
      %v2870 = vld [vmem:[%s138 + $0x90] sm:$0xf]
      %v2871 = vld [vmem:[%s138 + $0x94] sm:$0xf]
      %v2872 = vld [vmem:[%s138 + $0x98] sm:$0x3]
      %s2873 = scalar_lea.vmem %s1, 10
      %v2874 = vld [vmem:[%s2873] sm:$0x3]
      %v2912 = vunpack.c.l.b16 %v2836
      %v2913 = vunpack.c.l.b16 %v2837
      %v2914 = vunpack.c.l.b16 %v2838
      %v2915 = vunpack.c.l.b16 %v2839
      %v2916 = vunpack.c.l.b16 %v2840
      %v2917 = vunpack.c.l.b16 %v2841
      %v2918 = vunpack.c.l.b16 %v2842
      %v2919 = vunpack.c.l.b16 %v2843
      %v2920 = vunpack.c.l.b16 %v2844
      %v2921 = vunpack.c.l.b16 %v2845
      %v2922 = vunpack.c.l.b16 %v2846
      %v2923 = vunpack.c.l.b16 %v2847
      %v2924 = vunpack.c.l.b16 %v2848
      %v2925 = vunpack.c.l.b16 %v2849
      %v2926 = vunpack.c.l.b16 %v2850
      %v2927 = vunpack.c.l.b16 %v2851
      %v2928 = vunpack.c.l.b16 %v2852
      %v2929 = vunpack.c.l.b16 %v2853
      %v2930 = vunpack.c.l.b16 %v2854
      %v2931 = vunpack.c.l.b16 %v2855
      %v2932 = vunpack.c.l.b16 %v2856
      %v2933 = vunpack.c.l.b16 %v2857
      %v2934 = vunpack.c.l.b16 %v2858
      %v2935 = vunpack.c.l.b16 %v2859
      %v2936 = vunpack.c.l.b16 %v2860
      %v2937 = vunpack.c.l.b16 %v2861
      %v2938 = vunpack.c.l.b16 %v2862
      %v2939 = vunpack.c.l.b16 %v2863
      %v2940 = vunpack.c.l.b16 %v2864
      %v2941 = vunpack.c.l.b16 %v2865
      %v2942 = vunpack.c.l.b16 %v2866
      %v2943 = vunpack.c.l.b16 %v2867
      %v2944 = vunpack.c.l.b16 %v2868
      %v2945 = vunpack.c.l.b16 %v2869
      %v2946 = vunpack.c.l.b16 %v2870
      %v2947 = vunpack.c.l.b16 %v2871
      %v2948 = vunpack.c.l.b16 %v2872
      %v2949 = vpack.c.b16 %v2913, %v2912
      %v2950 = vpack.c.b16 %v2915, %v2914
      %v2951 = vpack.c.b16 %v2917, %v2916
      %v2952 = vpack.c.b16 %v2919, %v2918
      %v2953 = vpack.c.b16 %v2921, %v2920
      %v2954 = vpack.c.b16 %v2923, %v2922
      %v2955 = vpack.c.b16 %v2925, %v2924
      %v2956 = vpack.c.b16 %v2927, %v2926
      %v2957 = vpack.c.b16 %v2929, %v2928
      %v2958 = vpack.c.b16 %v2931, %v2930
      %v2959 = vpack.c.b16 %v2933, %v2932
      %v2960 = vpack.c.b16 %v2935, %v2934
      %v2961 = vpack.c.b16 %v2937, %v2936
      %v2962 = vpack.c.b16 %v2939, %v2938
      %v2963 = vpack.c.b16 %v2941, %v2940
      %v2964 = vpack.c.b16 %v2943, %v2942
      %v2965 = vpack.c.b16 %v2945, %v2944
      %v2966 = vpack.c.b16 %v2947, %v2946
      %v2967 = vpack.c.b16 %v2948, %v2948
      %vm2968 = vcmask 1045504
      %v2969 = vrot.slane %v2949, 2
      %v2970 = vrot.slane %v2950, 2
      %v2971 = vsel %vm2968, %v2969, %v2970
      %v2972 = vrot.slane %v2951, 2
      %v2973 = vsel %vm2968, %v2970, %v2972
      %v2974 = vrot.slane %v2952, 2
      %v2975 = vsel %vm2968, %v2972, %v2974
      %v2976 = vrot.slane %v2953, 2
      %v2977 = vsel %vm2968, %v2974, %v2976
      %v2978 = vrot.slane %v2954, 2
      %v2979 = vsel %vm2968, %v2976, %v2978
      %v2980 = vrot.slane %v2955, 2
      %v2981 = vsel %vm2968, %v2978, %v2980
      %v2982 = vrot.slane %v2956, 2
      %v2983 = vsel %vm2968, %v2980, %v2982
      %v2984 = vrot.slane %v2957, 2
      %v2985 = vsel %vm2968, %v2982, %v2984
      %v2986 = vrot.slane %v2958, 2
      %v2987 = vsel %vm2968, %v2984, %v2986
      %v2988 = vrot.slane %v2959, 2
      %v2989 = vsel %vm2968, %v2986, %v2988
      %v2990 = vrot.slane %v2960, 2
      %v2991 = vsel %vm2968, %v2988, %v2990
      %v2992 = vrot.slane %v2961, 2
      %v2993 = vsel %vm2968, %v2990, %v2992
      %v2994 = vrot.slane %v2962, 2
      %v2995 = vsel %vm2968, %v2992, %v2994
      %v2996 = vrot.slane %v2963, 2
      %v2997 = vsel %vm2968, %v2994, %v2996
      %v2998 = vrot.slane %v2964, 2
      %v2999 = vsel %vm2968, %v2996, %v2998
      %v3000 = vrot.slane %v2965, 2
      %v3001 = vsel %vm2968, %v2998, %v3000
      %v3002 = vrot.slane %v2966, 2
      %v3003 = vsel %vm2968, %v3000, %v3002
      %v3004 = vrot.slane %v2967, 2
      %v3005 = vsel %vm2968, %v3002, %v3004
      %v3007 = vsel %vm272, %v2971, 0
      %v3010 = vsel %vm272, %v2973, 0
      %v3013 = vsel %vm272, %v2975, 0
      %v3016 = vsel %vm272, %v2977, 0
      %v3019 = vsel %vm272, %v2979, 0
      %v3022 = vsel %vm272, %v2981, 0
      %v3025 = vsel %vm272, %v2983, 0
      %v3028 = vsel %vm272, %v2985, 0
      %v3031 = vsel %vm272, %v2987, 0
      %v3034 = vsel %vm272, %v2989, 0
      %v3037 = vsel %vm272, %v2991, 0
      %v3040 = vsel %vm272, %v2993, 0
      %v3043 = vsel %vm272, %v2995, 0
      %v3046 = vsel %vm272, %v2997, 0
      %v3049 = vsel %vm272, %v2999, 0
      %v3052 = vsel %vm272, %v3001, 0
      %v3055 = vsel %vm272, %v3003, 0
      %v3058 = vsel %vm272, %v3005, 0
      %v3061 = vsel %vm327, %v2874, 0
      %3063 = vmatprep.subr.bf16.mxu0 0
      %3064 = vmatpush1.bf16.msra.mxu0 %v3061
      %3065 = vmatprep.subr.bf16.mxu0 0
      %3066 = vmatpush1.bf16.msra.mxu0 0
      %3067 = vmatprep.subr.bf16.mxu0 0
      %3068 = vmatpush1.bf16.msra.mxu0 0
      %3069 = vmatprep.subr.bf16.mxu0 0
      %3070 = vmatpush1.bf16.msra.mxu0 0
      %3071 = vmatprep.subr.bf16.mxu0 0
      %3072 = vmatpush1.bf16.msra.mxu0 0
      %3073 = vmatprep.subr.bf16.mxu0 0
      %3074 = vmatpush1.bf16.msra.mxu0 0
      %3075 = vmatprep.subr.bf16.mxu0 0
      %3076 = vmatpush1.bf16.msra.mxu0 0
      %3077 = vmatprep.subr.bf16.mxu0 0
      %3078 = vmatpush1.bf16.msra.mxu0 0
      %3079 = vmatprep.subr.bf16.mxu0 0
      %3080 = vmatpush1.bf16.msra.mxu0 0
      %3081 = vmatprep.subr.bf16.mxu0 0
      %3082 = vmatpush1.bf16.msra.mxu0 0
      %3083 = vmatprep.subr.bf16.mxu0 0
      %3084 = vmatpush1.bf16.msra.mxu0 0
      %3085 = vmatprep.subr.bf16.mxu0 0
      %3086 = vmatpush1.bf16.msra.mxu0 0
      %3087 = vmatprep.subr.bf16.mxu0 0
      %3088 = vmatpush1.bf16.msra.mxu0 0
      %3089 = vmatprep.subr.bf16.mxu0 0
      %3090 = vmatpush1.bf16.msra.mxu0 0
      %3091 = vmatprep.subr.bf16.mxu0 0
      %3092 = vmatpush1.bf16.msra.mxu0 0
      %3093 = vmatprep.subr.bf16.mxu0 0
      %3094 = vmatpush1.bf16.msra.mxu0 0
      %3095 = vmatprep.mubr.bf16.mxu0 0
      %3096 = vmatmul.mubr.bf16.gmra.mrb[0].mxu0 %v3007
      %v3097 = vpop.f32.mrb[0].mxu0
      %v3098 = vadd.f32 0.0, %v3097
      %v3099 = vpop.f32.mrb[0].mxu0
      %v3100 = vpop.f32.mrb[0].mxu0
      %v3101 = vadd.f32 0.0, %v3100
      %v3102 = vpop.f32.mrb[0].mxu0
      %3103 = vmatprep.mubr.bf16.mxu0 0
      %3104 = vmatmul.mubr.bf16.gmra.mrb[0].mxu0 %v3010
      %v3105 = vpop.f32.mrb[0].mxu0
      %v3106 = vadd.f32 0.0, %v3105
      %v3107 = vpop.f32.mrb[0].mxu0
      %v3108 = vpop.f32.mrb[0].mxu0
      %v3109 = vadd.f32 0.0, %v3108
      %v3110 = vpop.f32.mrb[0].mxu0
      %3111 = vmatprep.mubr.bf16.mxu0 0
      %3112 = vmatmul.mubr.bf16.gmra.mrb[0].mxu0 %v3013
      %v3113 = vpop.f32.mrb[0].mxu0
      %v3114 = vadd.f32 0.0, %v3113
      %v3115 = vpop.f32.mrb[0].mxu0
      %v3116 = vpop.f32.mrb[0].mxu0
      %v3117 = vadd.f32 0.0, %v3116
      %v3118 = vpop.f32.mrb[0].mxu0
      %3119 = vmatprep.mubr.bf16.mxu0 0
      %3120 = vmatmul.mubr.bf16.gmra.mrb[0].mxu0 %v3016
      %v3121 = vpop.f32.mrb[0].mxu0
      %v3122 = vadd.f32 0.0, %v3121
      %v3123 = vpop.f32.mrb[0].mxu0
      %v3124 = vpop.f32.mrb[0].mxu0
      %v3125 = vadd.f32 0.0, %v3124
      %v3126 = vpop.f32.mrb[0].mxu0
      %3127 = vmatprep.mubr.bf16.mxu0 0
      %3128 = vmatmul.mubr.bf16.gmra.mrb[0].mxu0 %v3019
      %v3129 = vpop.f32.mrb[0].mxu0
      %v3130 = vadd.f32 0.0, %v3129
      %v3131 = vpop.f32.mrb[0].mxu0
      %v3132 = vpop.f32.mrb[0].mxu0
      %v3133 = vadd.f32 0.0, %v3132
      %v3134 = vpop.f32.mrb[0].mxu0
      %3135 = vmatprep.mubr.bf16.mxu0 0
      %3136 = vmatmul.mubr.bf16.gmra.mrb[0].mxu0 %v3022
      %v3137 = vpop.f32.mrb[0].mxu0
      %v3138 = vadd.f32 0.0, %v3137
      %v3139 = vpop.f32.mrb[0].mxu0
      %v3140 = vpop.f32.mrb[0].mxu0
      %v3141 = vadd.f32 0.0, %v3140
      %v3142 = vpop.f32.mrb[0].mxu0
      %3143 = vmatprep.mubr.bf16.mxu0 0
      %3144 = vmatmul.mubr.bf16.gmra.mrb[0].mxu0 %v3025
      %v3145 = vpop.f32.mrb[0].mxu0
      %v3146 = vadd.f32 0.0, %v3145
      %v3147 = vpop.f32.mrb[0].mxu0
      %v3148 = vpop.f32.mrb[0].mxu0
      %v3149 = vadd.f32 0.0, %v3148
      %v3150 = vpop.f32.mrb[0].mxu0
      %3151 = vmatprep.mubr.bf16.mxu0 0
      %3152 = vmatmul.mubr.bf16.gmra.mrb[0].mxu0 %v3028
      %v3153 = vpop.f32.mrb[0].mxu0
      %v3154 = vadd.f32 0.0, %v3153
      %v3155 = vpop.f32.mrb[0].mxu0
      %v3156 = vpop.f32.mrb[0].mxu0
      %v3157 = vadd.f32 0.0, %v3156
      %v3158 = vpop.f32.mrb[0].mxu0
      %3159 = vmatprep.mubr.bf16.mxu0 0
      %3160 = vmatmul.mubr.bf16.gmra.mrb[0].mxu0 %v3031
      %v3161 = vpop.f32.mrb[0].mxu0
      %v3162 = vadd.f32 0.0, %v3161
      %v3163 = vpop.f32.mrb[0].mxu0
      %v3164 = vpop.f32.mrb[0].mxu0
      %v3165 = vadd.f32 0.0, %v3164
      %v3166 = vpop.f32.mrb[0].mxu0
      %3167 = vmatprep.mubr.bf16.mxu0 0
      %3168 = vmatmul.mubr.bf16.gmra.mrb[0].mxu0 %v3034
      %v3169 = vpop.f32.mrb[0].mxu0
      %v3170 = vadd.f32 0.0, %v3169
      %v3171 = vpop.f32.mrb[0].mxu0
      %v3172 = vpop.f32.mrb[0].mxu0
      %v3173 = vadd.f32 0.0, %v3172
      %v3174 = vpop.f32.mrb[0].mxu0
      %3175 = vmatprep.mubr.bf16.mxu0 0
      %3176 = vmatmul.mubr.bf16.gmra.mrb[0].mxu0 %v3037
      %v3177 = vpop.f32.mrb[0].mxu0
      %v3178 = vadd.f32 0.0, %v3177
      %v3179 = vpop.f32.mrb[0].mxu0
      %v3180 = vpop.f32.mrb[0].mxu0
      %v3181 = vadd.f32 0.0, %v3180
      %v3182 = vpop.f32.mrb[0].mxu0
      %3183 = vmatprep.mubr.bf16.mxu0 0
      %3184 = vmatmul.mubr.bf16.gmra.mrb[0].mxu0 %v3040
      %v3185 = vpop.f32.mrb[0].mxu0
      %v3186 = vadd.f32 0.0, %v3185
      %v3187 = vpop.f32.mrb[0].mxu0
      %v3188 = vpop.f32.mrb[0].mxu0
      %v3189 = vadd.f32 0.0, %v3188
      %v3190 = vpop.f32.mrb[0].mxu0
      %3191 = vmatprep.mubr.bf16.mxu0 0
      %3192 = vmatmul.mubr.bf16.gmra.mrb[0].mxu0 %v3043
      %v3193 = vpop.f32.mrb[0].mxu0
      %v3194 = vadd.f32 0.0, %v3193
      %v3195 = vpop.f32.mrb[0].mxu0
      %v3196 = vpop.f32.mrb[0].mxu0
      %v3197 = vadd.f32 0.0, %v3196
      %v3198 = vpop.f32.mrb[0].mxu0
      %3199 = vmatprep.mubr.bf16.mxu0 0
      %3200 = vmatmul.mubr.bf16.gmra.mrb[0].mxu0 %v3046
      %v3201 = vpop.f32.mrb[0].mxu0
      %v3202 = vadd.f32 0.0, %v3201
      %v3203 = vpop.f32.mrb[0].mxu0
      %v3204 = vpop.f32.mrb[0].mxu0
      %v3205 = vadd.f32 0.0, %v3204
      %v3206 = vpop.f32.mrb[0].mxu0
      %3207 = vmatprep.mubr.bf16.mxu0 0
      %3208 = vmatmul.mubr.bf16.gmra.mrb[0].mxu0 %v3049
      %v3209 = vpop.f32.mrb[0].mxu0
      %v3210 = vadd.f32 0.0, %v3209
      %v3211 = vpop.f32.mrb[0].mxu0
      %v3212 = vpop.f32.mrb[0].mxu0
      %v3213 = vadd.f32 0.0, %v3212
      %v3214 = vpop.f32.mrb[0].mxu0
      %3215 = vmatprep.mubr.bf16.mxu0 0
      %3216 = vmatmul.mubr.bf16.gmra.mrb[0].mxu0 %v3052
      %v3217 = vpop.f32.mrb[0].mxu0
      %v3218 = vadd.f32 0.0, %v3217
      %v3219 = vpop.f32.mrb[0].mxu0
      %v3220 = vpop.f32.mrb[0].mxu0
      %v3221 = vadd.f32 0.0, %v3220
      %v3222 = vpop.f32.mrb[0].mxu0
      %3223 = vmatprep.mubr.bf16.mxu0 0
      %3224 = vmatmul.mubr.bf16.gmra.mrb[0].mxu0 %v3055
      %v3225 = vpop.f32.mrb[0].mxu0
      %v3226 = vadd.f32 0.0, %v3225
      %v3227 = vpop.f32.mrb[0].mxu0
      %v3228 = vpop.f32.mrb[0].mxu0
      %v3229 = vadd.f32 0.0, %v3228
      %v3230 = vpop.f32.mrb[0].mxu0
      %3231 = vmatprep.mubr.bf16.mxu0 0
      %3232 = vmatmul.mubr.bf16.gmra.mrb[0].mxu0 %v3058
      %v3233 = vpop.f32.mrb[0].mxu0
      %v3234 = vadd.f32 0.0, %v3233
      %v3235 = vpop.f32.mrb[0].mxu0
      %v3236 = vpop.f32.mrb[0].mxu0
      %v3237 = vadd.f32 0.0, %v3236
      %v3238 = vpop.f32.mrb[0].mxu0
      %3239 = vdwg.mxu0
      %v3240 = vld [vmem:[%s143] sm:$0xff]
      %v3241 = vld [vmem:[%s143 + $0x8] sm:$0xff]
      %v3242 = vld [vmem:[%s143 + $0x10] sm:$0xff]
      %v3243 = vld [vmem:[%s143 + $0x18] sm:$0xff]
      %v3244 = vld [vmem:[%s143 + $0x20] sm:$0xff]
      %v3245 = vld [vmem:[%s143 + $0x28] sm:$0xff]
      %v3246 = vld [vmem:[%s143 + $0x30] sm:$0xff]
      %v3247 = vld [vmem:[%s143 + $0x38] sm:$0xff]
      %v3248 = vld [vmem:[%s143 + $0x40] sm:$0xff]
      %v3249 = vld [vmem:[%s143 + $0x48] sm:$0xff]
      %v3250 = vld [vmem:[%s143 + $0x50] sm:$0xff]
      %v3251 = vld [vmem:[%s143 + $0x58] sm:$0xff]
      %v3252 = vld [vmem:[%s143 + $0x60] sm:$0xff]
      %v3253 = vld [vmem:[%s143 + $0x68] sm:$0xff]
      %v3254 = vld [vmem:[%s143 + $0x70] sm:$0xff]
      %v3255 = vld [vmem:[%s143 + $0x78] sm:$0xff]
      %v3256 = vld [vmem:[%s143 + $0x80] sm:$0xff]
      %v3257 = vld [vmem:[%s143 + $0x88] sm:$0xff]
      %v3258 = vld [vmem:[%s143 + $0x90] sm:$0xff]
      %v3259 = vld [vmem:[%s143 + $0x98] sm:$0xff]
      %v3260 = vld [vmem:[%s143 + $0xa0] sm:$0xff]
      %v3261 = vld [vmem:[%s143 + $0xa8] sm:$0xff]
      %v3262 = vld [vmem:[%s143 + $0xb0] sm:$0xff]
      %v3263 = vld [vmem:[%s143 + $0xb8] sm:$0xff]
      %v3264 = vld [vmem:[%s143 + $0xc0] sm:$0xff]
      %v3265 = vld [vmem:[%s143 + $0xc8] sm:$0xff]
      %v3266 = vld [vmem:[%s143 + $0xd0] sm:$0xff]
      %v3267 = vld [vmem:[%s143 + $0xd8] sm:$0xff]
      %v3268 = vld [vmem:[%s143 + $0xe0] sm:$0xff]
      %v3269 = vld [vmem:[%s143 + $0xe8] sm:$0xff]
      %v3270 = vld [vmem:[%s143 + $0xf0] sm:$0xff]
      %v3271 = vld [vmem:[%s143 + $0xf8] sm:$0xff]
      %v3272 = vld [vmem:[%s143 + $0x100] sm:$0xff]
      %v3273 = vld [vmem:[%s143 + $0x108] sm:$0xff]
      %v3274 = vld [vmem:[%s143 + $0x110] sm:$0xff]
      %v3275 = vld [vmem:[%s143 + $0x118] sm:$0xff]
      %v3276 = vadd.f32 %v3240, %v3098
      %v3277 = vadd.f32 %v3241, %v3101
      %v3278 = vadd.f32 %v3242, %v3106
      %v3279 = vadd.f32 %v3243, %v3109
      %v3280 = vadd.f32 %v3244, %v3114
      %v3281 = vadd.f32 %v3245, %v3117
      %v3282 = vadd.f32 %v3246, %v3122
      %v3283 = vadd.f32 %v3247, %v3125
      %v3284 = vadd.f32 %v3248, %v3130
      %v3285 = vadd.f32 %v3249, %v3133
      %v3286 = vadd.f32 %v3250, %v3138
      %v3287 = vadd.f32 %v3251, %v3141
      %v3288 = vadd.f32 %v3252, %v3146
      %v3289 = vadd.f32 %v3253, %v3149
      %v3290 = vadd.f32 %v3254, %v3154
      %v3291 = vadd.f32 %v3255, %v3157
      %v3292 = vadd.f32 %v3256, %v3162
      %v3293 = vadd.f32 %v3257, %v3165
      %v3294 = vadd.f32 %v3258, %v3170
      %v3295 = vadd.f32 %v3259, %v3173
      %v3296 = vadd.f32 %v3260, %v3178
      %v3297 = vadd.f32 %v3261, %v3181
      %v3298 = vadd.f32 %v3262, %v3186
      %v3299 = vadd.f32 %v3263, %v3189
      %v3300 = vadd.f32 %v3264, %v3194
      %v3301 = vadd.f32 %v3265, %v3197
      %v3302 = vadd.f32 %v3266, %v3202
      %v3303 = vadd.f32 %v3267, %v3205
      %v3304 = vadd.f32 %v3268, %v3210
      %v3305 = vadd.f32 %v3269, %v3213
      %v3306 = vadd.f32 %v3270, %v3218
      %v3307 = vadd.f32 %v3271, %v3221
      %v3308 = vadd.f32 %v3272, %v3226
      %v3309 = vadd.f32 %v3273, %v3229
      %v3310 = vadd.f32 %v3274, %v3234
      %v3311 = vadd.f32 %v3275, %v3237
      %3312 = vst.msk [vmem:[%s143] sm:$0xff] %vm508, %v3276
      %3313 = vst.msk [vmem:[%s143 + $0x8] sm:$0xff] %vm508, %v3277
      %3314 = vst.msk [vmem:[%s143 + $0x10] sm:$0xff] %vm508, %v3278
      %3315 = vst.msk [vmem:[%s143 + $0x18] sm:$0xff] %vm508, %v3279
      %3316 = vst.msk [vmem:[%s143 + $0x20] sm:$0xff] %vm508, %v3280
      %3317 = vst.msk [vmem:[%s143 + $0x28] sm:$0xff] %vm508, %v3281
      %3318 = vst.msk [vmem:[%s143 + $0x30] sm:$0xff] %vm508, %v3282
      %3319 = vst.msk [vmem:[%s143 + $0x38] sm:$0xff] %vm508, %v3283
      %3320 = vst.msk [vmem:[%s143 + $0x40] sm:$0xff] %vm508, %v3284
      %3321 = vst.msk [vmem:[%s143 + $0x48] sm:$0xff] %vm508, %v3285
      %3322 = vst.msk [vmem:[%s143 + $0x50] sm:$0xff] %vm508, %v3286
      %3323 = vst.msk [vmem:[%s143 + $0x58] sm:$0xff] %vm508, %v3287
      %3324 = vst.msk [vmem:[%s143 + $0x60] sm:$0xff] %vm508, %v3288
      %3325 = vst.msk [vmem:[%s143 + $0x68] sm:$0xff] %vm508, %v3289
      %3326 = vst.msk [vmem:[%s143 + $0x70] sm:$0xff] %vm508, %v3290
      %3327 = vst.msk [vmem:[%s143 + $0x78] sm:$0xff] %vm508, %v3291
      %3328 = vst.msk [vmem:[%s143 + $0x80] sm:$0xff] %vm508, %v3292
      %3329 = vst.msk [vmem:[%s143 + $0x88] sm:$0xff] %vm508, %v3293
      %3330 = vst.msk [vmem:[%s143 + $0x90] sm:$0xff] %vm508, %v3294
      %3331 = vst.msk [vmem:[%s143 + $0x98] sm:$0xff] %vm508, %v3295
      %3332 = vst.msk [vmem:[%s143 + $0xa0] sm:$0xff] %vm508, %v3296
      %3333 = vst.msk [vmem:[%s143 + $0xa8] sm:$0xff] %vm508, %v3297
      %3334 = vst.msk [vmem:[%s143 + $0xb0] sm:$0xff] %vm508, %v3298
      %3335 = vst.msk [vmem:[%s143 + $0xb8] sm:$0xff] %vm508, %v3299
      %3336 = vst.msk [vmem:[%s143 + $0xc0] sm:$0xff] %vm508, %v3300
      %3337 = vst.msk [vmem:[%s143 + $0xc8] sm:$0xff] %vm508, %v3301
      %3338 = vst.msk [vmem:[%s143 + $0xd0] sm:$0xff] %vm508, %v3302
      %3339 = vst.msk [vmem:[%s143 + $0xd8] sm:$0xff] %vm508, %v3303
      %3340 = vst.msk [vmem:[%s143 + $0xe0] sm:$0xff] %vm508, %v3304
      %3341 = vst.msk [vmem:[%s143 + $0xe8] sm:$0xff] %vm508, %v3305
      %3342 = vst.msk [vmem:[%s143 + $0xf0] sm:$0xff] %vm508, %v3306
      %3343 = vst.msk [vmem:[%s143 + $0xf8] sm:$0xff] %vm508, %v3307
      %3344 = vst.msk [vmem:[%s143 + $0x100] sm:$0xff] %vm508, %v3308
      %3345 = vst.msk [vmem:[%s143 + $0x108] sm:$0xff] %vm508, %v3309
      %3346 = vst.msk [vmem:[%s143 + $0x110] sm:$0xff] %vm508, %v3310
      %3347 = vst.msk [vmem:[%s143 + $0x118] sm:$0xff] %vm508, %v3311
      %v3348 = vld [vmem:[%s138 + $0x10] sm:$0xc]
      %v3349 = vld [vmem:[%s138 + $0x14] sm:$0xf]
      %v3350 = vld [vmem:[%s138 + $0x18] sm:$0xf]
      %v3351 = vld [vmem:[%s138 + $0x1c] sm:$0xf]
      %v3352 = vld [vmem:[%s138 + $0x20] sm:$0xf]
      %v3353 = vld [vmem:[%s138 + $0x24] sm:$0xf]
      %v3354 = vld [vmem:[%s138 + $0x28] sm:$0xf]
      %v3355 = vld [vmem:[%s138 + $0x2c] sm:$0xf]
      %v3356 = vld [vmem:[%s138 + $0x30] sm:$0xf]
      %v3357 = vld [vmem:[%s138 + $0x34] sm:$0xf]
      %v3358 = vld [vmem:[%s138 + $0x38] sm:$0xf]
      %v3359 = vld [vmem:[%s138 + $0x3c] sm:$0xf]
      %v3360 = vld [vmem:[%s138 + $0x40] sm:$0xf]
      %v3361 = vld [vmem:[%s138 + $0x44] sm:$0xf]
      %v3362 = vld [vmem:[%s138 + $0x48] sm:$0xf]
      %v3363 = vld [vmem:[%s138 + $0x4c] sm:$0xf]
      %v3364 = vld [vmem:[%s138 + $0x50] sm:$0xf]
      %v3365 = vld [vmem:[%s138 + $0x54] sm:$0xf]
      %v3366 = vld [vmem:[%s138 + $0x58] sm:$0xf]
      %v3367 = vld [vmem:[%s138 + $0x5c] sm:$0xf]
      %v3368 = vld [vmem:[%s138 + $0x60] sm:$0xf]
      %v3369 = vld [vmem:[%s138 + $0x64] sm:$0xf]
      %v3370 = vld [vmem:[%s138 + $0x68] sm:$0xf]
      %v3371 = vld [vmem:[%s138 + $0x6c] sm:$0xf]
      %v3372 = vld [vmem:[%s138 + $0x70] sm:$0xf]
      %v3373 = vld [vmem:[%s138 + $0x74] sm:$0xf]
      %v3374 = vld [vmem:[%s138 + $0x78] sm:$0xf]
      %v3375 = vld [vmem:[%s138 + $0x7c] sm:$0xf]
      %v3376 = vld [vmem:[%s138 + $0x80] sm:$0xf]
      %v3377 = vld [vmem:[%s138 + $0x84] sm:$0xf]
      %v3378 = vld [vmem:[%s138 + $0x88] sm:$0xf]
      %v3379 = vld [vmem:[%s138 + $0x8c] sm:$0xf]
      %v3380 = vld [vmem:[%s138 + $0x90] sm:$0xf]
      %v3381 = vld [vmem:[%s138 + $0x94] sm:$0xf]
      %v3382 = vld [vmem:[%s138 + $0x98] sm:$0xf]
      %v3383 = vld [vmem:[%s138 + $0x9c] sm:$0xf]
      %v3384 = vld [vmem:[%s138 + $0xa0] sm:$0x3]
      %s3385 = scalar_lea.vmem %s1, 12
      %v3386 = vld [vmem:[%s3385] sm:$0x3]
      %v3424 = vunpack.c.l.b16 %v3348
      %v3425 = vunpack.c.l.b16 %v3349
      %v3426 = vunpack.c.l.b16 %v3350
      %v3427 = vunpack.c.l.b16 %v3351
      %v3428 = vunpack.c.l.b16 %v3352
      %v3429 = vunpack.c.l.b16 %v3353
      %v3430 = vunpack.c.l.b16 %v3354
      %v3431 = vunpack.c.l.b16 %v3355
      %v3432 = vunpack.c.l.b16 %v3356
      %v3433 = vunpack.c.l.b16 %v3357
      %v3434 = vunpack.c.l.b16 %v3358
      %v3435 = vunpack.c.l.b16 %v3359
      %v3436 = vunpack.c.l.b16 %v3360
      %v3437 = vunpack.c.l.b16 %v3361
      %v3438 = vunpack.c.l.b16 %v3362
      %v3439 = vunpack.c.l.b16 %v3363
      %v3440 = vunpack.c.l.b16 %v3364
      %v3441 = vunpack.c.l.b16 %v3365
      %v3442 = vunpack.c.l.b16 %v3366
      %v3443 = vunpack.c.l.b16 %v3367
      %v3444 = vunpack.c.l.b16 %v3368
      %v3445 = vunpack.c.l.b16 %v3369
      %v3446 = vunpack.c.l.b16 %v3370
      %v3447 = vunpack.c.l.b16 %v3371
      %v3448 = vunpack.c.l.b16 %v3372
      %v3449 = vunpack.c.l.b16 %v3373
      %v3450 = vunpack.c.l.b16 %v3374
      %v3451 = vunpack.c.l.b16 %v3375
      %v3452 = vunpack.c.l.b16 %v3376
      %v3453 = vunpack.c.l.b16 %v3377
      %v3454 = vunpack.c.l.b16 %v3378
      %v3455 = vunpack.c.l.b16 %v3379
      %v3456 = vunpack.c.l.b16 %v3380
      %v3457 = vunpack.c.l.b16 %v3381
      %v3458 = vunpack.c.l.b16 %v3382
      %v3459 = vunpack.c.l.b16 %v3383
      %v3460 = vunpack.c.l.b16 %v3384
      %v3461 = vpack.c.b16 %v3425, %v3424
      %v3462 = vpack.c.b16 %v3427, %v3426
      %v3463 = vpack.c.b16 %v3429, %v3428
      %v3464 = vpack.c.b16 %v3431, %v3430
      %v3465 = vpack.c.b16 %v3433, %v3432
      %v3466 = vpack.c.b16 %v3435, %v3434
      %v3467 = vpack.c.b16 %v3437, %v3436
      %v3468 = vpack.c.b16 %v3439, %v3438
      %v3469 = vpack.c.b16 %v3441, %v3440
      %v3470 = vpack.c.b16 %v3443, %v3442
      %v3471 = vpack.c.b16 %v3445, %v3444
      %v3472 = vpack.c.b16 %v3447, %v3446
      %v3473 = vpack.c.b16 %v3449, %v3448
      %v3474 = vpack.c.b16 %v3451, %v3450
      %v3475 = vpack.c.b16 %v3453, %v3452
      %v3476 = vpack.c.b16 %v3455, %v3454
      %v3477 = vpack.c.b16 %v3457, %v3456
      %v3478 = vpack.c.b16 %v3459, %v3458
      %v3479 = vpack.c.b16 %v3460, %v3460
      %v3480 = vrot.slane %v3461, 2
      %v3481 = vrot.slane %v3462, 2
      %v3482 = vsel %vm2968, %v3480, %v3481
      %v3483 = vrot.slane %v3463, 2
      %v3484 = vsel %vm2968, %v3481, %v3483
      %v3485 = vrot.slane %v3464, 2
      %v3486 = vsel %vm2968, %v3483, %v3485
      %v3487 = vrot.slane %v3465, 2
      %v3488 = vsel %vm2968, %v3485, %v3487
      %v3489 = vrot.slane %v3466, 2
      %v3490 = vsel %vm2968, %v3487, %v3489
      %v3491 = vrot.slane %v3467, 2
      %v3492 = vsel %vm2968, %v3489, %v3491
      %v3493 = vrot.slane %v3468, 2
      %v3494 = vsel %vm2968, %v3491, %v3493
      %v3495 = vrot.slane %v3469, 2
      %v3496 = vsel %vm2968, %v3493, %v3495
      %v3497 = vrot.slane %v3470, 2
      %v3498 = vsel %vm2968, %v3495, %v3497
      %v3499 = vrot.slane %v3471, 2
      %v3500 = vsel %vm2968, %v3497, %v3499
      %v3501 = vrot.slane %v3472, 2
      %v3502 = vsel %vm2968, %v3499, %v3501
      %v3503 = vrot.slane %v3473, 2
      %v3504 = vsel %vm2968, %v3501, %v3503
      %v3505 = vrot.slane %v3474, 2
      %v3506 = vsel %vm2968, %v3503, %v3505
      %v3507 = vrot.slane %v3475, 2
      %v3508 = vsel %vm2968, %v3505, %v3507
      %v3509 = vrot.slane %v3476, 2
      %v3510 = vsel %vm2968, %v3507, %v3509
      %v3511 = vrot.slane %v3477, 2
      %v3512 = vsel %vm2968, %v3509, %v3511
      %v3513 = vrot.slane %v3478, 2
      %v3514 = vsel %vm2968, %v3511, %v3513
      %v3515 = vrot.slane %v3479, 2
      %v3516 = vsel %vm2968, %v3513, %v3515
      %v3518 = vsel %vm272, %v3482, 0
      %v3521 = vsel %vm272, %v3484, 0
      %v3524 = vsel %vm272, %v3486, 0
      %v3527 = vsel %vm272, %v3488, 0
      %v3530 = vsel %vm272, %v3490, 0
      %v3533 = vsel %vm272, %v3492, 0
      %v3536 = vsel %vm272, %v3494, 0
      %v3539 = vsel %vm272, %v3496, 0
      %v3542 = vsel %vm272, %v3498, 0
      %v3545 = vsel %vm272, %v3500, 0
      %v3548 = vsel %vm272, %v3502, 0
      %v3551 = vsel %vm272, %v3504, 0
      %v3554 = vsel %vm272, %v3506, 0
      %v3557 = vsel %vm272, %v3508, 0
      %v3560 = vsel %vm272, %v3510, 0
      %v3563 = vsel %vm272, %v3512, 0
      %v3566 = vsel %vm272, %v3514, 0
      %v3569 = vsel %vm272, %v3516, 0
      %v3572 = vsel %vm327, %v3386, 0
      %3574 = vmatprep.subr.bf16.mxu0 0
      %3575 = vmatpush1.bf16.msra.mxu0 %v3572
      %3576 = vmatprep.subr.bf16.mxu0 0
      %3577 = vmatpush1.bf16.msra.mxu0 0
      %3578 = vmatprep.subr.bf16.mxu0 0
      %3579 = vmatpush1.bf16.msra.mxu0 0
      %3580 = vmatprep.subr.bf16.mxu0 0
      %3581 = vmatpush1.bf16.msra.mxu0 0
      %3582 = vmatprep.subr.bf16.mxu0 0
      %3583 = vmatpush1.bf16.msra.mxu0 0
      %3584 = vmatprep.subr.bf16.mxu0 0
      %3585 = vmatpush1.bf16.msra.mxu0 0
      %3586 = vmatprep.subr.bf16.mxu0 0
      %3587 = vmatpush1.bf16.msra.mxu0 0
      %3588 = vmatprep.subr.bf16.mxu0 0
      %3589 = vmatpush1.bf16.msra.mxu0 0
      %3590 = vmatprep.subr.bf16.mxu0 0
      %3591 = vmatpush1.bf16.msra.mxu0 0
      %3592 = vmatprep.subr.bf16.mxu0 0
      %3593 = vmatpush1.bf16.msra.mxu0 0
      %3594 = vmatprep.subr.bf16.mxu0 0
      %3595 = vmatpush1.bf16.msra.mxu0 0
      %3596 = vmatprep.subr.bf16.mxu0 0
      %3597 = vmatpush1.bf16.msra.mxu0 0
      %3598 = vmatprep.subr.bf16.mxu0 0
      %3599 = vmatpush1.bf16.msra.mxu0 0
      %3600 = vmatprep.subr.bf16.mxu0 0
      %3601 = vmatpush1.bf16.msra.mxu0 0
      %3602 = vmatprep.subr.bf16.mxu0 0
      %3603 = vmatpush1.bf16.msra.mxu0 0
      %3604 = vmatprep.subr.bf16.mxu0 0
      %3605 = vmatpush1.bf16.msra.mxu0 0
      %3606 = vmatprep.mubr.bf16.mxu0 0
      %3607 = vmatmul.mubr.bf16.gmra.mrb[0].mxu0 %v3518
      %v3608 = vpop.f32.mrb[0].mxu0
      %v3609 = vadd.f32 0.0, %v3608
      %v3610 = vpop.f32.mrb[0].mxu0
      %v3611 = vpop.f32.mrb[0].mxu0
      %v3612 = vadd.f32 0.0, %v3611
      %v3613 = vpop.f32.mrb[0].mxu0
      %3614 = vmatprep.mubr.bf16.mxu0 0
      %3615 = vmatmul.mubr.bf16.gmra.mrb[0].mxu0 %v3521
      %v3616 = vpop.f32.mrb[0].mxu0
      %v3617 = vadd.f32 0.0, %v3616
      %v3618 = vpop.f32.mrb[0].mxu0
      %v3619 = vpop.f32.mrb[0].mxu0
      %v3620 = vadd.f32 0.0, %v3619
      %v3621 = vpop.f32.mrb[0].mxu0
      %3622 = vmatprep.mubr.bf16.mxu0 0
      %3623 = vmatmul.mubr.bf16.gmra.mrb[0].mxu0 %v3524
      %v3624 = vpop.f32.mrb[0].mxu0
      %v3625 = vadd.f32 0.0, %v3624
      %v3626 = vpop.f32.mrb[0].mxu0
      %v3627 = vpop.f32.mrb[0].mxu0
      %v3628 = vadd.f32 0.0, %v3627
      %v3629 = vpop.f32.mrb[0].mxu0
      %3630 = vmatprep.mubr.bf16.mxu0 0
      %3631 = vmatmul.mubr.bf16.gmra.mrb[0].mxu0 %v3527
      %v3632 = vpop.f32.mrb[0].mxu0
      %v3633 = vadd.f32 0.0, %v3632
      %v3634 = vpop.f32.mrb[0].mxu0
      %v3635 = vpop.f32.mrb[0].mxu0
      %v3636 = vadd.f32 0.0, %v3635
      %v3637 = vpop.f32.mrb[0].mxu0
      %3638 = vmatprep.mubr.bf16.mxu0 0
      %3639 = vmatmul.mubr.bf16.gmra.mrb[0].mxu0 %v3530
      %v3640 = vpop.f32.mrb[0].mxu0
      %v3641 = vadd.f32 0.0, %v3640
      %v3642 = vpop.f32.mrb[0].mxu0
      %v3643 = vpop.f32.mrb[0].mxu0
      %v3644 = vadd.f32 0.0, %v3643
      %v3645 = vpop.f32.mrb[0].mxu0
      %3646 = vmatprep.mubr.bf16.mxu0 0
      %3647 = vmatmul.mubr.bf16.gmra.mrb[0].mxu0 %v3533
      %v3648 = vpop.f32.mrb[0].mxu0
      %v3649 = vadd.f32 0.0, %v3648
      %v3650 = vpop.f32.mrb[0].mxu0
      %v3651 = vpop.f32.mrb[0].mxu0
      %v3652 = vadd.f32 0.0, %v3651
      %v3653 = vpop.f32.mrb[0].mxu0
      %3654 = vmatprep.mubr.bf16.mxu0 0
      %3655 = vmatmul.mubr.bf16.gmra.mrb[0].mxu0 %v3536
      %v3656 = vpop.f32.mrb[0].mxu0
      %v3657 = vadd.f32 0.0, %v3656
      %v3658 = vpop.f32.mrb[0].mxu0
      %v3659 = vpop.f32.mrb[0].mxu0
      %v3660 = vadd.f32 0.0, %v3659
      %v3661 = vpop.f32.mrb[0].mxu0
      %3662 = vmatprep.mubr.bf16.mxu0 0
      %3663 = vmatmul.mubr.bf16.gmra.mrb[0].mxu0 %v3539
      %v3664 = vpop.f32.mrb[0].mxu0
      %v3665 = vadd.f32 0.0, %v3664
      %v3666 = vpop.f32.mrb[0].mxu0
      %v3667 = vpop.f32.mrb[0].mxu0
      %v3668 = vadd.f32 0.0, %v3667
      %v3669 = vpop.f32.mrb[0].mxu0
      %3670 = vmatprep.mubr.bf16.mxu0 0
      %3671 = vmatmul.mubr.bf16.gmra.mrb[0].mxu0 %v3542
      %v3672 = vpop.f32.mrb[0].mxu0
      %v3673 = vadd.f32 0.0, %v3672
      %v3674 = vpop.f32.mrb[0].mxu0
      %v3675 = vpop.f32.mrb[0].mxu0
      %v3676 = vadd.f32 0.0, %v3675
      %v3677 = vpop.f32.mrb[0].mxu0
      %3678 = vmatprep.mubr.bf16.mxu0 0
      %3679 = vmatmul.mubr.bf16.gmra.mrb[0].mxu0 %v3545
      %v3680 = vpop.f32.mrb[0].mxu0
      %v3681 = vadd.f32 0.0, %v3680
      %v3682 = vpop.f32.mrb[0].mxu0
      %v3683 = vpop.f32.mrb[0].mxu0
      %v3684 = vadd.f32 0.0, %v3683
      %v3685 = vpop.f32.mrb[0].mxu0
      %3686 = vmatprep.mubr.bf16.mxu0 0
      %3687 = vmatmul.mubr.bf16.gmra.mrb[0].mxu0 %v3548
      %v3688 = vpop.f32.mrb[0].mxu0
      %v3689 = vadd.f32 0.0, %v3688
      %v3690 = vpop.f32.mrb[0].mxu0
      %v3691 = vpop.f32.mrb[0].mxu0
      %v3692 = vadd.f32 0.0, %v3691
      %v3693 = vpop.f32.mrb[0].mxu0
      %3694 = vmatprep.mubr.bf16.mxu0 0
      %3695 = vmatmul.mubr.bf16.gmra.mrb[0].mxu0 %v3551
      %v3696 = vpop.f32.mrb[0].mxu0
      %v3697 = vadd.f32 0.0, %v3696
      %v3698 = vpop.f32.mrb[0].mxu0
      %v3699 = vpop.f32.mrb[0].mxu0
      %v3700 = vadd.f32 0.0, %v3699
      %v3701 = vpop.f32.mrb[0].mxu0
      %3702 = vmatprep.mubr.bf16.mxu0 0
      %3703 = vmatmul.mubr.bf16.gmra.mrb[0].mxu0 %v3554
      %v3704 = vpop.f32.mrb[0].mxu0
      %v3705 = vadd.f32 0.0, %v3704
      %v3706 = vpop.f32.mrb[0].mxu0
      %v3707 = vpop.f32.mrb[0].mxu0
      %v3708 = vadd.f32 0.0, %v3707
      %v3709 = vpop.f32.mrb[0].mxu0
      %3710 = vmatprep.mubr.bf16.mxu0 0
      %3711 = vmatmul.mubr.bf16.gmra.mrb[0].mxu0 %v3557
      %v3712 = vpop.f32.mrb[0].mxu0
      %v3713 = vadd.f32 0.0, %v3712
      %v3714 = vpop.f32.mrb[0].mxu0
      %v3715 = vpop.f32.mrb[0].mxu0
      %v3716 = vadd.f32 0.0, %v3715
      %v3717 = vpop.f32.mrb[0].mxu0
      %3718 = vmatprep.mubr.bf16.mxu0 0
      %3719 = vmatmul.mubr.bf16.gmra.mrb[0].mxu0 %v3560
      %v3720 = vpop.f32.mrb[0].mxu0
      %v3721 = vadd.f32 0.0, %v3720
      %v3722 = vpop.f32.mrb[0].mxu0
      %v3723 = vpop.f32.mrb[0].mxu0
      %v3724 = vadd.f32 0.0, %v3723
      %v3725 = vpop.f32.mrb[0].mxu0
      %3726 = vmatprep.mubr.bf16.mxu0 0
      %3727 = vmatmul.mubr.bf16.gmra.mrb[0].mxu0 %v3563
      %v3728 = vpop.f32.mrb[0].mxu0
      %v3729 = vadd.f32 0.0, %v3728
      %v3730 = vpop.f32.mrb[0].mxu0
      %v3731 = vpop.f32.mrb[0].mxu0
      %v3732 = vadd.f32 0.0, %v3731
      %v3733 = vpop.f32.mrb[0].mxu0
      %3734 = vmatprep.mubr.bf16.mxu0 0
      %3735 = vmatmul.mubr.bf16.gmra.mrb[0].mxu0 %v3566
      %v3736 = vpop.f32.mrb[0].mxu0
      %v3737 = vadd.f32 0.0, %v3736
      %v3738 = vpop.f32.mrb[0].mxu0
      %v3739 = vpop.f32.mrb[0].mxu0
      %v3740 = vadd.f32 0.0, %v3739
      %v3741 = vpop.f32.mrb[0].mxu0
      %3742 = vmatprep.mubr.bf16.mxu0 0
      %3743 = vmatmul.mubr.bf16.gmra.mrb[0].mxu0 %v3569
      %v3744 = vpop.f32.mrb[0].mxu0
      %v3745 = vadd.f32 0.0, %v3744
      %v3746 = vpop.f32.mrb[0].mxu0
      %v3747 = vpop.f32.mrb[0].mxu0
      %v3748 = vadd.f32 0.0, %v3747
      %v3749 = vpop.f32.mrb[0].mxu0
      %3750 = vdwg.mxu0
      %v3751 = vld [vmem:[%s143] sm:$0xff]
      %v3752 = vld [vmem:[%s143 + $0x8] sm:$0xff]
      %v3753 = vld [vmem:[%s143 + $0x10] sm:$0xff]
      %v3754 = vld [vmem:[%s143 + $0x18] sm:$0xff]
      %v3755 = vld [vmem:[%s143 + $0x20] sm:$0xff]
      %v3756 = vld [vmem:[%s143 + $0x28] sm:$0xff]
      %v3757 = vld [vmem:[%s143 + $0x30] sm:$0xff]
      %v3758 = vld [vmem:[%s143 + $0x38] sm:$0xff]
      %v3759 = vld [vmem:[%s143 + $0x40] sm:$0xff]
      %v3760 = vld [vmem:[%s143 + $0x48] sm:$0xff]
      %v3761 = vld [vmem:[%s143 + $0x50] sm:$0xff]
      %v3762 = vld [vmem:[%s143 + $0x58] sm:$0xff]
      %v3763 = vld [vmem:[%s143 + $0x60] sm:$0xff]
      %v3764 = vld [vmem:[%s143 + $0x68] sm:$0xff]
      %v3765 = vld [vmem:[%s143 + $0x70] sm:$0xff]
      %v3766 = vld [vmem:[%s143 + $0x78] sm:$0xff]
      %v3767 = vld [vmem:[%s143 + $0x80] sm:$0xff]
      %v3768 = vld [vmem:[%s143 + $0x88] sm:$0xff]
      %v3769 = vld [vmem:[%s143 + $0x90] sm:$0xff]
      %v3770 = vld [vmem:[%s143 + $0x98] sm:$0xff]
      %v3771 = vld [vmem:[%s143 + $0xa0] sm:$0xff]
      %v3772 = vld [vmem:[%s143 + $0xa8] sm:$0xff]
      %v3773 = vld [vmem:[%s143 + $0xb0] sm:$0xff]
      %v3774 = vld [vmem:[%s143 + $0xb8] sm:$0xff]
      %v3775 = vld [vmem:[%s143 + $0xc0] sm:$0xff]
      %v3776 = vld [vmem:[%s143 + $0xc8] sm:$0xff]
      %v3777 = vld [vmem:[%s143 + $0xd0] sm:$0xff]
      %v3778 = vld [vmem:[%s143 + $0xd8] sm:$0xff]
      %v3779 = vld [vmem:[%s143 + $0xe0] sm:$0xff]
      %v3780 = vld [vmem:[%s143 + $0xe8] sm:$0xff]
      %v3781 = vld [vmem:[%s143 + $0xf0] sm:$0xff]
      %v3782 = vld [vmem:[%s143 + $0xf8] sm:$0xff]
      %v3783 = vld [vmem:[%s143 + $0x100] sm:$0xff]
      %v3784 = vld [vmem:[%s143 + $0x108] sm:$0xff]
      %v3785 = vld [vmem:[%s143 + $0x110] sm:$0xff]
      %v3786 = vld [vmem:[%s143 + $0x118] sm:$0xff]
      %v3787 = vadd.f32 %v3751, %v3609
      %v3788 = vadd.f32 %v3752, %v3612
      %v3789 = vadd.f32 %v3753, %v3617
      %v3790 = vadd.f32 %v3754, %v3620
      %v3791 = vadd.f32 %v3755, %v3625
      %v3792 = vadd.f32 %v3756, %v3628
      %v3793 = vadd.f32 %v3757, %v3633
      %v3794 = vadd.f32 %v3758, %v3636
      %v3795 = vadd.f32 %v3759, %v3641
      %v3796 = vadd.f32 %v3760, %v3644
      %v3797 = vadd.f32 %v3761, %v3649
      %v3798 = vadd.f32 %v3762, %v3652
      %v3799 = vadd.f32 %v3763, %v3657
      %v3800 = vadd.f32 %v3764, %v3660
      %v3801 = vadd.f32 %v3765, %v3665
      %v3802 = vadd.f32 %v3766, %v3668
      %v3803 = vadd.f32 %v3767, %v3673
      %v3804 = vadd.f32 %v3768, %v3676
      %v3805 = vadd.f32 %v3769, %v3681
      %v3806 = vadd.f32 %v3770, %v3684
      %v3807 = vadd.f32 %v3771, %v3689
      %v3808 = vadd.f32 %v3772, %v3692
      %v3809 = vadd.f32 %v3773, %v3697
      %v3810 = vadd.f32 %v3774, %v3700
      %v3811 = vadd.f32 %v3775, %v3705
      %v3812 = vadd.f32 %v3776, %v3708
      %v3813 = vadd.f32 %v3777, %v3713
      %v3814 = vadd.f32 %v3778, %v3716
      %v3815 = vadd.f32 %v3779, %v3721
      %v3816 = vadd.f32 %v3780, %v3724
      %v3817 = vadd.f32 %v3781, %v3729
      %v3818 = vadd.f32 %v3782, %v3732
      %v3819 = vadd.f32 %v3783, %v3737
      %v3820 = vadd.f32 %v3784, %v3740
      %v3821 = vadd.f32 %v3785, %v3745
      %v3822 = vadd.f32 %v3786, %v3748
      %3823 = vst.msk [vmem:[%s143] sm:$0xff] %vm508, %v3787
      %3824 = vst.msk [vmem:[%s143 + $0x8] sm:$0xff] %vm508, %v3788
      %3825 = vst.msk [vmem:[%s143 + $0x10] sm:$0xff] %vm508, %v3789
      %3826 = vst.msk [vmem:[%s143 + $0x18] sm:$0xff] %vm508, %v3790
      %3827 = vst.msk [vmem:[%s143 + $0x20] sm:$0xff] %vm508, %v3791
      %3828 = vst.msk [vmem:[%s143 + $0x28] sm:$0xff] %vm508, %v3792
      %3829 = vst.msk [vmem:[%s143 + $0x30] sm:$0xff] %vm508, %v3793
      %3830 = vst.msk [vmem:[%s143 + $0x38] sm:$0xff] %vm508, %v3794
      %3831 = vst.msk [vmem:[%s143 + $0x40] sm:$0xff] %vm508, %v3795
      %3832 = vst.msk [vmem:[%s143 + $0x48] sm:$0xff] %vm508, %v3796
      %3833 = vst.msk [vmem:[%s143 + $0x50] sm:$0xff] %vm508, %v3797
      %3834 = vst.msk [vmem:[%s143 + $0x58] sm:$0xff] %vm508, %v3798
      %3835 = vst.msk [vmem:[%s143 + $0x60] sm:$0xff] %vm508, %v3799
      %3836 = vst.msk [vmem:[%s143 + $0x68] sm:$0xff] %vm508, %v3800
      %3837 = vst.msk [vmem:[%s143 + $0x70] sm:$0xff] %vm508, %v3801
      %3838 = vst.msk [vmem:[%s143 + $0x78] sm:$0xff] %vm508, %v3802
      %3839 = vst.msk [vmem:[%s143 + $0x80] sm:$0xff] %vm508, %v3803
      %3840 = vst.msk [vmem:[%s143 + $0x88] sm:$0xff] %vm508, %v3804
      %3841 = vst.msk [vmem:[%s143 + $0x90] sm:$0xff] %vm508, %v3805
      %3842 = vst.msk [vmem:[%s143 + $0x98] sm:$0xff] %vm508, %v3806
      %3843 = vst.msk [vmem:[%s143 + $0xa0] sm:$0xff] %vm508, %v3807
      %3844 = vst.msk [vmem:[%s143 + $0xa8] sm:$0xff] %vm508, %v3808
      %3845 = vst.msk [vmem:[%s143 + $0xb0] sm:$0xff] %vm508, %v3809
      %3846 = vst.msk [vmem:[%s143 + $0xb8] sm:$0xff] %vm508, %v3810
      %3847 = vst.msk [vmem:[%s143 + $0xc0] sm:$0xff] %vm508, %v3811
      %3848 = vst.msk [vmem:[%s143 + $0xc8] sm:$0xff] %vm508, %v3812
      %3849 = vst.msk [vmem:[%s143 + $0xd0] sm:$0xff] %vm508, %v3813
      %3850 = vst.msk [vmem:[%s143 + $0xd8] sm:$0xff] %vm508, %v3814
      %3851 = vst.msk [vmem:[%s143 + $0xe0] sm:$0xff] %vm508, %v3815
      %3852 = vst.msk [vmem:[%s143 + $0xe8] sm:$0xff] %vm508, %v3816
      %3853 = vst.msk [vmem:[%s143 + $0xf0] sm:$0xff] %vm508, %v3817
      %3854 = vst.msk [vmem:[%s143 + $0xf8] sm:$0xff] %vm508, %v3818
      %3855 = vst.msk [vmem:[%s143 + $0x100] sm:$0xff] %vm508, %v3819
      %3856 = vst.msk [vmem:[%s143 + $0x108] sm:$0xff] %vm508, %v3820
      %3857 = vst.msk [vmem:[%s143 + $0x110] sm:$0xff] %vm508, %v3821
      %3858 = vst.msk [vmem:[%s143 + $0x118] sm:$0xff] %vm508, %v3822
      %v3859 = vld [vmem:[%s138 + $0x10] sm:$0xc]
      %v3860 = vld [vmem:[%s138 + $0x14] sm:$0xf]
      %v3861 = vld [vmem:[%s138 + $0x18] sm:$0xf]
      %v3862 = vld [vmem:[%s138 + $0x1c] sm:$0xf]
      %v3863 = vld [vmem:[%s138 + $0x20] sm:$0xf]
      %v3864 = vld [vmem:[%s138 + $0x24] sm:$0xf]
      %v3865 = vld [vmem:[%s138 + $0x28] sm:$0xf]
      %v3866 = vld [vmem:[%s138 + $0x2c] sm:$0xf]
      %v3867 = vld [vmem:[%s138 + $0x30] sm:$0xf]
      %v3868 = vld [vmem:[%s138 + $0x34] sm:$0xf]
      %v3869 = vld [vmem:[%s138 + $0x38] sm:$0xf]
      %v3870 = vld [vmem:[%s138 + $0x3c] sm:$0xf]
      %v3871 = vld [vmem:[%s138 + $0x40] sm:$0xf]
      %v3872 = vld [vmem:[%s138 + $0x44] sm:$0xf]
      %v3873 = vld [vmem:[%s138 + $0x48] sm:$0xf]
      %v3874 = vld [vmem:[%s138 + $0x4c] sm:$0xf]
      %v3875 = vld [vmem:[%s138 + $0x50] sm:$0xf]
      %v3876 = vld [vmem:[%s138 + $0x54] sm:$0xf]
      %v3877 = vld [vmem:[%s138 + $0x58] sm:$0xf]
      %v3878 = vld [vmem:[%s138 + $0x5c] sm:$0xf]
      %v3879 = vld [vmem:[%s138 + $0x60] sm:$0xf]
      %v3880 = vld [vmem:[%s138 + $0x64] sm:$0xf]
      %v3881 = vld [vmem:[%s138 + $0x68] sm:$0xf]
      %v3882 = vld [vmem:[%s138 + $0x6c] sm:$0xf]
      %v3883 = vld [vmem:[%s138 + $0x70] sm:$0xf]
      %v3884 = vld [vmem:[%s138 + $0x74] sm:$0xf]
      %v3885 = vld [vmem:[%s138 + $0x78] sm:$0xf]
      %v3886 = vld [vmem:[%s138 + $0x7c] sm:$0xf]
      %v3887 = vld [vmem:[%s138 + $0x80] sm:$0xf]
      %v3888 = vld [vmem:[%s138 + $0x84] sm:$0xf]
      %v3889 = vld [vmem:[%s138 + $0x88] sm:$0xf]
      %v3890 = vld [vmem:[%s138 + $0x8c] sm:$0xf]
      %v3891 = vld [vmem:[%s138 + $0x90] sm:$0xf]
      %v3892 = vld [vmem:[%s138 + $0x94] sm:$0xf]
      %v3893 = vld [vmem:[%s138 + $0x98] sm:$0xf]
      %v3894 = vld [vmem:[%s138 + $0x9c] sm:$0xf]
      %v3895 = vld [vmem:[%s138 + $0xa0] sm:$0x7]
      %s3896 = scalar_lea.vmem %s1, 14
      %v3897 = vld [vmem:[%s3896] sm:$0x3]
      %v3935 = vunpack.c.l.b16 %v3859
      %v3936 = vunpack.c.l.b16 %v3860
      %v3937 = vunpack.c.l.b16 %v3861
      %v3938 = vunpack.c.l.b16 %v3862
      %v3939 = vunpack.c.l.b16 %v3863
      %v3940 = vunpack.c.l.b16 %v3864
      %v3941 = vunpack.c.l.b16 %v3865
      %v3942 = vunpack.c.l.b16 %v3866
      %v3943 = vunpack.c.l.b16 %v3867
      %v3944 = vunpack.c.l.b16 %v3868
      %v3945 = vunpack.c.l.b16 %v3869
      %v3946 = vunpack.c.l.b16 %v3870
      %v3947 = vunpack.c.l.b16 %v3871
      %v3948 = vunpack.c.l.b16 %v3872
      %v3949 = vunpack.c.l.b16 %v3873
      %v3950 = vunpack.c.l.b16 %v3874
      %v3951 = vunpack.c.l.b16 %v3875
      %v3952 = vunpack.c.l.b16 %v3876
      %v3953 = vunpack.c.l.b16 %v3877
      %v3954 = vunpack.c.l.b16 %v3878
      %v3955 = vunpack.c.l.b16 %v3879
      %v3956 = vunpack.c.l.b16 %v3880
      %v3957 = vunpack.c.l.b16 %v3881
      %v3958 = vunpack.c.l.b16 %v3882
      %v3959 = vunpack.c.l.b16 %v3883
      %v3960 = vunpack.c.l.b16 %v3884
      %v3961 = vunpack.c.l.b16 %v3885
      %v3962 = vunpack.c.l.b16 %v3886
      %v3963 = vunpack.c.l.b16 %v3887
      %v3964 = vunpack.c.l.b16 %v3888
      %v3965 = vunpack.c.l.b16 %v3889
      %v3966 = vunpack.c.l.b16 %v3890
      %v3967 = vunpack.c.l.b16 %v3891
      %v3968 = vunpack.c.l.b16 %v3892
      %v3969 = vunpack.c.l.b16 %v3893
      %v3970 = vunpack.c.l.b16 %v3894
      %v3971 = vunpack.c.l.b16 %v3895
      %v3972 = vpack.c.b16 %v3936, %v3935
      %v3973 = vpack.c.b16 %v3938, %v3937
      %v3974 = vpack.c.b16 %v3940, %v3939
      %v3975 = vpack.c.b16 %v3942, %v3941
      %v3976 = vpack.c.b16 %v3944, %v3943
      %v3977 = vpack.c.b16 %v3946, %v3945
      %v3978 = vpack.c.b16 %v3948, %v3947
      %v3979 = vpack.c.b16 %v3950, %v3949
      %v3980 = vpack.c.b16 %v3952, %v3951
      %v3981 = vpack.c.b16 %v3954, %v3953
      %v3982 = vpack.c.b16 %v3956, %v3955
      %v3983 = vpack.c.b16 %v3958, %v3957
      %v3984 = vpack.c.b16 %v3960, %v3959
      %v3985 = vpack.c.b16 %v3962, %v3961
      %v3986 = vpack.c.b16 %v3964, %v3963
      %v3987 = vpack.c.b16 %v3966, %v3965
      %v3988 = vpack.c.b16 %v3968, %v3967
      %v3989 = vpack.c.b16 %v3970, %v3969
      %v3990 = vpack.c.b16 %v3971, %v3971
      %vm3991 = vsmask.f32 5376
      %v3993 = vshrl.u32 %v3972, 16
      %v3995 = vrot.slane %v3993, 2
      %v3996 = vshll.u32 %v3972, 16
      %v3998 = vrot.slane %v3996, 3
      %v3999 = vor.u32 %v3995, %v3998
      %v4001 = vshrl.u32 %v3973, 16
      %v4003 = vrot.slane %v4001, 2
      %v4004 = vshll.u32 %v3973, 16
      %v4006 = vrot.slane %v4004, 3
      %v4007 = vor.u32 %v4003, %v4006
      %v4008 = vsel %vm3991, %v3999, %v4007
      %v4010 = vshrl.u32 %v3974, 16
      %v4012 = vrot.slane %v4010, 2
      %v4013 = vshll.u32 %v3974, 16
      %v4015 = vrot.slane %v4013, 3
      %v4016 = vor.u32 %v4012, %v4015
      %v4017 = vsel %vm3991, %v4007, %v4016
      %v4019 = vshrl.u32 %v3975, 16
      %v4021 = vrot.slane %v4019, 2
      %v4022 = vshll.u32 %v3975, 16
      %v4024 = vrot.slane %v4022, 3
      %v4025 = vor.u32 %v4021, %v4024
      %v4026 = vsel %vm3991, %v4016, %v4025
      %v4028 = vshrl.u32 %v3976, 16
      %v4030 = vrot.slane %v4028, 2
      %v4031 = vshll.u32 %v3976, 16
      %v4033 = vrot.slane %v4031, 3
      %v4034 = vor.u32 %v4030, %v4033
      %v4035 = vsel %vm3991, %v4025, %v4034
      %v4037 = vshrl.u32 %v3977, 16
      %v4039 = vrot.slane %v4037, 2
      %v4040 = vshll.u32 %v3977, 16
      %v4042 = vrot.slane %v4040, 3
      %v4043 = vor.u32 %v4039, %v4042
      %v4044 = vsel %vm3991, %v4034, %v4043
      %v4046 = vshrl.u32 %v3978, 16
      %v4048 = vrot.slane %v4046, 2
      %v4049 = vshll.u32 %v3978, 16
      %v4051 = vrot.slane %v4049, 3
      %v4052 = vor.u32 %v4048, %v4051
      %v4053 = vsel %vm3991, %v4043, %v4052
      %v4055 = vshrl.u32 %v3979, 16
      %v4057 = vrot.slane %v4055, 2
      %v4058 = vshll.u32 %v3979, 16
      %v4060 = vrot.slane %v4058, 3
      %v4061 = vor.u32 %v4057, %v4060
      %v4062 = vsel %vm3991, %v4052, %v4061
      %v4064 = vshrl.u32 %v3980, 16
      %v4066 = vrot.slane %v4064, 2
      %v4067 = vshll.u32 %v3980, 16
      %v4069 = vrot.slane %v4067, 3
      %v4070 = vor.u32 %v4066, %v4069
      %v4071 = vsel %vm3991, %v4061, %v4070
      %v4073 = vshrl.u32 %v3981, 16
      %v4075 = vrot.slane %v4073, 2
      %v4076 = vshll.u32 %v3981, 16
      %v4078 = vrot.slane %v4076, 3
      %v4079 = vor.u32 %v4075, %v4078
      %v4080 = vsel %vm3991, %v4070, %v4079
      %v4082 = vshrl.u32 %v3982, 16
      %v4084 = vrot.slane %v4082, 2
      %v4085 = vshll.u32 %v3982, 16
      %v4087 = vrot.slane %v4085, 3
      %v4088 = vor.u32 %v4084, %v4087
      %v4089 = vsel %vm3991, %v4079, %v4088
      %v4091 = vshrl.u32 %v3983, 16
      %v4093 = vrot.slane %v4091, 2
      %v4094 = vshll.u32 %v3983, 16
      %v4096 = vrot.slane %v4094, 3
      %v4097 = vor.u32 %v4093, %v4096
      %v4098 = vsel %vm3991, %v4088, %v4097
      %v4100 = vshrl.u32 %v3984, 16
      %v4102 = vrot.slane %v4100, 2
      %v4103 = vshll.u32 %v3984, 16
      %v4105 = vrot.slane %v4103, 3
      %v4106 = vor.u32 %v4102, %v4105
      %v4107 = vsel %vm3991, %v4097, %v4106
      %v4109 = vshrl.u32 %v3985, 16
      %v4111 = vrot.slane %v4109, 2
      %v4112 = vshll.u32 %v3985, 16
      %v4114 = vrot.slane %v4112, 3
      %v4115 = vor.u32 %v4111, %v4114
      %v4116 = vsel %vm3991, %v4106, %v4115
      %v4118 = vshrl.u32 %v3986, 16
      %v4120 = vrot.slane %v4118, 2
      %v4121 = vshll.u32 %v3986, 16
      %v4123 = vrot.slane %v4121, 3
      %v4124 = vor.u32 %v4120, %v4123
      %v4125 = vsel %vm3991, %v4115, %v4124
      %v4127 = vshrl.u32 %v3987, 16
      %v4129 = vrot.slane %v4127, 2
      %v4130 = vshll.u32 %v3987, 16
      %v4132 = vrot.slane %v4130, 3
      %v4133 = vor.u32 %v4129, %v4132
      %v4134 = vsel %vm3991, %v4124, %v4133
      %v4136 = vshrl.u32 %v3988, 16
      %v4138 = vrot.slane %v4136, 2
      %v4139 = vshll.u32 %v3988, 16
      %v4141 = vrot.slane %v4139, 3
      %v4142 = vor.u32 %v4138, %v4141
      %v4143 = vsel %vm3991, %v4133, %v4142
      %v4145 = vshrl.u32 %v3989, 16
      %v4147 = vrot.slane %v4145, 2
      %v4148 = vshll.u32 %v3989, 16
      %v4150 = vrot.slane %v4148, 3
      %v4151 = vor.u32 %v4147, %v4150
      %v4152 = vsel %vm3991, %v4142, %v4151
      %v4154 = vshrl.u32 %v3990, 16
      %v4156 = vrot.slane %v4154, 2
      %v4157 = vshll.u32 %v3990, 16
      %v4159 = vrot.slane %v4157, 3
      %v4160 = vor.u32 %v4156, %v4159
      %v4161 = vsel %vm3991, %v4151, %v4160
      %v4163 = vsel %vm272, %v4008, 0
      %v4166 = vsel %vm272, %v4017, 0
      %v4169 = vsel %vm272, %v4026, 0
      %v4172 = vsel %vm272, %v4035, 0
      %v4175 = vsel %vm272, %v4044, 0
      %v4178 = vsel %vm272, %v4053, 0
      %v4181 = vsel %vm272, %v4062, 0
      %v4184 = vsel %vm272, %v4071, 0
      %v4187 = vsel %vm272, %v4080, 0
      %v4190 = vsel %vm272, %v4089, 0
      %v4193 = vsel %vm272, %v4098, 0
      %v4196 = vsel %vm272, %v4107, 0
      %v4199 = vsel %vm272, %v4116, 0
      %v4202 = vsel %vm272, %v4125, 0
      %v4205 = vsel %vm272, %v4134, 0
      %v4208 = vsel %vm272, %v4143, 0
      %v4211 = vsel %vm272, %v4152, 0
      %v4214 = vsel %vm272, %v4161, 0
      %v4217 = vsel %vm327, %v3897, 0
      %4219 = vmatprep.subr.bf16.mxu0 0
      %4220 = vmatpush1.bf16.msra.mxu0 %v4217
      %4221 = vmatprep.subr.bf16.mxu0 0
      %4222 = vmatpush1.bf16.msra.mxu0 0
      %4223 = vmatprep.subr.bf16.mxu0 0
      %4224 = vmatpush1.bf16.msra.mxu0 0
      %4225 = vmatprep.subr.bf16.mxu0 0
      %4226 = vmatpush1.bf16.msra.mxu0 0
      %4227 = vmatprep.subr.bf16.mxu0 0
      %4228 = vmatpush1.bf16.msra.mxu0 0
      %4229 = vmatprep.subr.bf16.mxu0 0
      %4230 = vmatpush1.bf16.msra.mxu0 0
      %4231 = vmatprep.subr.bf16.mxu0 0
      %4232 = vmatpush1.bf16.msra.mxu0 0
      %4233 = vmatprep.subr.bf16.mxu0 0
      %4234 = vmatpush1.bf16.msra.mxu0 0
      %4235 = vmatprep.subr.bf16.mxu0 0
      %4236 = vmatpush1.bf16.msra.mxu0 0
      %4237 = vmatprep.subr.bf16.mxu0 0
      %4238 = vmatpush1.bf16.msra.mxu0 0
      %4239 = vmatprep.subr.bf16.mxu0 0
      %4240 = vmatpush1.bf16.msra.mxu0 0
      %4241 = vmatprep.subr.bf16.mxu0 0
      %4242 = vmatpush1.bf16.msra.mxu0 0
      %4243 = vmatprep.subr.bf16.mxu0 0
      %4244 = vmatpush1.bf16.msra.mxu0 0
      %4245 = vmatprep.subr.bf16.mxu0 0
      %4246 = vmatpush1.bf16.msra.mxu0 0
      %4247 = vmatprep.subr.bf16.mxu0 0
      %4248 = vmatpush1.bf16.msra.mxu0 0
      %4249 = vmatprep.subr.bf16.mxu0 0
      %4250 = vmatpush1.bf16.msra.mxu0 0
      %4251 = vmatprep.mubr.bf16.mxu0 0
      %4252 = vmatmul.mubr.bf16.gmra.mrb[0].mxu0 %v4163
      %v4253 = vpop.f32.mrb[0].mxu0
      %v4254 = vadd.f32 0.0, %v4253
      %v4255 = vpop.f32.mrb[0].mxu0
      %v4256 = vpop.f32.mrb[0].mxu0
      %v4257 = vadd.f32 0.0, %v4256
      %v4258 = vpop.f32.mrb[0].mxu0
      %4259 = vmatprep.mubr.bf16.mxu0 0
      %4260 = vmatmul.mubr.bf16.gmra.mrb[0].mxu0 %v4166
      %v4261 = vpop.f32.mrb[0].mxu0
      %v4262 = vadd.f32 0.0, %v4261
      %v4263 = vpop.f32.mrb[0].mxu0
      %v4264 = vpop.f32.mrb[0].mxu0
      %v4265 = vadd.f32 0.0, %v4264
      %v4266 = vpop.f32.mrb[0].mxu0
      %4267 = vmatprep.mubr.bf16.mxu0 0
      %4268 = vmatmul.mubr.bf16.gmra.mrb[0].mxu0 %v4169
      %v4269 = vpop.f32.mrb[0].mxu0
      %v4270 = vadd.f32 0.0, %v4269
      %v4271 = vpop.f32.mrb[0].mxu0
      %v4272 = vpop.f32.mrb[0].mxu0
      %v4273 = vadd.f32 0.0, %v4272
      %v4274 = vpop.f32.mrb[0].mxu0
      %4275 = vmatprep.mubr.bf16.mxu0 0
      %4276 = vmatmul.mubr.bf16.gmra.mrb[0].mxu0 %v4172
      %v4277 = vpop.f32.mrb[0].mxu0
      %v4278 = vadd.f32 0.0, %v4277
      %v4279 = vpop.f32.mrb[0].mxu0
      %v4280 = vpop.f32.mrb[0].mxu0
      %v4281 = vadd.f32 0.0, %v4280
      %v4282 = vpop.f32.mrb[0].mxu0
      %4283 = vmatprep.mubr.bf16.mxu0 0
      %4284 = vmatmul.mubr.bf16.gmra.mrb[0].mxu0 %v4175
      %v4285 = vpop.f32.mrb[0].mxu0
      %v4286 = vadd.f32 0.0, %v4285
      %v4287 = vpop.f32.mrb[0].mxu0
      %v4288 = vpop.f32.mrb[0].mxu0
      %v4289 = vadd.f32 0.0, %v4288
      %v4290 = vpop.f32.mrb[0].mxu0
      %4291 = vmatprep.mubr.bf16.mxu0 0
      %4292 = vmatmul.mubr.bf16.gmra.mrb[0].mxu0 %v4178
      %v4293 = vpop.f32.mrb[0].mxu0
      %v4294 = vadd.f32 0.0, %v4293
      %v4295 = vpop.f32.mrb[0].mxu0
      %v4296 = vpop.f32.mrb[0].mxu0
      %v4297 = vadd.f32 0.0, %v4296
      %v4298 = vpop.f32.mrb[0].mxu0
      %4299 = vmatprep.mubr.bf16.mxu0 0
      %4300 = vmatmul.mubr.bf16.gmra.mrb[0].mxu0 %v4181
      %v4301 = vpop.f32.mrb[0].mxu0
      %v4302 = vadd.f32 0.0, %v4301
      %v4303 = vpop.f32.mrb[0].mxu0
      %v4304 = vpop.f32.mrb[0].mxu0
      %v4305 = vadd.f32 0.0, %v4304
      %v4306 = vpop.f32.mrb[0].mxu0
      %4307 = vmatprep.mubr.bf16.mxu0 0
      %4308 = vmatmul.mubr.bf16.gmra.mrb[0].mxu0 %v4184
      %v4309 = vpop.f32.mrb[0].mxu0
      %v4310 = vadd.f32 0.0, %v4309
      %v4311 = vpop.f32.mrb[0].mxu0
      %v4312 = vpop.f32.mrb[0].mxu0
      %v4313 = vadd.f32 0.0, %v4312
      %v4314 = vpop.f32.mrb[0].mxu0
      %4315 = vmatprep.mubr.bf16.mxu0 0
      %4316 = vmatmul.mubr.bf16.gmra.mrb[0].mxu0 %v4187
      %v4317 = vpop.f32.mrb[0].mxu0
      %v4318 = vadd.f32 0.0, %v4317
      %v4319 = vpop.f32.mrb[0].mxu0
      %v4320 = vpop.f32.mrb[0].mxu0
      %v4321 = vadd.f32 0.0, %v4320
      %v4322 = vpop.f32.mrb[0].mxu0
      %4323 = vmatprep.mubr.bf16.mxu0 0
      %4324 = vmatmul.mubr.bf16.gmra.mrb[0].mxu0 %v4190
      %v4325 = vpop.f32.mrb[0].mxu0
      %v4326 = vadd.f32 0.0, %v4325
      %v4327 = vpop.f32.mrb[0].mxu0
      %v4328 = vpop.f32.mrb[0].mxu0
      %v4329 = vadd.f32 0.0, %v4328
      %v4330 = vpop.f32.mrb[0].mxu0
      %4331 = vmatprep.mubr.bf16.mxu0 0
      %4332 = vmatmul.mubr.bf16.gmra.mrb[0].mxu0 %v4193
      %v4333 = vpop.f32.mrb[0].mxu0
      %v4334 = vadd.f32 0.0, %v4333
      %v4335 = vpop.f32.mrb[0].mxu0
      %v4336 = vpop.f32.mrb[0].mxu0
      %v4337 = vadd.f32 0.0, %v4336
      %v4338 = vpop.f32.mrb[0].mxu0
      %4339 = vmatprep.mubr.bf16.mxu0 0
      %4340 = vmatmul.mubr.bf16.gmra.mrb[0].mxu0 %v4196
      %v4341 = vpop.f32.mrb[0].mxu0
      %v4342 = vadd.f32 0.0, %v4341
      %v4343 = vpop.f32.mrb[0].mxu0
      %v4344 = vpop.f32.mrb[0].mxu0
      %v4345 = vadd.f32 0.0, %v4344
      %v4346 = vpop.f32.mrb[0].mxu0
      %4347 = vmatprep.mubr.bf16.mxu0 0
      %4348 = vmatmul.mubr.bf16.gmra.mrb[0].mxu0 %v4199
      %v4349 = vpop.f32.mrb[0].mxu0
      %v4350 = vadd.f32 0.0, %v4349
      %v4351 = vpop.f32.mrb[0].mxu0
      %v4352 = vpop.f32.mrb[0].mxu0
      %v4353 = vadd.f32 0.0, %v4352
      %v4354 = vpop.f32.mrb[0].mxu0
      %4355 = vmatprep.mubr.bf16.mxu0 0
      %4356 = vmatmul.mubr.bf16.gmra.mrb[0].mxu0 %v4202
      %v4357 = vpop.f32.mrb[0].mxu0
      %v4358 = vadd.f32 0.0, %v4357
      %v4359 = vpop.f32.mrb[0].mxu0
      %v4360 = vpop.f32.mrb[0].mxu0
      %v4361 = vadd.f32 0.0, %v4360
      %v4362 = vpop.f32.mrb[0].mxu0
      %4363 = vmatprep.mubr.bf16.mxu0 0
      %4364 = vmatmul.mubr.bf16.gmra.mrb[0].mxu0 %v4205
      %v4365 = vpop.f32.mrb[0].mxu0
      %v4366 = vadd.f32 0.0, %v4365
      %v4367 = vpop.f32.mrb[0].mxu0
      %v4368 = vpop.f32.mrb[0].mxu0
      %v4369 = vadd.f32 0.0, %v4368
      %v4370 = vpop.f32.mrb[0].mxu0
      %4371 = vmatprep.mubr.bf16.mxu0 0
      %4372 = vmatmul.mubr.bf16.gmra.mrb[0].mxu0 %v4208
      %v4373 = vpop.f32.mrb[0].mxu0
      %v4374 = vadd.f32 0.0, %v4373
      %v4375 = vpop.f32.mrb[0].mxu0
      %v4376 = vpop.f32.mrb[0].mxu0
      %v4377 = vadd.f32 0.0, %v4376
      %v4378 = vpop.f32.mrb[0].mxu0
      %4379 = vmatprep.mubr.bf16.mxu0 0
      %4380 = vmatmul.mubr.bf16.gmra.mrb[0].mxu0 %v4211
      %v4381 = vpop.f32.mrb[0].mxu0
      %v4382 = vadd.f32 0.0, %v4381
      %v4383 = vpop.f32.mrb[0].mxu0
      %v4384 = vpop.f32.mrb[0].mxu0
      %v4385 = vadd.f32 0.0, %v4384
      %v4386 = vpop.f32.mrb[0].mxu0
      %4387 = vmatprep.mubr.bf16.mxu0 0
      %4388 = vmatmul.mubr.bf16.gmra.mrb[0].mxu0 %v4214
      %v4389 = vpop.f32.mrb[0].mxu0
      %v4390 = vadd.f32 0.0, %v4389
      %v4391 = vpop.f32.mrb[0].mxu0
      %v4392 = vpop.f32.mrb[0].mxu0
      %v4393 = vadd.f32 0.0, %v4392
      %v4394 = vpop.f32.mrb[0].mxu0
      %4395 = vdwg.mxu0
      %v4396 = vld [vmem:[%s143] sm:$0xff]
      %v4397 = vld [vmem:[%s143 + $0x8] sm:$0xff]
      %v4398 = vld [vmem:[%s143 + $0x10] sm:$0xff]
      %v4399 = vld [vmem:[%s143 + $0x18] sm:$0xff]
      %v4400 = vld [vmem:[%s143 + $0x20] sm:$0xff]
      %v4401 = vld [vmem:[%s143 + $0x28] sm:$0xff]
      %v4402 = vld [vmem:[%s143 + $0x30] sm:$0xff]
      %v4403 = vld [vmem:[%s143 + $0x38] sm:$0xff]
      %v4404 = vld [vmem:[%s143 + $0x40] sm:$0xff]
      %v4405 = vld [vmem:[%s143 + $0x48] sm:$0xff]
      %v4406 = vld [vmem:[%s143 + $0x50] sm:$0xff]
      %v4407 = vld [vmem:[%s143 + $0x58] sm:$0xff]
      %v4408 = vld [vmem:[%s143 + $0x60] sm:$0xff]
      %v4409 = vld [vmem:[%s143 + $0x68] sm:$0xff]
      %v4410 = vld [vmem:[%s143 + $0x70] sm:$0xff]
      %v4411 = vld [vmem:[%s143 + $0x78] sm:$0xff]
      %v4412 = vld [vmem:[%s143 + $0x80] sm:$0xff]
      %v4413 = vld [vmem:[%s143 + $0x88] sm:$0xff]
      %v4414 = vld [vmem:[%s143 + $0x90] sm:$0xff]
      %v4415 = vld [vmem:[%s143 + $0x98] sm:$0xff]
      %v4416 = vld [vmem:[%s143 + $0xa0] sm:$0xff]
      %v4417 = vld [vmem:[%s143 + $0xa8] sm:$0xff]
      %v4418 = vld [vmem:[%s143 + $0xb0] sm:$0xff]
      %v4419 = vld [vmem:[%s143 + $0xb8] sm:$0xff]
      %v4420 = vld [vmem:[%s143 + $0xc0] sm:$0xff]
      %v4421 = vld [vmem:[%s143 + $0xc8] sm:$0xff]
      %v4422 = vld [vmem:[%s143 + $0xd0] sm:$0xff]
      %v4423 = vld [vmem:[%s143 + $0xd8] sm:$0xff]
      %v4424 = vld [vmem:[%s143 + $0xe0] sm:$0xff]
      %v4425 = vld [vmem:[%s143 + $0xe8] sm:$0xff]
      %v4426 = vld [vmem:[%s143 + $0xf0] sm:$0xff]
      %v4427 = vld [vmem:[%s143 + $0xf8] sm:$0xff]
      %v4428 = vld [vmem:[%s143 + $0x100] sm:$0xff]
      %v4429 = vld [vmem:[%s143 + $0x108] sm:$0xff]
      %v4430 = vld [vmem:[%s143 + $0x110] sm:$0xff]
      %v4431 = vld [vmem:[%s143 + $0x118] sm:$0xff]
      %v4432 = vadd.f32 %v4396, %v4254
      %v4433 = vadd.f32 %v4397, %v4257
      %v4434 = vadd.f32 %v4398, %v4262
      %v4435 = vadd.f32 %v4399, %v4265
      %v4436 = vadd.f32 %v4400, %v4270
      %v4437 = vadd.f32 %v4401, %v4273
      %v4438 = vadd.f32 %v4402, %v4278
      %v4439 = vadd.f32 %v4403, %v4281
      %v4440 = vadd.f32 %v4404, %v4286
      %v4441 = vadd.f32 %v4405, %v4289
      %v4442 = vadd.f32 %v4406, %v4294
      %v4443 = vadd.f32 %v4407, %v4297
      %v4444 = vadd.f32 %v4408, %v4302
      %v4445 = vadd.f32 %v4409, %v4305
      %v4446 = vadd.f32 %v4410, %v4310
      %v4447 = vadd.f32 %v4411, %v4313
      %v4448 = vadd.f32 %v4412, %v4318
      %v4449 = vadd.f32 %v4413, %v4321
      %v4450 = vadd.f32 %v4414, %v4326
      %v4451 = vadd.f32 %v4415, %v4329
      %v4452 = vadd.f32 %v4416, %v4334
      %v4453 = vadd.f32 %v4417, %v4337
      %v4454 = vadd.f32 %v4418, %v4342
      %v4455 = vadd.f32 %v4419, %v4345
      %v4456 = vadd.f32 %v4420, %v4350
      %v4457 = vadd.f32 %v4421, %v4353
      %v4458 = vadd.f32 %v4422, %v4358
      %v4459 = vadd.f32 %v4423, %v4361
      %v4460 = vadd.f32 %v4424, %v4366
      %v4461 = vadd.f32 %v4425, %v4369
      %v4462 = vadd.f32 %v4426, %v4374
      %v4463 = vadd.f32 %v4427, %v4377
      %v4464 = vadd.f32 %v4428, %v4382
      %v4465 = vadd.f32 %v4429, %v4385
      %v4466 = vadd.f32 %v4430, %v4390
      %v4467 = vadd.f32 %v4431, %v4393
      %4468 = vst.msk [vmem:[%s143] sm:$0xff] %vm508, %v4432
      %4469 = vst.msk [vmem:[%s143 + $0x8] sm:$0xff] %vm508, %v4433
      %4470 = vst.msk [vmem:[%s143 + $0x10] sm:$0xff] %vm508, %v4434
      %4471 = vst.msk [vmem:[%s143 + $0x18] sm:$0xff] %vm508, %v4435
      %4472 = vst.msk [vmem:[%s143 + $0x20] sm:$0xff] %vm508, %v4436
      %4473 = vst.msk [vmem:[%s143 + $0x28] sm:$0xff] %vm508, %v4437
      %4474 = vst.msk [vmem:[%s143 + $0x30] sm:$0xff] %vm508, %v4438
      %4475 = vst.msk [vmem:[%s143 + $0x38] sm:$0xff] %vm508, %v4439
      %4476 = vst.msk [vmem:[%s143 + $0x40] sm:$0xff] %vm508, %v4440
      %4477 = vst.msk [vmem:[%s143 + $0x48] sm:$0xff] %vm508, %v4441
      %4478 = vst.msk [vmem:[%s143 + $0x50] sm:$0xff] %vm508, %v4442
      %4479 = vst.msk [vmem:[%s143 + $0x58] sm:$0xff] %vm508, %v4443
      %4480 = vst.msk [vmem:[%s143 + $0x60] sm:$0xff] %vm508, %v4444
      %4481 = vst.msk [vmem:[%s143 + $0x68] sm:$0xff] %vm508, %v4445
      %4482 = vst.msk [vmem:[%s143 + $0x70] sm:$0xff] %vm508, %v4446
      %4483 = vst.msk [vmem:[%s143 + $0x78] sm:$0xff] %vm508, %v4447
      %4484 = vst.msk [vmem:[%s143 + $0x80] sm:$0xff] %vm508, %v4448
      %4485 = vst.msk [vmem:[%s143 + $0x88] sm:$0xff] %vm508, %v4449
      %4486 = vst.msk [vmem:[%s143 + $0x90] sm:$0xff] %vm508, %v4450
      %4487 = vst.msk [vmem:[%s143 + $0x98] sm:$0xff] %vm508, %v4451
      %4488 = vst.msk [vmem:[%s143 + $0xa0] sm:$0xff] %vm508, %v4452
      %4489 = vst.msk [vmem:[%s143 + $0xa8] sm:$0xff] %vm508, %v4453
      %4490 = vst.msk [vmem:[%s143 + $0xb0] sm:$0xff] %vm508, %v4454
      %4491 = vst.msk [vmem:[%s143 + $0xb8] sm:$0xff] %vm508, %v4455
      %4492 = vst.msk [vmem:[%s143 + $0xc0] sm:$0xff] %vm508, %v4456
      %4493 = vst.msk [vmem:[%s143 + $0xc8] sm:$0xff] %vm508, %v4457
      %4494 = vst.msk [vmem:[%s143 + $0xd0] sm:$0xff] %vm508, %v4458
      %4495 = vst.msk [vmem:[%s143 + $0xd8] sm:$0xff] %vm508, %v4459
      %4496 = vst.msk [vmem:[%s143 + $0xe0] sm:$0xff] %vm508, %v4460
      %4497 = vst.msk [vmem:[%s143 + $0xe8] sm:$0xff] %vm508, %v4461
      %4498 = vst.msk [vmem:[%s143 + $0xf0] sm:$0xff] %vm508, %v4462
      %4499 = vst.msk [vmem:[%s143 + $0xf8] sm:$0xff] %vm508, %v4463
      %4500 = vst.msk [vmem:[%s143 + $0x100] sm:$0xff] %vm508, %v4464
      %4501 = vst.msk [vmem:[%s143 + $0x108] sm:$0xff] %vm508, %v4465
      %4502 = vst.msk [vmem:[%s143 + $0x110] sm:$0xff] %vm508, %v4466
      %4503 = vst.msk [vmem:[%s143 + $0x118] sm:$0xff] %vm508, %v4467
      %v4504 = vld [vmem:[%s138 + $0x10] sm:$0x8]
      %v4505 = vld [vmem:[%s138 + $0x14] sm:$0xf]
      %v4506 = vld [vmem:[%s138 + $0x18] sm:$0xf]
      %v4507 = vld [vmem:[%s138 + $0x1c] sm:$0xf]
      %v4508 = vld [vmem:[%s138 + $0x20] sm:$0xf]
      %v4509 = vld [vmem:[%s138 + $0x24] sm:$0xf]
      %v4510 = vld [vmem:[%s138 + $0x28] sm:$0xf]
      %v4511 = vld [vmem:[%s138 + $0x2c] sm:$0xf]
      %v4512 = vld [vmem:[%s138 + $0x30] sm:$0xf]
      %v4513 = vld [vmem:[%s138 + $0x34] sm:$0xf]
      %v4514 = vld [vmem:[%s138 + $0x38] sm:$0xf]
      %v4515 = vld [vmem:[%s138 + $0x3c] sm:$0xf]
      %v4516 = vld [vmem:[%s138 + $0x40] sm:$0xf]
      %v4517 = vld [vmem:[%s138 + $0x44] sm:$0xf]
      %v4518 = vld [vmem:[%s138 + $0x48] sm:$0xf]
      %v4519 = vld [vmem:[%s138 + $0x4c] sm:$0xf]
      %v4520 = vld [vmem:[%s138 + $0x50] sm:$0xf]
      %v4521 = vld [vmem:[%s138 + $0x54] sm:$0xf]
      %v4522 = vld [vmem:[%s138 + $0x58] sm:$0xf]
      %v4523 = vld [vmem:[%s138 + $0x5c] sm:$0xf]
      %v4524 = vld [vmem:[%s138 + $0x60] sm:$0xf]
      %v4525 = vld [vmem:[%s138 + $0x64] sm:$0xf]
      %v4526 = vld [vmem:[%s138 + $0x68] sm:$0xf]
      %v4527 = vld [vmem:[%s138 + $0x6c] sm:$0xf]
      %v4528 = vld [vmem:[%s138 + $0x70] sm:$0xf]
      %v4529 = vld [vmem:[%s138 + $0x74] sm:$0xf]
      %v4530 = vld [vmem:[%s138 + $0x78] sm:$0xf]
      %v4531 = vld [vmem:[%s138 + $0x7c] sm:$0xf]
      %v4532 = vld [vmem:[%s138 + $0x80] sm:$0xf]
      %v4533 = vld [vmem:[%s138 + $0x84] sm:$0xf]
      %v4534 = vld [vmem:[%s138 + $0x88] sm:$0xf]
      %v4535 = vld [vmem:[%s138 + $0x8c] sm:$0xf]
      %v4536 = vld [vmem:[%s138 + $0x90] sm:$0xf]
      %v4537 = vld [vmem:[%s138 + $0x94] sm:$0xf]
      %v4538 = vld [vmem:[%s138 + $0x98] sm:$0xf]
      %v4539 = vld [vmem:[%s138 + $0x9c] sm:$0xf]
      %v4540 = vld [vmem:[%s138 + $0xa0] sm:$0x7]
      %s4541 = scalar_lea.vmem %s1, 16
      %v4542 = vld [vmem:[%s4541] sm:$0x3]
      %v4580 = vunpack.c.l.b16 %v4504
      %v4581 = vunpack.c.l.b16 %v4505
      %v4582 = vunpack.c.l.b16 %v4506
      %v4583 = vunpack.c.l.b16 %v4507
      %v4584 = vunpack.c.l.b16 %v4508
      %v4585 = vunpack.c.l.b16 %v4509
      %v4586 = vunpack.c.l.b16 %v4510
      %v4587 = vunpack.c.l.b16 %v4511
      %v4588 = vunpack.c.l.b16 %v4512
      %v4589 = vunpack.c.l.b16 %v4513
      %v4590 = vunpack.c.l.b16 %v4514
      %v4591 = vunpack.c.l.b16 %v4515
      %v4592 = vunpack.c.l.b16 %v4516
      %v4593 = vunpack.c.l.b16 %v4517
      %v4594 = vunpack.c.l.b16 %v4518
      %v4595 = vunpack.c.l.b16 %v4519
      %v4596 = vunpack.c.l.b16 %v4520
      %v4597 = vunpack.c.l.b16 %v4521
      %v4598 = vunpack.c.l.b16 %v4522
      %v4599 = vunpack.c.l.b16 %v4523
      %v4600 = vunpack.c.l.b16 %v4524
      %v4601 = vunpack.c.l.b16 %v4525
      %v4602 = vunpack.c.l.b16 %v4526
      %v4603 = vunpack.c.l.b16 %v4527
      %v4604 = vunpack.c.l.b16 %v4528
      %v4605 = vunpack.c.l.b16 %v4529
      %v4606 = vunpack.c.l.b16 %v4530
      %v4607 = vunpack.c.l.b16 %v4531
      %v4608 = vunpack.c.l.b16 %v4532
      %v4609 = vunpack.c.l.b16 %v4533
      %v4610 = vunpack.c.l.b16 %v4534
      %v4611 = vunpack.c.l.b16 %v4535
      %v4612 = vunpack.c.l.b16 %v4536
      %v4613 = vunpack.c.l.b16 %v4537
      %v4614 = vunpack.c.l.b16 %v4538
      %v4615 = vunpack.c.l.b16 %v4539
      %v4616 = vunpack.c.l.b16 %v4540
      %v4617 = vpack.c.b16 %v4581, %v4580
      %v4618 = vpack.c.b16 %v4583, %v4582
      %v4619 = vpack.c.b16 %v4585, %v4584
      %v4620 = vpack.c.b16 %v4587, %v4586
      %v4621 = vpack.c.b16 %v4589, %v4588
      %v4622 = vpack.c.b16 %v4591, %v4590
      %v4623 = vpack.c.b16 %v4593, %v4592
      %v4624 = vpack.c.b16 %v4595, %v4594
      %v4625 = vpack.c.b16 %v4597, %v4596
      %v4626 = vpack.c.b16 %v4599, %v4598
      %v4627 = vpack.c.b16 %v4601, %v4600
      %v4628 = vpack.c.b16 %v4603, %v4602
      %v4629 = vpack.c.b16 %v4605, %v4604
      %v4630 = vpack.c.b16 %v4607, %v4606
      %v4631 = vpack.c.b16 %v4609, %v4608
      %v4632 = vpack.c.b16 %v4611, %v4610
      %v4633 = vpack.c.b16 %v4613, %v4612
      %v4634 = vpack.c.b16 %v4615, %v4614
      %v4635 = vpack.c.b16 %v4616, %v4616
      %vm4636 = vcmask 1044480
      %v4637 = vrot.slane %v4617, 3
      %v4638 = vrot.slane %v4618, 3
      %v4639 = vsel %vm4636, %v4637, %v4638
      %v4640 = vrot.slane %v4619, 3
      %v4641 = vsel %vm4636, %v4638, %v4640
      %v4642 = vrot.slane %v4620, 3
      %v4643 = vsel %vm4636, %v4640, %v4642
      %v4644 = vrot.slane %v4621, 3
      %v4645 = vsel %vm4636, %v4642, %v4644
      %v4646 = vrot.slane %v4622, 3
      %v4647 = vsel %vm4636, %v4644, %v4646
      %v4648 = vrot.slane %v4623, 3
      %v4649 = vsel %vm4636, %v4646, %v4648
      %v4650 = vrot.slane %v4624, 3
      %v4651 = vsel %vm4636, %v4648, %v4650
      %v4652 = vrot.slane %v4625, 3
      %v4653 = vsel %vm4636, %v4650, %v4652
      %v4654 = vrot.slane %v4626, 3
      %v4655 = vsel %vm4636, %v4652, %v4654
      %v4656 = vrot.slane %v4627, 3
      %v4657 = vsel %vm4636, %v4654, %v4656
      %v4658 = vrot.slane %v4628, 3
      %v4659 = vsel %vm4636, %v4656, %v4658
      %v4660 = vrot.slane %v4629, 3
      %v4661 = vsel %vm4636, %v4658, %v4660
      %v4662 = vrot.slane %v4630, 3
      %v4663 = vsel %vm4636, %v4660, %v4662
      %v4664 = vrot.slane %v4631, 3
      %v4665 = vsel %vm4636, %v4662, %v4664
      %v4666 = vrot.slane %v4632, 3
      %v4667 = vsel %vm4636, %v4664, %v4666
      %v4668 = vrot.slane %v4633, 3
      %v4669 = vsel %vm4636, %v4666, %v4668
      %v4670 = vrot.slane %v4634, 3
      %v4671 = vsel %vm4636, %v4668, %v4670
      %v4672 = vrot.slane %v4635, 3
      %v4673 = vsel %vm4636, %v4670, %v4672
      %v4675 = vsel %vm272, %v4639, 0
      %v4678 = vsel %vm272, %v4641, 0
      %v4681 = vsel %vm272, %v4643, 0
      %v4684 = vsel %vm272, %v4645, 0
      %v4687 = vsel %vm272, %v4647, 0
      %v4690 = vsel %vm272, %v4649, 0
      %v4693 = vsel %vm272, %v4651, 0
      %v4696 = vsel %vm272, %v4653, 0
      %v4699 = vsel %vm272, %v4655, 0
      %v4702 = vsel %vm272, %v4657, 0
      %v4705 = vsel %vm272, %v4659, 0
      %v4708 = vsel %vm272, %v4661, 0
      %v4711 = vsel %vm272, %v4663, 0
      %v4714 = vsel %vm272, %v4665, 0
      %v4717 = vsel %vm272, %v4667, 0
      %v4720 = vsel %vm272, %v4669, 0
      %v4723 = vsel %vm272, %v4671, 0
      %v4726 = vsel %vm272, %v4673, 0
      %v4729 = vsel %vm327, %v4542, 0
      %4731 = vmatprep.subr.bf16.mxu0 0
      %4732 = vmatpush1.bf16.msra.mxu0 %v4729
      %4733 = vmatprep.subr.bf16.mxu0 0
      %4734 = vmatpush1.bf16.msra.mxu0 0
      %4735 = vmatprep.subr.bf16.mxu0 0
      %4736 = vmatpush1.bf16.msra.mxu0 0
      %4737 = vmatprep.subr.bf16.mxu0 0
      %4738 = vmatpush1.bf16.msra.mxu0 0
      %4739 = vmatprep.subr.bf16.mxu0 0
      %4740 = vmatpush1.bf16.msra.mxu0 0
      %4741 = vmatprep.subr.bf16.mxu0 0
      %4742 = vmatpush1.bf16.msra.mxu0 0
      %4743 = vmatprep.subr.bf16.mxu0 0
      %4744 = vmatpush1.bf16.msra.mxu0 0
      %4745 = vmatprep.subr.bf16.mxu0 0
      %4746 = vmatpush1.bf16.msra.mxu0 0
      %4747 = vmatprep.subr.bf16.mxu0 0
      %4748 = vmatpush1.bf16.msra.mxu0 0
      %4749 = vmatprep.subr.bf16.mxu0 0
      %4750 = vmatpush1.bf16.msra.mxu0 0
      %4751 = vmatprep.subr.bf16.mxu0 0
      %4752 = vmatpush1.bf16.msra.mxu0 0
      %4753 = vmatprep.subr.bf16.mxu0 0
      %4754 = vmatpush1.bf16.msra.mxu0 0
      %4755 = vmatprep.subr.bf16.mxu0 0
      %4756 = vmatpush1.bf16.msra.mxu0 0
      %4757 = vmatprep.subr.bf16.mxu0 0
      %4758 = vmatpush1.bf16.msra.mxu0 0
      %4759 = vmatprep.subr.bf16.mxu0 0
      %4760 = vmatpush1.bf16.msra.mxu0 0
      %4761 = vmatprep.subr.bf16.mxu0 0
      %4762 = vmatpush1.bf16.msra.mxu0 0
      %4763 = vmatprep.mubr.bf16.mxu0 0
      %4764 = vmatmul.mubr.bf16.gmra.mrb[0].mxu0 %v4675
      %v4765 = vpop.f32.mrb[0].mxu0
      %v4766 = vadd.f32 0.0, %v4765
      %v4767 = vpop.f32.mrb[0].mxu0
      %v4768 = vpop.f32.mrb[0].mxu0
      %v4769 = vadd.f32 0.0, %v4768
      %v4770 = vpop.f32.mrb[0].mxu0
      %4771 = vmatprep.mubr.bf16.mxu0 0
      %4772 = vmatmul.mubr.bf16.gmra.mrb[0].mxu0 %v4678
      %v4773 = vpop.f32.mrb[0].mxu0
      %v4774 = vadd.f32 0.0, %v4773
      %v4775 = vpop.f32.mrb[0].mxu0
      %v4776 = vpop.f32.mrb[0].mxu0
      %v4777 = vadd.f32 0.0, %v4776
      %v4778 = vpop.f32.mrb[0].mxu0
      %4779 = vmatprep.mubr.bf16.mxu0 0
      %4780 = vmatmul.mubr.bf16.gmra.mrb[0].mxu0 %v4681
      %v4781 = vpop.f32.mrb[0].mxu0
      %v4782 = vadd.f32 0.0, %v4781
      %v4783 = vpop.f32.mrb[0].mxu0
      %v4784 = vpop.f32.mrb[0].mxu0
      %v4785 = vadd.f32 0.0, %v4784
      %v4786 = vpop.f32.mrb[0].mxu0
      %4787 = vmatprep.mubr.bf16.mxu0 0
      %4788 = vmatmul.mubr.bf16.gmra.mrb[0].mxu0 %v4684
      %v4789 = vpop.f32.mrb[0].mxu0
      %v4790 = vadd.f32 0.0, %v4789
      %v4791 = vpop.f32.mrb[0].mxu0
      %v4792 = vpop.f32.mrb[0].mxu0
      %v4793 = vadd.f32 0.0, %v4792
      %v4794 = vpop.f32.mrb[0].mxu0
      %4795 = vmatprep.mubr.bf16.mxu0 0
      %4796 = vmatmul.mubr.bf16.gmra.mrb[0].mxu0 %v4687
      %v4797 = vpop.f32.mrb[0].mxu0
      %v4798 = vadd.f32 0.0, %v4797
      %v4799 = vpop.f32.mrb[0].mxu0
      %v4800 = vpop.f32.mrb[0].mxu0
      %v4801 = vadd.f32 0.0, %v4800
      %v4802 = vpop.f32.mrb[0].mxu0
      %4803 = vmatprep.mubr.bf16.mxu0 0
      %4804 = vmatmul.mubr.bf16.gmra.mrb[0].mxu0 %v4690
      %v4805 = vpop.f32.mrb[0].mxu0
      %v4806 = vadd.f32 0.0, %v4805
      %v4807 = vpop.f32.mrb[0].mxu0
      %v4808 = vpop.f32.mrb[0].mxu0
      %v4809 = vadd.f32 0.0, %v4808
      %v4810 = vpop.f32.mrb[0].mxu0
      %4811 = vmatprep.mubr.bf16.mxu0 0
      %4812 = vmatmul.mubr.bf16.gmra.mrb[0].mxu0 %v4693
      %v4813 = vpop.f32.mrb[0].mxu0
      %v4814 = vadd.f32 0.0, %v4813
      %v4815 = vpop.f32.mrb[0].mxu0
      %v4816 = vpop.f32.mrb[0].mxu0
      %v4817 = vadd.f32 0.0, %v4816
      %v4818 = vpop.f32.mrb[0].mxu0
      %4819 = vmatprep.mubr.bf16.mxu0 0
      %4820 = vmatmul.mubr.bf16.gmra.mrb[0].mxu0 %v4696
      %v4821 = vpop.f32.mrb[0].mxu0
      %v4822 = vadd.f32 0.0, %v4821
      %v4823 = vpop.f32.mrb[0].mxu0
      %v4824 = vpop.f32.mrb[0].mxu0
      %v4825 = vadd.f32 0.0, %v4824
      %v4826 = vpop.f32.mrb[0].mxu0
      %4827 = vmatprep.mubr.bf16.mxu0 0
      %4828 = vmatmul.mubr.bf16.gmra.mrb[0].mxu0 %v4699
      %v4829 = vpop.f32.mrb[0].mxu0
      %v4830 = vadd.f32 0.0, %v4829
      %v4831 = vpop.f32.mrb[0].mxu0
      %v4832 = vpop.f32.mrb[0].mxu0
      %v4833 = vadd.f32 0.0, %v4832
      %v4834 = vpop.f32.mrb[0].mxu0
      %4835 = vmatprep.mubr.bf16.mxu0 0
      %4836 = vmatmul.mubr.bf16.gmra.mrb[0].mxu0 %v4702
      %v4837 = vpop.f32.mrb[0].mxu0
      %v4838 = vadd.f32 0.0, %v4837
      %v4839 = vpop.f32.mrb[0].mxu0
      %v4840 = vpop.f32.mrb[0].mxu0
      %v4841 = vadd.f32 0.0, %v4840
      %v4842 = vpop.f32.mrb[0].mxu0
      %4843 = vmatprep.mubr.bf16.mxu0 0
      %4844 = vmatmul.mubr.bf16.gmra.mrb[0].mxu0 %v4705
      %v4845 = vpop.f32.mrb[0].mxu0
      %v4846 = vadd.f32 0.0, %v4845
      %v4847 = vpop.f32.mrb[0].mxu0
      %v4848 = vpop.f32.mrb[0].mxu0
      %v4849 = vadd.f32 0.0, %v4848
      %v4850 = vpop.f32.mrb[0].mxu0
      %4851 = vmatprep.mubr.bf16.mxu0 0
      %4852 = vmatmul.mubr.bf16.gmra.mrb[0].mxu0 %v4708
      %v4853 = vpop.f32.mrb[0].mxu0
      %v4854 = vadd.f32 0.0, %v4853
      %v4855 = vpop.f32.mrb[0].mxu0
      %v4856 = vpop.f32.mrb[0].mxu0
      %v4857 = vadd.f32 0.0, %v4856
      %v4858 = vpop.f32.mrb[0].mxu0
      %4859 = vmatprep.mubr.bf16.mxu0 0
      %4860 = vmatmul.mubr.bf16.gmra.mrb[0].mxu0 %v4711
      %v4861 = vpop.f32.mrb[0].mxu0
      %v4862 = vadd.f32 0.0, %v4861
      %v4863 = vpop.f32.mrb[0].mxu0
      %v4864 = vpop.f32.mrb[0].mxu0
      %v4865 = vadd.f32 0.0, %v4864
      %v4866 = vpop.f32.mrb[0].mxu0
      %4867 = vmatprep.mubr.bf16.mxu0 0
      %4868 = vmatmul.mubr.bf16.gmra.mrb[0].mxu0 %v4714
      %v4869 = vpop.f32.mrb[0].mxu0
      %v4870 = vadd.f32 0.0, %v4869
      %v4871 = vpop.f32.mrb[0].mxu0
      %v4872 = vpop.f32.mrb[0].mxu0
      %v4873 = vadd.f32 0.0, %v4872
      %v4874 = vpop.f32.mrb[0].mxu0
      %4875 = vmatprep.mubr.bf16.mxu0 0
      %4876 = vmatmul.mubr.bf16.gmra.mrb[0].mxu0 %v4717
      %v4877 = vpop.f32.mrb[0].mxu0
      %v4878 = vadd.f32 0.0, %v4877
      %v4879 = vpop.f32.mrb[0].mxu0
      %v4880 = vpop.f32.mrb[0].mxu0
      %v4881 = vadd.f32 0.0, %v4880
      %v4882 = vpop.f32.mrb[0].mxu0
      %4883 = vmatprep.mubr.bf16.mxu0 0
      %4884 = vmatmul.mubr.bf16.gmra.mrb[0].mxu0 %v4720
      %v4885 = vpop.f32.mrb[0].mxu0
      %v4886 = vadd.f32 0.0, %v4885
      %v4887 = vpop.f32.mrb[0].mxu0
      %v4888 = vpop.f32.mrb[0].mxu0
      %v4889 = vadd.f32 0.0, %v4888
      %v4890 = vpop.f32.mrb[0].mxu0
      %4891 = vmatprep.mubr.bf16.mxu0 0
      %4892 = vmatmul.mubr.bf16.gmra.mrb[0].mxu0 %v4723
      %v4893 = vpop.f32.mrb[0].mxu0
      %v4894 = vadd.f32 0.0, %v4893
      %v4895 = vpop.f32.mrb[0].mxu0
      %v4896 = vpop.f32.mrb[0].mxu0
      %v4897 = vadd.f32 0.0, %v4896
      %v4898 = vpop.f32.mrb[0].mxu0
      %4899 = vmatprep.mubr.bf16.mxu0 0
      %4900 = vmatmul.mubr.bf16.gmra.mrb[0].mxu0 %v4726
      %v4901 = vpop.f32.mrb[0].mxu0
      %v4902 = vadd.f32 0.0, %v4901
      %v4903 = vpop.f32.mrb[0].mxu0
      %v4904 = vpop.f32.mrb[0].mxu0
      %v4905 = vadd.f32 0.0, %v4904
      %v4906 = vpop.f32.mrb[0].mxu0
      %4907 = vdwg.mxu0
      %v4908 = vld [vmem:[%s143] sm:$0xff]
      %v4909 = vld [vmem:[%s143 + $0x8] sm:$0xff]
      %v4910 = vld [vmem:[%s143 + $0x10] sm:$0xff]
      %v4911 = vld [vmem:[%s143 + $0x18] sm:$0xff]
      %v4912 = vld [vmem:[%s143 + $0x20] sm:$0xff]
      %v4913 = vld [vmem:[%s143 + $0x28] sm:$0xff]
      %v4914 = vld [vmem:[%s143 + $0x30] sm:$0xff]
      %v4915 = vld [vmem:[%s143 + $0x38] sm:$0xff]
      %v4916 = vld [vmem:[%s143 + $0x40] sm:$0xff]
      %v4917 = vld [vmem:[%s143 + $0x48] sm:$0xff]
      %v4918 = vld [vmem:[%s143 + $0x50] sm:$0xff]
      %v4919 = vld [vmem:[%s143 + $0x58] sm:$0xff]
      %v4920 = vld [vmem:[%s143 + $0x60] sm:$0xff]
      %v4921 = vld [vmem:[%s143 + $0x68] sm:$0xff]
      %v4922 = vld [vmem:[%s143 + $0x70] sm:$0xff]
      %v4923 = vld [vmem:[%s143 + $0x78] sm:$0xff]
      %v4924 = vld [vmem:[%s143 + $0x80] sm:$0xff]
      %v4925 = vld [vmem:[%s143 + $0x88] sm:$0xff]
      %v4926 = vld [vmem:[%s143 + $0x90] sm:$0xff]
      %v4927 = vld [vmem:[%s143 + $0x98] sm:$0xff]
      %v4928 = vld [vmem:[%s143 + $0xa0] sm:$0xff]
      %v4929 = vld [vmem:[%s143 + $0xa8] sm:$0xff]
      %v4930 = vld [vmem:[%s143 + $0xb0] sm:$0xff]
      %v4931 = vld [vmem:[%s143 + $0xb8] sm:$0xff]
      %v4932 = vld [vmem:[%s143 + $0xc0] sm:$0xff]
      %v4933 = vld [vmem:[%s143 + $0xc8] sm:$0xff]
      %v4934 = vld [vmem:[%s143 + $0xd0] sm:$0xff]
      %v4935 = vld [vmem:[%s143 + $0xd8] sm:$0xff]
      %v4936 = vld [vmem:[%s143 + $0xe0] sm:$0xff]
      %v4937 = vld [vmem:[%s143 + $0xe8] sm:$0xff]
      %v4938 = vld [vmem:[%s143 + $0xf0] sm:$0xff]
      %v4939 = vld [vmem:[%s143 + $0xf8] sm:$0xff]
      %v4940 = vld [vmem:[%s143 + $0x100] sm:$0xff]
      %v4941 = vld [vmem:[%s143 + $0x108] sm:$0xff]
      %v4942 = vld [vmem:[%s143 + $0x110] sm:$0xff]
      %v4943 = vld [vmem:[%s143 + $0x118] sm:$0xff]
      %v4944 = vadd.f32 %v4908, %v4766
      %v4945 = vadd.f32 %v4909, %v4769
      %v4946 = vadd.f32 %v4910, %v4774
      %v4947 = vadd.f32 %v4911, %v4777
      %v4948 = vadd.f32 %v4912, %v4782
      %v4949 = vadd.f32 %v4913, %v4785
      %v4950 = vadd.f32 %v4914, %v4790
      %v4951 = vadd.f32 %v4915, %v4793
      %v4952 = vadd.f32 %v4916, %v4798
      %v4953 = vadd.f32 %v4917, %v4801
      %v4954 = vadd.f32 %v4918, %v4806
      %v4955 = vadd.f32 %v4919, %v4809
      %v4956 = vadd.f32 %v4920, %v4814
      %v4957 = vadd.f32 %v4921, %v4817
      %v4958 = vadd.f32 %v4922, %v4822
      %v4959 = vadd.f32 %v4923, %v4825
      %v4960 = vadd.f32 %v4924, %v4830
      %v4961 = vadd.f32 %v4925, %v4833
      %v4962 = vadd.f32 %v4926, %v4838
      %v4963 = vadd.f32 %v4927, %v4841
      %v4964 = vadd.f32 %v4928, %v4846
      %v4965 = vadd.f32 %v4929, %v4849
      %v4966 = vadd.f32 %v4930, %v4854
      %v4967 = vadd.f32 %v4931, %v4857
      %v4968 = vadd.f32 %v4932, %v4862
      %v4969 = vadd.f32 %v4933, %v4865
      %v4970 = vadd.f32 %v4934, %v4870
      %v4971 = vadd.f32 %v4935, %v4873
      %v4972 = vadd.f32 %v4936, %v4878
      %v4973 = vadd.f32 %v4937, %v4881
      %v4974 = vadd.f32 %v4938, %v4886
      %v4975 = vadd.f32 %v4939, %v4889
      %v4976 = vadd.f32 %v4940, %v4894
      %v4977 = vadd.f32 %v4941, %v4897
      %v4978 = vadd.f32 %v4942, %v4902
      %v4979 = vadd.f32 %v4943, %v4905
      %4980 = vst.msk [vmem:[%s143] sm:$0xff] %vm508, %v4944
      %4981 = vst.msk [vmem:[%s143 + $0x8] sm:$0xff] %vm508, %v4945
      %4982 = vst.msk [vmem:[%s143 + $0x10] sm:$0xff] %vm508, %v4946
      %4983 = vst.msk [vmem:[%s143 + $0x18] sm:$0xff] %vm508, %v4947
      %4984 = vst.msk [vmem:[%s143 + $0x20] sm:$0xff] %vm508, %v4948
      %4985 = vst.msk [vmem:[%s143 + $0x28] sm:$0xff] %vm508, %v4949
      %4986 = vst.msk [vmem:[%s143 + $0x30] sm:$0xff] %vm508, %v4950
      %4987 = vst.msk [vmem:[%s143 + $0x38] sm:$0xff] %vm508, %v4951
      %4988 = vst.msk [vmem:[%s143 + $0x40] sm:$0xff] %vm508, %v4952
      %4989 = vst.msk [vmem:[%s143 + $0x48] sm:$0xff] %vm508, %v4953
      %4990 = vst.msk [vmem:[%s143 + $0x50] sm:$0xff] %vm508, %v4954
      %4991 = vst.msk [vmem:[%s143 + $0x58] sm:$0xff] %vm508, %v4955
      %4992 = vst.msk [vmem:[%s143 + $0x60] sm:$0xff] %vm508, %v4956
      %4993 = vst.msk [vmem:[%s143 + $0x68] sm:$0xff] %vm508, %v4957
      %4994 = vst.msk [vmem:[%s143 + $0x70] sm:$0xff] %vm508, %v4958
      %4995 = vst.msk [vmem:[%s143 + $0x78] sm:$0xff] %vm508, %v4959
      %4996 = vst.msk [vmem:[%s143 + $0x80] sm:$0xff] %vm508, %v4960
      %4997 = vst.msk [vmem:[%s143 + $0x88] sm:$0xff] %vm508, %v4961
      %4998 = vst.msk [vmem:[%s143 + $0x90] sm:$0xff] %vm508, %v4962
      %4999 = vst.msk [vmem:[%s143 + $0x98] sm:$0xff] %vm508, %v4963
      %5000 = vst.msk [vmem:[%s143 + $0xa0] sm:$0xff] %vm508, %v4964
      %5001 = vst.msk [vmem:[%s143 + $0xa8] sm:$0xff] %vm508, %v4965
      %5002 = vst.msk [vmem:[%s143 + $0xb0] sm:$0xff] %vm508, %v4966
      %5003 = vst.msk [vmem:[%s143 + $0xb8] sm:$0xff] %vm508, %v4967
      %5004 = vst.msk [vmem:[%s143 + $0xc0] sm:$0xff] %vm508, %v4968
      %5005 = vst.msk [vmem:[%s143 + $0xc8] sm:$0xff] %vm508, %v4969
      %5006 = vst.msk [vmem:[%s143 + $0xd0] sm:$0xff] %vm508, %v4970
      %5007 = vst.msk [vmem:[%s143 + $0xd8] sm:$0xff] %vm508, %v4971
      %5008 = vst.msk [vmem:[%s143 + $0xe0] sm:$0xff] %vm508, %v4972
      %5009 = vst.msk [vmem:[%s143 + $0xe8] sm:$0xff] %vm508, %v4973
      %5010 = vst.msk [vmem:[%s143 + $0xf0] sm:$0xff] %vm508, %v4974
      %5011 = vst.msk [vmem:[%s143 + $0xf8] sm:$0xff] %vm508, %v4975
      %5012 = vst.msk [vmem:[%s143 + $0x100] sm:$0xff] %vm508, %v4976
      %5013 = vst.msk [vmem:[%s143 + $0x108] sm:$0xff] %vm508, %v4977
      %5014 = vst.msk [vmem:[%s143 + $0x110] sm:$0xff] %vm508, %v4978
      %5015 = vst.msk [vmem:[%s143 + $0x118] sm:$0xff] %vm508, %v4979
      %p5016 = scmp.lt.s32.totalorder %s13, 1
      %s5017 = scalar_select %p5016, %s13, 1
      %s5018 = smul.addr %s5017, 36
      %s5019 = smul.addr %s5018, 8
      %s5020 = scalar_lea.vmem %s2, %s5019
      // Predicated region
      $region29: #{quanoise_conv2d_pallas.1} parent=27 // pred_check
        %p5021 = pneg %p78
      $region30: #{quanoise_conv2d_pallas.1} parent=27 // pred_check_branch
        %5023 = sbr.rel (%p5021) target = $region32
      $region31: #{quanoise_conv2d_pallas.1} parent=27 // pred_region
        _
      $region32: #{quanoise_conv2d_pallas.1} parent=27 // pred_fallthru
        _
    $region28: #{quanoise_conv2d_pallas.1} parent=5 // pred_fallthru
      _
    %p5024 = scmp.le.s32.totalorder 2, %s8
    // Predicated region
    $region33: #{quanoise_conv2d_pallas.1} parent=5 // pred_check
      %p5025 = pneg %p5024
    $region34: #{quanoise_conv2d_pallas.1} parent=5 // pred_check_branch
      %5027 = sbr.rel (%p5025) target = $region36
    $region35: #{quanoise_conv2d_pallas.1} parent=5 // pred_region
      %s5028 = ssub.s32 %s8, 2
      // Predicated region
      $region37: #{quanoise_conv2d_pallas.1} parent=35 // pred_check
        %p5029 = pneg %p84
      $region38: #{quanoise_conv2d_pallas.1} parent=35 // pred_check_branch
        %5031 = sbr.rel (%p5029) target = $region40
      $region39: #{quanoise_conv2d_pallas.1} parent=35 // pred_region
        %p5032 = scmp.lt.s32.totalorder %s14, 1
        %s5033 = scalar_select %p5032, %s14, 1
        %s5034 = smul.addr %s5033, 36
        %s5035 = smul.addr %s5034, 8
        %s5036 = scalar_lea.vmem %s2, %s5035
      $region40: #{quanoise_conv2d_pallas.1} parent=35 // pred_fallthru
        _
    $region36: #{quanoise_conv2d_pallas.1} parent=5 // pred_fallthru
      _
  $region6: #{quanoise_conv2d_pallas.1} parent=0 // loop_footer
    %s12 = sadd.s32 1, %s8
  $region7: #{quanoise_conv2d_pallas.1} parent=0 // loop_footer_branch
    %7 = sbr.rel target = $region3
  $region8: #{quanoise_conv2d_pallas.1} parent=0 // loop_exit
    _

</llo_original>
